<compile_context>
chip_gen: v5e
topology: v5e:2x2
jax: 0.10.0
libtpu: 0.0.40
codegen_flags: <defaults>
</compile_context>

<pallas_src>
import functools
import math

import jax
import jax.numpy as jnp
from jax.experimental import pallas as pl
from jax.experimental.pallas import tpu as pltpu


# ----------------------------------------------------------------------------
# Helpers
# ----------------------------------------------------------------------------

def _round_up(x, m):
    return ((x + m - 1) // m) * m


def _pick_tile(dim, target, align):
    """Largest multiple of `align` <= target that divides `dim`; else full dim."""
    if dim <= target:
        return dim
    t = (target // align) * align
    while t >= align:
        if dim % t == 0:
            return t
        t -= align
    return dim


def _vmem_limit_bytes(block_bytes, scratch_bytes=0):
    """Double-buffered blocks + scratch + margin, clamped to [32 MiB, 60 MiB]."""
    est = 2 * block_bytes + scratch_bytes + (4 << 20)
    return int(min(60 << 20, max(est, 32 << 20)))


# ----------------------------------------------------------------------------
# Fused (LayerNorm) + matmul + bias (+ QuickGELU) (+ residual) kernel
# ----------------------------------------------------------------------------

def _fused_matmul_kernel(*refs, has_ln, has_res, activation, eps):
    x_ref, w_ref, b_ref = refs[0], refs[1], refs[2]
    idx = 3
    if has_ln:
        g_ref, be_ref = refs[idx], refs[idx + 1]
        idx += 2
    if has_res:
        r_ref = refs[idx]
        idx += 1
    o_ref = refs[idx]
    acc_ref = refs[idx + 1]
    xln_ref = refs[idx + 2] if has_ln else None

    j = pl.program_id(1)
    k = pl.program_id(2)

    @pl.when(k == 0)
    def _init():
        acc_ref[...] = jnp.zeros_like(acc_ref)

    if has_ln:
        # LN of the LHS row-tile is computed once per row-tile (j == 0), cached in
        # VMEM as bf16 and reused for every N tile (K is untiled for LN calls).
        @pl.when(j == 0)
        def _ln():
            x = x_ref[...].astype(jnp.float32)
            mu = jnp.mean(x, axis=-1, keepdims=True)
            xc = x - mu
            var = jnp.mean(xc * xc, axis=-1, keepdims=True)
            xn = xc * jax.lax.rsqrt(var + eps) * g_ref[...] + be_ref[...]
            xln_ref[...] = xn.astype(jnp.bfloat16)

        lhs = xln_ref[...]
    else:
        lhs = x_ref[...].astype(jnp.bfloat16)

    # bf16 MXU inputs, f32 accumulation.
    acc_ref[...] += jnp.dot(lhs, w_ref[...].astype(jnp.bfloat16),
                            preferred_element_type=jnp.float32)

    @pl.when(k == pl.num_programs(2) - 1)
    def _finish():
        out = acc_ref[...] + b_ref[...]
        if activation == "quick_gelu":
            out = out * jax.nn.sigmoid(1.702 * out)   # CLIP QuickGELU, f32
        if has_res:
            out = out + r_ref[...].astype(jnp.float32)
        o_ref[...] = out.astype(o_ref.dtype)


def fused_matmul(x, w, b, *, ln=None, residual=None, activation=None,
                 out_dtype=jnp.float32, eps=1e-5,
                 tm_target=256, tn_target=512, tk_target=512):
    """out = [LN(x)] @ w + b [quick_gelu] [+ residual], emitted as out_dtype."""
    M, K = x.shape
    K2, N = w.shape
    assert K == K2
    has_ln = ln is not None
    has_res = residual is not None

    tm = _pick_tile(M, tm_target, 8)
    tn = _pick_tile(N, tn_target, 128)
    tk = K if has_ln else _pick_tile(K, tk_target, 128)
    assert M % tm == 0 and N % tn == 0 and K % tk == 0
    nm, nn, nk = M // tm, N // tn, K // tk

    inputs = [x, w, b.reshape(1, N).astype(jnp.float32)]
    in_specs = [
        pl.BlockSpec((tm, tk), lambda i, j, k: (i, k)),
        pl.BlockSpec((tk, tn), lambda i, j, k: (k, j)),
        pl.BlockSpec((1, tn), lambda i, j, k: (0, j)),
    ]
    block_bytes = (tm * tk * x.dtype.itemsize + tk * tn * w.dtype.itemsize
                   + tn * 4 + tm * tn * jnp.dtype(out_dtype).itemsize)
    scratch_shapes = [pltpu.VMEM((tm, tn), jnp.float32)]
    scratch_bytes = tm * tn * 4

    if has_ln:
        assert nk == 1, "LayerNorm fusion requires an untiled K axis"
        g, be = ln
        inputs += [g.reshape(1, K).astype(jnp.float32),
                   be.reshape(1, K).astype(jnp.float32)]
        in_specs += [pl.BlockSpec((1, tk), lambda i, j, k: (0, k)),
                     pl.BlockSpec((1, tk), lambda i, j, k: (0, k))]
        scratch_shapes.append(pltpu.VMEM((tm, K), jnp.bfloat16))
        block_bytes += 2 * K * 4
        scratch_bytes += tm * K * 2
    if has_res:
        inputs.append(residual)
        in_specs.append(pl.BlockSpec((tm, tn), lambda i, j, k: (i, j)))
        block_bytes += tm * tn * residual.dtype.itemsize

    # LN caching creates a j -> j+1 dependence through the VMEM scratch, so the N
    # axis must stay sequential on one core in that case.
    dims = (("parallel", "arbitrary", "arbitrary") if has_ln
            else ("parallel", "parallel", "arbitrary"))

    kernel = functools.partial(_fused_matmul_kernel, has_ln=has_ln,
                               has_res=has_res, activation=activation, eps=eps)
    return pl.pallas_call(
        kernel,
        out_shape=jax.ShapeDtypeStruct((M, N), out_dtype),
        grid=(nm, nn, nk),
        in_specs=in_specs,
        out_specs=pl.BlockSpec((tm, tn), lambda i, j, k: (i, j)),
        scratch_shapes=scratch_shapes,
        compiler_params=pltpu.CompilerParams(
            dimension_semantics=dims,
            vmem_limit_bytes=_vmem_limit_bytes(block_bytes, scratch_bytes)),
    )(*inputs)


# ----------------------------------------------------------------------------
# Class token + positional embedding + ln_pre fused into one per-batch kernel
# ----------------------------------------------------------------------------

def _embed_ln_kernel(patches_ref, cls_pos_ref, g_ref, b_ref, o_ref, *, eps):
    n_patches, d = patches_ref.shape[1], patches_ref.shape[2]
    t_pad = o_ref.shape[1]
    p = patches_ref[0].astype(jnp.float32)                     # [Np, D]
    parts = [jnp.zeros((1, d), jnp.float32), p]
    tail = t_pad - 1 - n_patches
    if tail > 0:
        parts.append(jnp.zeros((tail, d), jnp.float32))
    # row 0: cls + pos[0]; rows 1..Np: patches + pos; pad rows: LN(0) = beta (unused).
    x = jnp.concatenate(parts, axis=0) + cls_pos_ref[...]      # [Tp, D]
    mu = jnp.mean(x, axis=-1, keepdims=True)
    xc = x - mu
    var = jnp.mean(xc * xc, axis=-1, keepdims=True)
    o_ref[0] = (xc * jax.lax.rsqrt(var + eps) * g_ref[...] + b_ref[...]
                ).astype(o_ref.dtype)


def embed_tokens(patches, cls_pos, gamma, beta, *, eps=1e-5):
    """patches [B,Np,D] bf16; cls_pos [Tp,D] (row0=cls+pos0, rows 1..Np=pos, rest 0).
    Returns ln_pre(token embedding) as bf16 [B, Tp, D]."""
    B, Np, D = patches.shape
    Tp = cls_pos.shape[0]
    kernel = functools.partial(_embed_ln_kernel, eps=eps)
    return pl.pallas_call(
        kernel,
        out_shape=jax.ShapeDtypeStruct((B, Tp, D), jnp.bfloat16),
        grid=(B,),
        in_specs=[pl.BlockSpec((1, Np, D), lambda b: (b, 0, 0)),
                  pl.BlockSpec((Tp, D), lambda b: (0, 0)),
                  pl.BlockSpec((1, D), lambda b: (0, 0)),
                  pl.BlockSpec((1, D), lambda b: (0, 0))],
        out_specs=pl.BlockSpec((1, Tp, D), lambda b: (b, 0, 0)),
        compiler_params=pltpu.CompilerParams(
            dimension_semantics=("parallel",)),
    )(patches, cls_pos, gamma.reshape(1, D).astype(jnp.float32),
      beta.reshape(1, D).astype(jnp.float32))


# ----------------------------------------------------------------------------
# Multi-head self-attention: grid = (batch, head-group); q/k/v column blocks read
# straight out of the [B, Tp, 3D] bf16 QKV activation; padded keys masked.
# ----------------------------------------------------------------------------

def _attention_kernel(q_ref, k_ref, v_ref, o_ref, *, heads_per_group, head_dim,
                      t_real):
    t_pad = q_ref.shape[1]
    q = q_ref[0]     # [Tp, GD] bf16 (1/sqrt(Dh) scale already folded into W_q)
    k = k_ref[0]
    v = v_ref[0]
    if t_real < t_pad:
        key_ids = jax.lax.broadcasted_iota(jnp.int32, (1, t_pad), 1)
        mask_bias = jnp.where(key_ids < t_real, 0.0, -1e30).astype(jnp.float32)
    outs = []
    for h in range(heads_per_group):                 # static unroll over heads
        sl = slice(h * head_dim, (h + 1) * head_dim)
        s = jax.lax.dot_general(q[:, sl], k[:, sl], (((1,), (1,)), ((), ())),
                                preferred_element_type=jnp.float32)   # [Tp, Tp]
        if t_real < t_pad:
            s = s + mask_bias                                         # mask pad keys
        m = jnp.max(s, axis=-1, keepdims=True)
        p = jnp.exp(s - m)
        inv = pl.reciprocal(jnp.sum(p, axis=-1, keepdims=True), approx=True)
        oh = jnp.dot(p.astype(jnp.bfloat16), v[:, sl],
                     preferred_element_type=jnp.float32) * inv        # [Tp, Dh]
        outs.append(oh)
    out = outs[0] if len(outs) == 1 else jnp.concatenate(outs, axis=-1)
    o_ref[0] = out.astype(o_ref.dtype)               # single lane-dense store


def multihead_attention_from_qkv(qkv3, heads, t_real):
    """qkv3: [B, Tp, 3D] bf16 (q | k | v along last dim) -> [B, Tp, D] bf16."""
    B, Tp, threeD = qkv3.shape
    D = threeD // 3
    Dh = D // heads
    assert D % 128 == 0, "width must be a multiple of 128 for lane-dense attention"
    gw = math.lcm(Dh, 128)               # head-group width (whole heads, >= 128 lanes)
    if D % gw != 0:
        gw = D
    n_groups = D // gw
    hpg = gw // Dh
    kernel = functools.partial(_attention_kernel, heads_per_group=hpg,
                               head_dim=Dh, t_real=t_real)
    block_bytes = 4 * Tp * gw * qkv3.dtype.itemsize
    return pl.pallas_call(
        kernel,
        out_shape=jax.ShapeDtypeStruct((B, Tp, D), jnp.bfloat16),
        grid=(B, n_groups),
        in_specs=[
            pl.BlockSpec((1, Tp, gw), lambda b, g: (b, 0, g)),
            pl.BlockSpec((1, Tp, gw), lambda b, g: (b, 0, n_groups + g)),
            pl.BlockSpec((1, Tp, gw), lambda b, g: (b, 0, 2 * n_groups + g)),
        ],
        out_specs=pl.BlockSpec((1, Tp, gw), lambda b, g: (b, 0, g)),
        compiler_params=pltpu.CompilerParams(
            dimension_semantics=("parallel", "parallel"),
            vmem_limit_bytes=_vmem_limit_bytes(block_bytes,
                                               scratch_bytes=8 * Tp * Tp * 4)),
    )(qkv3, qkv3, qkv3)


# ----------------------------------------------------------------------------
# Scaled-down CLIP ViT image encoder (forward)
# ----------------------------------------------------------------------------

def init_params(key, cfg):
    C, P, D = cfg["in_ch"], cfg["patch"], cfg["width"]
    heads = cfg["heads"]
    T = (cfg["img"] // P) ** 2 + 1
    L, FFN, OUT = cfg["layers"], 4 * D, cfg["embed_dims"]
    Dh = D // heads
    scale = Dh ** -0.5

    keys = list(jax.random.split(key, 16 + 8 * L))
    ki = iter(keys)

    def nrm(shape, std=0.02):
        return std * jax.random.normal(next(ki), shape, jnp.float32)

    mean = jnp.array([0.48145466, 0.4578275, 0.40821073], jnp.float32)
    std = jnp.array([0.26862954, 0.26130258, 0.27577711], jnp.float32)

    # Conv patch embed (no bias in CLIP) with per-channel (x-mean)/std folded in.
    conv1_w = nrm((D, C, P, P))
    w_scaled = conv1_w / std[None, :, None, None]
    patch_w = w_scaled.reshape(D, C * P * P).T.astype(jnp.bfloat16)        # [C*P*P, D]
    patch_b = -(w_scaled * mean[None, :, None, None]).sum(axis=(1, 2, 3))  # [D]

    params = {
        "patch_w": patch_w,
        "patch_b": patch_b.astype(jnp.float32),
        "class_embedding": nrm((D,)),
        "positional_embedding": nrm((T, D)),
        "ln_pre_g": jnp.ones((D,), jnp.float32),
        "ln_pre_b": jnp.zeros((D,), jnp.float32),
        "ln_post_g": jnp.ones((D,), jnp.float32),
        "ln_post_b": jnp.zeros((D,), jnp.float32),
        "proj": nrm((D, OUT)).astype(jnp.bfloat16),
        "layers": [],
    }
    # Weights pre-transposed (oriented for x @ W) and bf16; the 1/sqrt(Dh) attention
    # scale is folded into the Q projection columns (and bias) once at init.
    q_scale = jnp.concatenate([jnp.full((D,), scale, jnp.float32),
                               jnp.ones((2 * D,), jnp.float32)])
    for _ in range(L):
        in_w = nrm((D, 3 * D)) * q_scale[None, :]
        in_b = jnp.zeros((3 * D,), jnp.float32) * q_scale
        params["layers"].append({
            "ln1_g": jnp.ones((D,), jnp.float32),
            "ln1_b": jnp.zeros((D,), jnp.float32),
            "in_proj_w": in_w.astype(jnp.bfloat16),
            "in_proj_b": in_b,
            "out_proj_w": nrm((D, D)).astype(jnp.bfloat16),
            "out_proj_b": jnp.zeros((D,), jnp.float32),
            "ln2_g": jnp.ones((D,), jnp.float32),
            "ln2_b": jnp.zeros((D,), jnp.float32),
            "fc1_w": nrm((D, FFN)).astype(jnp.bfloat16),
            "fc1_b": jnp.zeros((FFN,), jnp.float32),
            "fc2_w": nrm((FFN, D)).astype(jnp.bfloat16),
            "fc2_b": jnp.zeros((D,), jnp.float32),
        })
    return params


def clip_forward(x, params, cfg):
    """x: [B, C, H, W] float32 (NCHW, like PyTorch).  Returns [B, embed_dims] f32."""
    B, C, H, W = x.shape
    assert H == cfg["img"] and W == cfg["img"]
    P, D, heads = cfg["patch"], cfg["width"], cfg["heads"]

    # 1) patch embedding (per-channel normalization folded into weights/bias).
    gy, gx = H // P, W // P
    Np = gy * gx
    T = Np + 1
    Tp = _round_up(T, 8)            # pad tokens -> M = B*Tp keeps healthy MXU tiles
    xp = (x.reshape(B, C, gy, P, gx, P)
            .transpose(0, 2, 4, 1, 3, 5)                # [B, gy, gx, C, P, P]
            .reshape(B * Np, C * P * P))
    patches = fused_matmul(xp, params["patch_w"], params["patch_b"],
                           out_dtype=jnp.bfloat16).reshape(B, Np, D)

    # 2) class token + positional embedding + ln_pre in one fused kernel.
    cls_pos = params["positional_embedding"].at[0].add(params["class_embedding"])
    cls_pos = jnp.pad(cls_pos, ((0, Tp - T), (0, 0)))            # [Tp, D]
    tok2d = embed_tokens(patches, cls_pos, params["ln_pre_g"],
                         params["ln_pre_b"]).reshape(B * Tp, D)  # bf16 residual stream
    M = B * Tp

    # 3) transformer layers (5 pallas_calls per layer; bf16 activations throughout).
    for lyr in params["layers"]:
        qkv = fused_matmul(tok2d, lyr["in_proj_w"], lyr["in_proj_b"],
                           ln=(lyr["ln1_g"], lyr["ln1_b"]),
                           out_dtype=jnp.bfloat16)                       # [M, 3D]
        attn = multihead_attention_from_qkv(qkv.reshape(B, Tp, 3 * D),
                                            heads, t_real=T)             # [B, Tp, D]
        tok2d = fused_matmul(attn.reshape(M, D), lyr["out_proj_w"],
                             lyr["out_proj_b"], residual=tok2d,
                             out_dtype=jnp.bfloat16)                     # [M, D]
        h = fused_matmul(tok2d, lyr["fc1_w"], lyr["fc1_b"],
                         ln=(lyr["ln2_g"], lyr["ln2_b"]),
                         activation="quick_gelu", out_dtype=jnp.bfloat16)  # [M, FFN]
        tok2d = fused_matmul(h, lyr["fc2_w"], lyr["fc2_b"],
                             residual=tok2d, out_dtype=jnp.bfloat16)     # [M, D]

    # 4) ln_post fused into the final projection of the class token.
    cls_tok = tok2d.reshape(B, Tp, D)[:, 0, :]                           # [B, D]
    feats = fused_matmul(cls_tok, params["proj"],
                         jnp.zeros((cfg["embed_dims"],), jnp.float32),
                         ln=(params["ln_post_g"], params["ln_post_b"]),
                         out_dtype=jnp.float32)
    return feats                                                         # [B, embed_dims]


# ----------------------------------------------------------------------------
# Main
# ----------------------------------------------------------------------------

if __name__ == "__main__":
    cfg = dict(
        img=16,           # scaled-down input size (real ViT-L/14 uses 224)
        in_ch=3,
        patch=8,          # -> 2x2 = 4 patches + 1 class token = 5 tokens (padded to 8)
        width=128,        # hidden width (real: 1024); multiple of 128 -> lane dense
        heads=4,          # head dim 32 (real: 64)
        layers=2,         # real: 24
        embed_dims=128,   # real: 768
    )

    key = jax.random.PRNGKey(0)
    k_param, k_x = jax.random.split(key)
    params = init_params(k_param, cfg)

    x = jax.random.uniform(k_x, (2, cfg["in_ch"], cfg["img"], cfg["img"]),
                           dtype=jnp.float32)

    fwd = jax.jit(functools.partial(clip_forward, cfg=cfg))
    feats = jax.block_until_ready(fwd(x, params))
    assert feats.shape == (2, cfg["embed_dims"])
    assert bool(jnp.all(jnp.isfinite(feats)))
    print("KERNEL_OK")
</pallas_src>

<mosaic_0001>
module attributes {stable_mosaic.version = 11 : i64} {
  func.func @_fused_matmul_kernel(%arg0: i32, %arg1: i32, %arg2: i32, %arg3: memref<8x192xf32, #tpu.memory_space<vmem>>, %arg4: memref<192x128xbf16, #tpu.memory_space<vmem>>, %arg5: memref<1x128xf32, #tpu.memory_space<vmem>>, %arg6: memref<8x128xbf16, #tpu.memory_space<vmem>>, %arg7: memref<8x128xf32, #tpu.memory_space<vmem>>) attributes {dimension_semantics = [#tpu.dimension_semantics<parallel>, #tpu.dimension_semantics<parallel>, #tpu.dimension_semantics<arbitrary>], iteration_bounds = array<i64: 1, 1, 1>, scalar_prefetch = 0 : i64, scratch_operands = 1 : i64, tpu.core_type = #tpu.core_type<tc>, window_params = [{transform_indices = @transform_0, window_bounds = array<i64: 8, 192>}, {transform_indices = @transform_1, window_bounds = array<i64: 192, 128>}, {transform_indices = @transform_2, window_bounds = array<i64: 1, 128>}, {transform_indices = @transform_3, window_bounds = array<i64: 8, 128>}]} {
    %c0_i32 = arith.constant 0 : i32
    %0 = arith.cmpi eq, %arg2, %c0_i32 : i32
    %1 = arith.extui %0 : i1 to i32
    %c0_i32_0 = arith.constant 0 : i32
    %2 = arith.cmpi ne, %1, %c0_i32_0 : i32
    scf.if %2 {
      %cst_10 = arith.constant 0.000000e+00 : f32
      %13 = vector.broadcast %cst_10 : f32 to vector<8x128xf32>
      %c0_11 = arith.constant 0 : index
      %c0_12 = arith.constant 0 : index
      %14 = vector.load %arg7[%c0_11, %c0_12] : memref<8x128xf32, #tpu.memory_space<vmem>>, vector<8x128xf32>
      tpu.vector_store %arg7[%c0_11, %c0_12], %13 {strides = array<i32>} : memref<8x128xf32, #tpu.memory_space<vmem>>, vector<8x128xf32>,
    } else {
    }
    %c0 = arith.constant 0 : index
    %c0_1 = arith.constant 0 : index
    %3 = vector.load %arg3[%c0, %c0_1] : memref<8x192xf32, #tpu.memory_space<vmem>>, vector<8x192xf32>
    %4 = arith.truncf %3 : vector<8x192xf32> to vector<8x192xbf16>
    %c0_2 = arith.constant 0 : index
    %c0_3 = arith.constant 0 : index
    %5 = vector.load %arg7[%c0_2, %c0_3] : memref<8x128xf32, #tpu.memory_space<vmem>>, vector<8x128xf32>
    %c0_4 = arith.constant 0 : index
    %c0_5 = arith.constant 0 : index
    %6 = vector.load %arg4[%c0_4, %c0_5] : memref<192x128xbf16, #tpu.memory_space<vmem>>, vector<192x128xbf16>
    %cst = arith.constant dense<0.000000e+00> : vector<8x128xf32>
    %7 = tpu.matmul %4, %6, %cst {dimension_numbers = #tpu.dot_dimension_numbers<[1], [0], [0], [1], [0, 0, 1, 1], [], []>} : vector<8x192xbf16>, vector<192x128xbf16>, vector<8x128xf32> -> vector<8x128xf32>
    %8 = arith.addf %5, %7 : vector<8x128xf32>
    %c0_6 = arith.constant 0 : index
    %c0_7 = arith.constant 0 : index
    %9 = vector.load %arg7[%c0_6, %c0_7] : memref<8x128xf32, #tpu.memory_space<vmem>>, vector<8x128xf32>
    tpu.vector_store %arg7[%c0_6, %c0_7], %8 {strides = array<i32>} : memref<8x128xf32, #tpu.memory_space<vmem>>, vector<8x128xf32>,
    %c0_i32_8 = arith.constant 0 : i32
    %10 = arith.cmpi eq, %arg2, %c0_i32_8 : i32
    %11 = arith.extui %10 : i1 to i32
    %c0_i32_9 = arith.constant 0 : i32
    %12 = arith.cmpi ne, %11, %c0_i32_9 : i32
    scf.if %12 {
      %c0_10 = arith.constant 0 : index
      %c0_11 = arith.constant 0 : index
      %13 = vector.load %arg7[%c0_10, %c0_11] : memref<8x128xf32, #tpu.memory_space<vmem>>, vector<8x128xf32>
      %c0_12 = arith.constant 0 : index
      %c0_13 = arith.constant 0 : index
      %14 = vector.load %arg5[%c0_12, %c0_13] : memref<1x128xf32, #tpu.memory_space<vmem>>, vector<1x128xf32>
      %15 = vector.broadcast %14 : vector<1x128xf32> to vector<8x128xf32>
      %16 = arith.addf %13, %15 : vector<8x128xf32>
      %17 = arith.truncf %16 : vector<8x128xf32> to vector<8x128xbf16>
      %c0_14 = arith.constant 0 : index
      %c0_15 = arith.constant 0 : index
      %18 = vector.load %arg6[%c0_14, %c0_15] : memref<8x128xbf16, #tpu.memory_space<vmem>>, vector<8x128xbf16>
      tpu.vector_store %arg6[%c0_14, %c0_15], %17 {strides = array<i32>} : memref<8x128xbf16, #tpu.memory_space<vmem>>, vector<8x128xbf16>,
    } else {
    }
    return
  }
  func.func @transform_0(%arg0: i32, %arg1: i32, %arg2: i32) -> (i32, i32) {
    %c0_i32 = arith.constant 0 : i32
    return %arg0, %arg2 : i32, i32
  }
  func.func @transform_1(%arg0: i32, %arg1: i32, %arg2: i32) -> (i32, i32) {
    %c0_i32 = arith.constant 0 : i32
    return %arg2, %arg1 : i32, i32
  }
  func.func @transform_2(%arg0: i32, %arg1: i32, %arg2: i32) -> (i32, i32) {
    %c0_i32 = arith.constant 0 : i32
    %c0_i32_0 = arith.constant 0 : i32
    return %c0_i32, %arg1 : i32, i32
  }
  func.func @transform_3(%arg0: i32, %arg1: i32, %arg2: i32) -> (i32, i32) {
    %c0_i32 = arith.constant 0 : i32
    return %arg0, %arg1 : i32, i32
  }
}

module attributes {stable_mosaic.version = 11 : i64} {
  func.func @_embed_ln_kernel(%arg0: i32, %arg1: memref<1x4x128xbf16, #tpu.memory_space<vmem>>, %arg2: memref<8x128xf32, #tpu.memory_space<vmem>>, %arg3: memref<1x128xf32, #tpu.memory_space<vmem>>, %arg4: memref<1x128xf32, #tpu.memory_space<vmem>>, %arg5: memref<1x8x128xbf16, #tpu.memory_space<vmem>>) attributes {dimension_semantics = [#tpu.dimension_semantics<parallel>], iteration_bounds = array<i64: 2>, scalar_prefetch = 0 : i64, scratch_operands = 0 : i64, tpu.core_type = #tpu.core_type<tc>, window_params = [{transform_indices = @transform_0, window_bounds = array<i64: 1, 4, 128>}, {pipeline_mode = #tpu.pipeline_mode<synchronous>, transform_indices = @transform_1, window_bounds = array<i64: 8, 128>}, {pipeline_mode = #tpu.pipeline_mode<synchronous>, transform_indices = @transform_2, window_bounds = array<i64: 1, 128>}, {pipeline_mode = #tpu.pipeline_mode<synchronous>, transform_indices = @transform_3, window_bounds = array<i64: 1, 128>}, {transform_indices = @transform_4, window_bounds = array<i64: 1, 8, 128>}]} {
    %c0 = arith.constant 0 : index
    %c0_0 = arith.constant 0 : index
    %c0_1 = arith.constant 0 : index
    %0 = vector.load %arg1[%c0, %c0_0, %c0_1] : memref<1x4x128xbf16, #tpu.memory_space<vmem>>, vector<1x4x128xbf16>
    %1 = vector.shape_cast %0 : vector<1x4x128xbf16> to vector<4x128xbf16>
    %2 = arith.extf %1 : vector<4x128xbf16> to vector<4x128xf32>
    %cst = arith.constant 0.000000e+00 : f32
    %3 = vector.broadcast %cst : f32 to vector<1x128xf32>
    %cst_2 = arith.constant 0.000000e+00 : f32
    %4 = vector.broadcast %cst_2 : f32 to vector<3x128xf32>
    %5 = tpu.concatenate %3, %2, %4 in 0 : vector<1x128xf32>, vector<4x128xf32>, vector<3x128xf32> -> vector<8x128xf32>
    %c0_3 = arith.constant 0 : index
    %c0_4 = arith.constant 0 : index
    %6 = vector.load %arg2[%c0_3, %c0_4] : memref<8x128xf32, #tpu.memory_space<vmem>>, vector<8x128xf32>
    %7 = arith.addf %5, %6 : vector<8x128xf32>
    %cst_5 = arith.constant dense<0.000000e+00> : vector<8xf32>
    %8 = vector.multi_reduction <add>, %7, %cst_5 [1] : vector<8x128xf32> to vector<8xf32>
    %9 = vector.shape_cast %8 : vector<8xf32> to vector<8x1xf32>
    %cst_6 = arith.constant 1.280000e+02 : f32
    %10 = vector.broadcast %cst_6 : f32 to vector<8x1xf32>
    %11 = arith.divf %9, %10 : vector<8x1xf32>
    %12 = vector.broadcast %11 : vector<8x1xf32> to vector<8x128xf32>
    %13 = arith.subf %7, %12 : vector<8x128xf32>
    %14 = arith.mulf %13, %13 : vector<8x128xf32>
    %cst_7 = arith.constant dense<0.000000e+00> : vector<8xf32>
    %15 = vector.multi_reduction <add>, %14, %cst_7 [1] : vector<8x128xf32> to vector<8xf32>
    %16 = vector.shape_cast %15 : vector<8xf32> to vector<8x1xf32>
    %cst_8 = arith.constant 1.280000e+02 : f32
    %17 = vector.broadcast %cst_8 : f32 to vector<8x1xf32>
    %18 = arith.divf %16, %17 : vector<8x1xf32>
    %cst_9 = arith.constant 9.99999974E-6 : f32
    %19 = vector.broadcast %cst_9 : f32 to vector<8x1xf32>
    %20 = arith.addf %18, %19 : vector<8x1xf32>
    %21 = math.rsqrt %20 : vector<8x1xf32>
    %22 = vector.broadcast %21 : vector<8x1xf32> to vector<8x128xf32>
    %23 = arith.mulf %13, %22 : vector<8x128xf32>
    %c0_10 = arith.constant 0 : index
    %c0_11 = arith.constant 0 : index
    %24 = vector.load %arg3[%c0_10, %c0_11] : memref<1x128xf32, #tpu.memory_space<vmem>>, vector<1x128xf32>
    %25 = vector.broadcast %24 : vector<1x128xf32> to vector<8x128xf32>
    %26 = arith.mulf %23, %25 : vector<8x128xf32>
    %c0_12 = arith.constant 0 : index
    %c0_13 = arith.constant 0 : index
    %27 = vector.load %arg4[%c0_12, %c0_13] : memref<1x128xf32, #tpu.memory_space<vmem>>, vector<1x128xf32>
    %28 = vector.broadcast %27 : vector<1x128xf32> to vector<8x128xf32>
    %29 = arith.addf %26, %28 : vector<8x128xf32>
    %30 = arith.truncf %29 : vector<8x128xf32> to vector<8x128xbf16>
    %c0_14 = arith.constant 0 : index
    %c0_15 = arith.constant 0 : index
    %c0_16 = arith.constant 0 : index
    %31 = vector.load %arg5[%c0_14, %c0_15, %c0_16] : memref<1x8x128xbf16, #tpu.memory_space<vmem>>, vector<1x8x128xbf16>
    %32 = vector.shape_cast %31 : vector<1x8x128xbf16> to vector<8x128xbf16>
    %33 = vector.shape_cast %30 : vector<8x128xbf16> to vector<1x8x128xbf16>
    tpu.vector_store %arg5[%c0_14, %c0_15, %c0_16], %33 {strides = array<i32>} : memref<1x8x128xbf16, #tpu.memory_space<vmem>>, vector<1x8x128xbf16>,
    return
  }
  func.func @transform_0(%arg0: i32) -> (i32, i32, i32) {
    %c0_i32 = arith.constant 0 : i32
    %c0_i32_0 = arith.constant 0 : i32
    %c0_i32_1 = arith.constant 0 : i32
    return %arg0, %c0_i32, %c0_i32_0 : i32, i32, i32
  }
  func.func @transform_1(%arg0: i32) -> (i32, i32) {
    %c0_i32 = arith.constant 0 : i32
    %c0_i32_0 = arith.constant 0 : i32
    %c0_i32_1 = arith.constant 0 : i32
    return %c0_i32, %c0_i32_0 : i32, i32
  }
  func.func @transform_2(%arg0: i32) -> (i32, i32) {
    %c0_i32 = arith.constant 0 : i32
    %c0_i32_0 = arith.constant 0 : i32
    %c0_i32_1 = arith.constant 0 : i32
    return %c0_i32, %c0_i32_0 : i32, i32
  }
  func.func @transform_3(%arg0: i32) -> (i32, i32) {
    %c0_i32 = arith.constant 0 : i32
    %c0_i32_0 = arith.constant 0 : i32
    %c0_i32_1 = arith.constant 0 : i32
    return %c0_i32, %c0_i32_0 : i32, i32
  }
  func.func @transform_4(%arg0: i32) -> (i32, i32, i32) {
    %c0_i32 = arith.constant 0 : i32
    %c0_i32_0 = arith.constant 0 : i32
    %c0_i32_1 = arith.constant 0 : i32
    return %arg0, %c0_i32, %c0_i32_0 : i32, i32, i32
  }
}

module attributes {stable_mosaic.version = 11 : i64} {
  func.func @_fused_matmul_kernel(%arg0: i32, %arg1: i32, %arg2: i32, %arg3: memref<16x128xbf16, #tpu.memory_space<vmem>>, %arg4: memref<128x384xbf16, #tpu.memory_space<vmem>>, %arg5: memref<1x384xf32, #tpu.memory_space<vmem>>, %arg6: memref<1x128xf32, #tpu.memory_space<vmem>>, %arg7: memref<1x128xf32, #tpu.memory_space<vmem>>, %arg8: memref<16x384xbf16, #tpu.memory_space<vmem>>, %arg9: memref<16x384xf32, #tpu.memory_space<vmem>>, %arg10: memref<16x128xbf16, #tpu.memory_space<vmem>>) attributes {dimension_semantics = [#tpu.dimension_semantics<parallel>, #tpu.dimension_semantics<arbitrary>, #tpu.dimension_semantics<arbitrary>], iteration_bounds = array<i64: 1, 1, 1>, scalar_prefetch = 0 : i64, scratch_operands = 2 : i64, tpu.core_type = #tpu.core_type<tc>, window_params = [{transform_indices = @transform_0, window_bounds = array<i64: 16, 128>}, {transform_indices = @transform_1, window_bounds = array<i64: 128, 384>}, {transform_indices = @transform_2, window_bounds = array<i64: 1, 384>}, {transform_indices = @transform_3, window_bounds = array<i64: 1, 128>}, {transform_indices = @transform_4, window_bounds = array<i64: 1, 128>}, {transform_indices = @transform_5, window_bounds = array<i64: 16, 384>}]} {
    %c0_i32 = arith.constant 0 : i32
    %0 = arith.cmpi eq, %arg2, %c0_i32 : i32
    %1 = arith.extui %0 : i1 to i32
    %c0_i32_0 = arith.constant 0 : i32
    %2 = arith.cmpi ne, %1, %c0_i32_0 : i32
    scf.if %2 {
      %cst_12 = arith.constant 0.000000e+00 : f32
      %15 = vector.broadcast %cst_12 : f32 to vector<16x384xf32>
      %c0_13 = arith.constant 0 : index
      %c0_14 = arith.constant 0 : index
      %16 = vector.load %arg9[%c0_13, %c0_14] : memref<16x384xf32, #tpu.memory_space<vmem>>, vector<16x384xf32>
      tpu.vector_store %arg9[%c0_13, %c0_14], %15 {strides = array<i32>} : memref<16x384xf32, #tpu.memory_space<vmem>>, vector<16x384xf32>,
    } else {
    }
    %c0_i32_1 = arith.constant 0 : i32
    %3 = arith.cmpi eq, %arg1, %c0_i32_1 : i32
    %4 = arith.extui %3 : i1 to i32
    %c0_i32_2 = arith.constant 0 : i32
    %5 = arith.cmpi ne, %4, %c0_i32_2 : i32
    scf.if %5 {
      %c0_12 = arith.constant 0 : index
      %c0_13 = arith.constant 0 : index
      %15 = vector.load %arg3[%c0_12, %c0_13] : memref<16x128xbf16, #tpu.memory_space<vmem>>, vector<16x128xbf16>
      %16 = arith.extf %15 : vector<16x128xbf16> to vector<16x128xf32>
      %cst_14 = arith.constant dense<0.000000e+00> : vector<16xf32>
      %17 = vector.multi_reduction <add>, %16, %cst_14 [1] : vector<16x128xf32> to vector<16xf32>
      %18 = vector.shape_cast %17 : vector<16xf32> to vector<16x1xf32>
      %cst_15 = arith.constant 1.280000e+02 : f32
      %19 = vector.broadcast %cst_15 : f32 to vector<16x1xf32>
      %20 = arith.divf %18, %19 : vector<16x1xf32>
      %21 = vector.broadcast %20 : vector<16x1xf32> to vector<16x128xf32>
      %22 = arith.subf %16, %21 : vector<16x128xf32>
      %23 = arith.mulf %22, %22 : vector<16x128xf32>
      %cst_16 = arith.constant dense<0.000000e+00> : vector<16xf32>
      %24 = vector.multi_reduction <add>, %23, %cst_16 [1] : vector<16x128xf32> to vector<16xf32>
      %25 = vector.shape_cast %24 : vector<16xf32> to vector<16x1xf32>
      %cst_17 = arith.constant 1.280000e+02 : f32
      %26 = vector.broadcast %cst_17 : f32 to vector<16x1xf32>
      %27 = arith.divf %25, %26 : vector<16x1xf32>
      %cst_18 = arith.constant 9.99999974E-6 : f32
      %28 = vector.broadcast %cst_18 : f32 to vector<16x1xf32>
      %29 = arith.addf %27, %28 : vector<16x1xf32>
      %30 = math.rsqrt %29 : vector<16x1xf32>
      %31 = vector.broadcast %30 : vector<16x1xf32> to vector<16x128xf32>
      %32 = arith.mulf %22, %31 : vector<16x128xf32>
      %c0_19 = arith.constant 0 : index
      %c0_20 = arith.constant 0 : index
      %33 = vector.load %arg6[%c0_19, %c0_20] : memref<1x128xf32, #tpu.memory_space<vmem>>, vector<1x128xf32>
      %34 = vector.broadcast %33 : vector<1x128xf32> to vector<16x128xf32>
      %35 = arith.mulf %32, %34 : vector<16x128xf32>
      %c0_21 = arith.constant 0 : index
      %c0_22 = arith.constant 0 : index
      %36 = vector.load %arg7[%c0_21, %c0_22] : memref<1x128xf32, #tpu.memory_space<vmem>>, vector<1x128xf32>
      %37 = vector.broadcast %36 : vector<1x128xf32> to vector<16x128xf32>
      %38 = arith.addf %35, %37 : vector<16x128xf32>
      %39 = arith.truncf %38 : vector<16x128xf32> to vector<16x128xbf16>
      %c0_23 = arith.constant 0 : index
      %c0_24 = arith.constant 0 : index
      %40 = vector.load %arg10[%c0_23, %c0_24] : memref<16x128xbf16, #tpu.memory_space<vmem>>, vector<16x128xbf16>
      tpu.vector_store %arg10[%c0_23, %c0_24], %39 {strides = array<i32>} : memref<16x128xbf16, #tpu.memory_space<vmem>>, vector<16x128xbf16>,
    } else {
    }
    %c0 = arith.constant 0 : index
    %c0_3 = arith.constant 0 : index
    %6 = vector.load %arg10[%c0, %c0_3] : memref<16x128xbf16, #tpu.memory_space<vmem>>, vector<16x128xbf16>
    %c0_4 = arith.constant 0 : index
    %c0_5 = arith.constant 0 : index
    %7 = vector.load %arg9[%c0_4, %c0_5] : memref<16x384xf32, #tpu.memory_space<vmem>>, vector<16x384xf32>
    %c0_6 = arith.constant 0 : index
    %c0_7 = arith.constant 0 : index
    %8 = vector.load %arg4[%c0_6, %c0_7] : memref<128x384xbf16, #tpu.memory_space<vmem>>, vector<128x384xbf16>
    %cst = arith.constant dense<0.000000e+00> : vector<16x384xf32>
    %9 = tpu.matmul %6, %8, %cst {dimension_numbers = #tpu.dot_dimension_numbers<[1], [0], [0], [1], [0, 0, 1, 1], [], []>} : vector<16x128xbf16>, vector<128x384xbf16>, vector<16x384xf32> -> vector<16x384xf32>
    %10 = arith.addf %7, %9 : vector<16x384xf32>
    %c0_8 = arith.constant 0 : index
    %c0_9 = arith.constant 0 : index
    %11 = vector.load %arg9[%c0_8, %c0_9] : memref<16x384xf32, #tpu.memory_space<vmem>>, vector<16x384xf32>
    tpu.vector_store %arg9[%c0_8, %c0_9], %10 {strides = array<i32>} : memref<16x384xf32, #tpu.memory_space<vmem>>, vector<16x384xf32>,
    %c0_i32_10 = arith.constant 0 : i32
    %12 = arith.cmpi eq, %arg2, %c0_i32_10 : i32
    %13 = arith.extui %12 : i1 to i32
    %c0_i32_11 = arith.constant 0 : i32
    %14 = arith.cmpi ne, %13, %c0_i32_11 : i32
    scf.if %14 {
      %c0_12 = arith.constant 0 : index
      %c0_13 = arith.constant 0 : index
      %15 = vector.load %arg9[%c0_12, %c0_13] : memref<16x384xf32, #tpu.memory_space<vmem>>, vector<16x384xf32>
      %c0_14 = arith.constant 0 : index
      %c0_15 = arith.constant 0 : index
      %16 = vector.load %arg5[%c0_14, %c0_15] : memref<1x384xf32, #tpu.memory_space<vmem>>, vector<1x384xf32>
      %17 = vector.broadcast %16 : vector<1x384xf32> to vector<16x384xf32>
      %18 = arith.addf %15, %17 : vector<16x384xf32>
      %19 = arith.truncf %18 : vector<16x384xf32> to vector<16x384xbf16>
      %c0_16 = arith.constant 0 : index
      %c0_17 = arith.constant 0 : index
      %20 = vector.load %arg8[%c0_16, %c0_17] : memref<16x384xbf16, #tpu.memory_space<vmem>>, vector<16x384xbf16>
      tpu.vector_store %arg8[%c0_16, %c0_17], %19 {strides = array<i32>} : memref<16x384xbf16, #tpu.memory_space<vmem>>, vector<16x384xbf16>,
    } else {
    }
    return
  }
  func.func @transform_0(%arg0: i32, %arg1: i32, %arg2: i32) -> (i32, i32) {
    %c0_i32 = arith.constant 0 : i32
    return %arg0, %arg2 : i32, i32
  }
  func.func @transform_1(%arg0: i32, %arg1: i32, %arg2: i32) -> (i32, i32) {
    %c0_i32 = arith.constant 0 : i32
    return %arg2, %arg1 : i32, i32
  }
  func.func @transform_2(%arg0: i32, %arg1: i32, %arg2: i32) -> (i32, i32) {
    %c0_i32 = arith.constant 0 : i32
    %c0_i32_0 = arith.constant 0 : i32
    return %c0_i32, %arg1 : i32, i32
  }
  func.func @transform_3(%arg0: i32, %arg1: i32, %arg2: i32) -> (i32, i32) {
    %c0_i32 = arith.constant 0 : i32
    %c0_i32_0 = arith.constant 0 : i32
    return %c0_i32, %arg2 : i32, i32
  }
  func.func @transform_4(%arg0: i32, %arg1: i32, %arg2: i32) -> (i32, i32) {
    %c0_i32 = arith.constant 0 : i32
    %c0_i32_0 = arith.constant 0 : i32
    return %c0_i32, %arg2 : i32, i32
  }
  func.func @transform_5(%arg0: i32, %arg1: i32, %arg2: i32) -> (i32, i32) {
    %c0_i32 = arith.constant 0 : i32
    return %arg0, %arg1 : i32, i32
  }
}

module attributes {stable_mosaic.version = 11 : i64} {
  func.func @_attention_kernel(%arg0: i32, %arg1: i32, %arg2: memref<1x8x128xbf16, #tpu.memory_space<vmem>>, %arg3: memref<1x8x128xbf16, #tpu.memory_space<vmem>>, %arg4: memref<1x8x128xbf16, #tpu.memory_space<vmem>>, %arg5: memref<1x8x128xbf16, #tpu.memory_space<vmem>>) attributes {dimension_semantics = [#tpu.dimension_semantics<parallel>, #tpu.dimension_semantics<parallel>], iteration_bounds = array<i64: 2, 1>, scalar_prefetch = 0 : i64, scratch_operands = 0 : i64, tpu.core_type = #tpu.core_type<tc>, window_params = [{transform_indices = @transform_0, window_bounds = array<i64: 1, 8, 128>}, {transform_indices = @transform_1, window_bounds = array<i64: 1, 8, 128>}, {transform_indices = @transform_2, window_bounds = array<i64: 1, 8, 128>}, {transform_indices = @transform_3, window_bounds = array<i64: 1, 8, 128>}]} {
    %c0 = arith.constant 0 : index
    %c0_0 = arith.constant 0 : index
    %c0_1 = arith.constant 0 : index
    %0 = vector.load %arg2[%c0, %c0_0, %c0_1] : memref<1x8x128xbf16, #tpu.memory_space<vmem>>, vector<1x8x128xbf16>
    %1 = vector.shape_cast %0 : vector<1x8x128xbf16> to vector<8x128xbf16>
    %c0_2 = arith.constant 0 : index
    %c0_3 = arith.constant 0 : index
    %c0_4 = arith.constant 0 : index
    %2 = vector.load %arg3[%c0_2, %c0_3, %c0_4] : memref<1x8x128xbf16, #tpu.memory_space<vmem>>, vector<1x8x128xbf16>
    %3 = vector.shape_cast %2 : vector<1x8x128xbf16> to vector<8x128xbf16>
    %c0_5 = arith.constant 0 : index
    %c0_6 = arith.constant 0 : index
    %c0_7 = arith.constant 0 : index
    %4 = vector.load %arg4[%c0_5, %c0_6, %c0_7] : memref<1x8x128xbf16, #tpu.memory_space<vmem>>, vector<1x8x128xbf16>
    %5 = vector.shape_cast %4 : vector<1x8x128xbf16> to vector<8x128xbf16>
    %6 = tpu.iota {dimensions = array<i32: 1>} : vector<1x8xi32>
    %c5_i32 = arith.constant 5 : i32
    %7 = vector.broadcast %c5_i32 : i32 to vector<1x8xi32>
    %8 = arith.cmpi slt, %6, %7 : vector<1x8xi32>
    %cst = arith.constant 0.000000e+00 : f32
    %cst_8 = arith.constant -1.000000e+30 : f32
    %9 = vector.broadcast %cst : f32 to vector<1x8xf32>
    %10 = vector.broadcast %cst_8 : f32 to vector<1x8xf32>
    %11 = arith.select %8, %9, %10 : vector<1x8xi1>, vector<1x8xf32>
    %12 = vector.extract_strided_slice %1 {offsets = [0, 0], sizes = [8, 32], strides = [1, 1]} : vector<8x128xbf16> to vector<8x32xbf16>
    %13 = vector.extract_strided_slice %3 {offsets = [0, 0], sizes = [8, 32], strides = [1, 1]} : vector<8x128xbf16> to vector<8x32xbf16>
    %cst_9 = arith.constant dense<0.000000e+00> : vector<8x8xf32>
    %14 = tpu.matmul %12, %13, %cst_9 {dimension_numbers = #tpu.dot_dimension_numbers<[1], [1], [0], [0], [0, 0, 1, 0], [], []>} : vector<8x32xbf16>, vector<8x32xbf16>, vector<8x8xf32> -> vector<8x8xf32>
    %15 = vector.broadcast %11 : vector<1x8xf32> to vector<8x8xf32>
    %16 = arith.addf %14, %15 : vector<8x8xf32>
    %cst_10 = arith.constant dense<0xFF800000> : vector<8xf32>
    %17 = vector.multi_reduction <maximumf>, %16, %cst_10 [1] : vector<8x8xf32> to vector<8xf32>
    %18 = vector.shape_cast %17 : vector<8xf32> to vector<8x1xf32>
    %19 = vector.broadcast %18 : vector<8x1xf32> to vector<8x8xf32>
    %20 = arith.subf %16, %19 : vector<8x8xf32>
    %21 = math.exp %20 : vector<8x8xf32>
    %cst_11 = arith.constant dense<0.000000e+00> : vector<8xf32>
    %22 = vector.multi_reduction <add>, %21, %cst_11 [1] : vector<8x8xf32> to vector<8xf32>
    %23 = vector.shape_cast %22 : vector<8xf32> to vector<8x1xf32>
    %24 = tpu.reciprocal %23 {approx = true} : vector<8x1xf32> -> vector<8x1xf32>
    %25 = arith.truncf %21 : vector<8x8xf32> to vector<8x8xbf16>
    %26 = vector.extract_strided_slice %5 {offsets = [0, 0], sizes = [8, 32], strides = [1, 1]} : vector<8x128xbf16> to vector<8x32xbf16>
    %cst_12 = arith.constant dense<0.000000e+00> : vector<8x32xf32>
    %27 = tpu.matmul %25, %26, %cst_12 {dimension_numbers = #tpu.dot_dimension_numbers<[1], [0], [0], [1], [0, 0, 1, 1], [], []>} : vector<8x8xbf16>, vector<8x32xbf16>, vector<8x32xf32> -> vector<8x32xf32>
    %28 = vector.broadcast %24 : vector<8x1xf32> to vector<8x32xf32>
    %29 = arith.mulf %27, %28 : vector<8x32xf32>
    %30 = vector.extract_strided_slice %1 {offsets = [0, 32], sizes = [8, 32], strides = [1, 1]} : vector<8x128xbf16> to vector<8x32xbf16>
    %31 = vector.extract_strided_slice %3 {offsets = [0, 32], sizes = [8, 32], strides = [1, 1]} : vector<8x128xbf16> to vector<8x32xbf16>
    %cst_13 = arith.constant dense<0.000000e+00> : vector<8x8xf32>
    %32 = tpu.matmul %30, %31, %cst_13 {dimension_numbers = #tpu.dot_dimension_numbers<[1], [1], [0], [0], [0, 0, 1, 0], [], []>} : vector<8x32xbf16>, vector<8x32xbf16>, vector<8x8xf32> -> vector<8x8xf32>
    %33 = vector.broadcast %11 : vector<1x8xf32> to vector<8x8xf32>
    %34 = arith.addf %32, %33 : vector<8x8xf32>
    %cst_14 = arith.constant dense<0xFF800000> : vector<8xf32>
    %35 = vector.multi_reduction <maximumf>, %34, %cst_14 [1] : vector<8x8xf32> to vector<8xf32>
    %36 = vector.shape_cast %35 : vector<8xf32> to vector<8x1xf32>
    %37 = vector.broadcast %36 : vector<8x1xf32> to vector<8x8xf32>
    %38 = arith.subf %34, %37 : vector<8x8xf32>
    %39 = math.exp %38 : vector<8x8xf32>
    %cst_15 = arith.constant dense<0.000000e+00> : vector<8xf32>
    %40 = vector.multi_reduction <add>, %39, %cst_15 [1] : vector<8x8xf32> to vector<8xf32>
    %41 = vector.shape_cast %40 : vector<8xf32> to vector<8x1xf32>
    %42 = tpu.reciprocal %41 {approx = true} : vector<8x1xf32> -> vector<8x1xf32>
    %43 = arith.truncf %39 : vector<8x8xf32> to vector<8x8xbf16>
    %44 = vector.extract_strided_slice %5 {offsets = [0, 32], sizes = [8, 32], strides = [1, 1]} : vector<8x128xbf16> to vector<8x32xbf16>
    %cst_16 = arith.constant dense<0.000000e+00> : vector<8x32xf32>
    %45 = tpu.matmul %43, %44, %cst_16 {dimension_numbers = #tpu.dot_dimension_numbers<[1], [0], [0], [1], [0, 0, 1, 1], [], []>} : vector<8x8xbf16>, vector<8x32xbf16>, vector<8x32xf32> -> vector<8x32xf32>
    %46 = vector.broadcast %42 : vector<8x1xf32> to vector<8x32xf32>
    %47 = arith.mulf %45, %46 : vector<8x32xf32>
    %48 = vector.extract_strided_slice %1 {offsets = [0, 64], sizes = [8, 32], strides = [1, 1]} : vector<8x128xbf16> to vector<8x32xbf16>
    %49 = vector.extract_strided_slice %3 {offsets = [0, 64], sizes = [8, 32], strides = [1, 1]} : vector<8x128xbf16> to vector<8x32xbf16>
    %cst_17 = arith.constant dense<0.000000e+00> : vector<8x8xf32>
    %50 = tpu.matmul %48, %49, %cst_17 {dimension_numbers = #tpu.dot_dimension_numbers<[1], [1], [0], [0], [0, 0, 1, 0], [], []>} : vector<8x32xbf16>, vector<8x32xbf16>, vector<8x8xf32> -> vector<8x8xf32>
    %51 = vector.broadcast %11 : vector<1x8xf32> to vector<8x8xf32>
    %52 = arith.addf %50, %51 : vector<8x8xf32>
    %cst_18 = arith.constant dense<0xFF800000> : vector<8xf32>
    %53 = vector.multi_reduction <maximumf>, %52, %cst_18 [1] : vector<8x8xf32> to vector<8xf32>
    %54 = vector.shape_cast %53 : vector<8xf32> to vector<8x1xf32>
    %55 = vector.broadcast %54 : vector<8x1xf32> to vector<8x8xf32>
    %56 = arith.subf %52, %55 : vector<8x8xf32>
    %57 = math.exp %56 : vector<8x8xf32>
    %cst_19 = arith.constant dense<0.000000e+00> : vector<8xf32>
    %58 = vector.multi_reduction <add>, %57, %cst_19 [1] : vector<8x8xf32> to vector<8xf32>
    %59 = vector.shape_cast %58 : vector<8xf32> to vector<8x1xf32>
    %60 = tpu.reciprocal %59 {approx = true} : vector<8x1xf32> -> vector<8x1xf32>
    %61 = arith.truncf %57 : vector<8x8xf32> to vector<8x8xbf16>
    %62 = vector.extract_strided_slice %5 {offsets = [0, 64], sizes = [8, 32], strides = [1, 1]} : vector<8x128xbf16> to vector<8x32xbf16>
    %cst_20 = arith.constant dense<0.000000e+00> : vector<8x32xf32>
    %63 = tpu.matmul %61, %62, %cst_20 {dimension_numbers = #tpu.dot_dimension_numbers<[1], [0], [0], [1], [0, 0, 1, 1], [], []>} : vector<8x8xbf16>, vector<8x32xbf16>, vector<8x32xf32> -> vector<8x32xf32>
    %64 = vector.broadcast %60 : vector<8x1xf32> to vector<8x32xf32>
    %65 = arith.mulf %63, %64 : vector<8x32xf32>
    %66 = vector.extract_strided_slice %1 {offsets = [0, 96], sizes = [8, 32], strides = [1, 1]} : vector<8x128xbf16> to vector<8x32xbf16>
    %67 = vector.extract_strided_slice %3 {offsets = [0, 96], sizes = [8, 32], strides = [1, 1]} : vector<8x128xbf16> to vector<8x32xbf16>
    %cst_21 = arith.constant dense<0.000000e+00> : vector<8x8xf32>
    %68 = tpu.matmul %66, %67, %cst_21 {dimension_numbers = #tpu.dot_dimension_numbers<[1], [1], [0], [0], [0, 0, 1, 0], [], []>} : vector<8x32xbf16>, vector<8x32xbf16>, vector<8x8xf32> -> vector<8x8xf32>
    %69 = vector.broadcast %11 : vector<1x8xf32> to vector<8x8xf32>
    %70 = arith.addf %68, %69 : vector<8x8xf32>
    %cst_22 = arith.constant dense<0xFF800000> : vector<8xf32>
    %71 = vector.multi_reduction <maximumf>, %70, %cst_22 [1] : vector<8x8xf32> to vector<8xf32>
    %72 = vector.shape_cast %71 : vector<8xf32> to vector<8x1xf32>
    %73 = vector.broadcast %72 : vector<8x1xf32> to vector<8x8xf32>
    %74 = arith.subf %70, %73 : vector<8x8xf32>
    %75 = math.exp %74 : vector<8x8xf32>
    %cst_23 = arith.constant dense<0.000000e+00> : vector<8xf32>
    %76 = vector.multi_reduction <add>, %75, %cst_23 [1] : vector<8x8xf32> to vector<8xf32>
    %77 = vector.shape_cast %76 : vector<8xf32> to vector<8x1xf32>
    %78 = tpu.reciprocal %77 {approx = true} : vector<8x1xf32> -> vector<8x1xf32>
    %79 = arith.truncf %75 : vector<8x8xf32> to vector<8x8xbf16>
    %80 = vector.extract_strided_slice %5 {offsets = [0, 96], sizes = [8, 32], strides = [1, 1]} : vector<8x128xbf16> to vector<8x32xbf16>
    %cst_24 = arith.constant dense<0.000000e+00> : vector<8x32xf32>
    %81 = tpu.matmul %79, %80, %cst_24 {dimension_numbers = #tpu.dot_dimension_numbers<[1], [0], [0], [1], [0, 0, 1, 1], [], []>} : vector<8x8xbf16>, vector<8x32xbf16>, vector<8x32xf32> -> vector<8x32xf32>
    %82 = vector.broadcast %78 : vector<8x1xf32> to vector<8x32xf32>
    %83 = arith.mulf %81, %82 : vector<8x32xf32>
    %84 = tpu.concatenate %29, %47, %65, %83 in 1 : vector<8x32xf32>, vector<8x32xf32>, vector<8x32xf32>, vector<8x32xf32> -> vector<8x128xf32>
    %85 = arith.truncf %84 : vector<8x128xf32> to vector<8x128xbf16>
    %c0_25 = arith.constant 0 : index
    %c0_26 = arith.constant 0 : index
    %c0_27 = arith.constant 0 : index
    %86 = vector.load %arg5[%c0_25, %c0_26, %c0_27] : memref<1x8x128xbf16, #tpu.memory_space<vmem>>, vector<1x8x128xbf16>
    %87 = vector.shape_cast %86 : vector<1x8x128xbf16> to vector<8x128xbf16>
    %88 = vector.shape_cast %85 : vector<8x128xbf16> to vector<1x8x128xbf16>
    tpu.vector_store %arg5[%c0_25, %c0_26, %c0_27], %88 {strides = array<i32>} : memref<1x8x128xbf16, #tpu.memory_space<vmem>>, vector<1x8x128xbf16>,
    return
  }
  func.func @transform_0(%arg0: i32, %arg1: i32) -> (i32, i32, i32) {
    %c0_i32 = arith.constant 0 : i32
    %c0_i32_0 = arith.constant 0 : i32
    return %arg0, %c0_i32, %arg1 : i32, i32, i32
  }
  func.func @transform_1(%arg0: i32, %arg1: i32) -> (i32, i32, i32) {
    %c1_i32 = arith.constant 1 : i32
    %0 = arith.addi %c1_i32, %arg1 : i32
    %c0_i32 = arith.constant 0 : i32
    %c0_i32_0 = arith.constant 0 : i32
    return %arg0, %c0_i32, %0 : i32, i32, i32
  }
  func.func @transform_2(%arg0: i32, %arg1: i32) -> (i32, i32, i32) {
    %c2_i32 = arith.constant 2 : i32
    %0 = arith.addi %c2_i32, %arg1 : i32
    %c0_i32 = arith.constant 0 : i32
    %c0_i32_0 = arith.constant 0 : i32
    return %arg0, %c0_i32, %0 : i32, i32, i32
  }
  func.func @transform_3(%arg0: i32, %arg1: i32) -> (i32, i32, i32) {
    %c0_i32 = arith.constant 0 : i32
    %c0_i32_0 = arith.constant 0 : i32
    return %arg0, %c0_i32, %arg1 : i32, i32, i32
  }
}

module attributes {stable_mosaic.version = 11 : i64} {
  func.func @_fused_matmul_kernel(%arg0: i32, %arg1: i32, %arg2: i32, %arg3: memref<16x128xbf16, #tpu.memory_space<vmem>>, %arg4: memref<128x128xbf16, #tpu.memory_space<vmem>>, %arg5: memref<1x128xf32, #tpu.memory_space<vmem>>, %arg6: memref<16x128xbf16, #tpu.memory_space<vmem>>, %arg7: memref<16x128xbf16, #tpu.memory_space<vmem>>, %arg8: memref<16x128xf32, #tpu.memory_space<vmem>>) attributes {dimension_semantics = [#tpu.dimension_semantics<parallel>, #tpu.dimension_semantics<parallel>, #tpu.dimension_semantics<arbitrary>], iteration_bounds = array<i64: 1, 1, 1>, scalar_prefetch = 0 : i64, scratch_operands = 1 : i64, tpu.core_type = #tpu.core_type<tc>, window_params = [{transform_indices = @transform_0, window_bounds = array<i64: 16, 128>}, {transform_indices = @transform_1, window_bounds = array<i64: 128, 128>}, {transform_indices = @transform_2, window_bounds = array<i64: 1, 128>}, {transform_indices = @transform_3, window_bounds = array<i64: 16, 128>}, {transform_indices = @transform_4, window_bounds = array<i64: 16, 128>}]} {
    %c0_i32 = arith.constant 0 : i32
    %0 = arith.cmpi eq, %arg2, %c0_i32 : i32
    %1 = arith.extui %0 : i1 to i32
    %c0_i32_0 = arith.constant 0 : i32
    %2 = arith.cmpi ne, %1, %c0_i32_0 : i32
    scf.if %2 {
      %cst_10 = arith.constant 0.000000e+00 : f32
      %12 = vector.broadcast %cst_10 : f32 to vector<16x128xf32>
      %c0_11 = arith.constant 0 : index
      %c0_12 = arith.constant 0 : index
      %13 = vector.load %arg8[%c0_11, %c0_12] : memref<16x128xf32, #tpu.memory_space<vmem>>, vector<16x128xf32>
      tpu.vector_store %arg8[%c0_11, %c0_12], %12 {strides = array<i32>} : memref<16x128xf32, #tpu.memory_space<vmem>>, vector<16x128xf32>,
    } else {
    }
    %c0 = arith.constant 0 : index
    %c0_1 = arith.constant 0 : index
    %3 = vector.load %arg3[%c0, %c0_1] : memref<16x128xbf16, #tpu.memory_space<vmem>>, vector<16x128xbf16>
    %c0_2 = arith.constant 0 : index
    %c0_3 = arith.constant 0 : index
    %4 = vector.load %arg8[%c0_2, %c0_3] : memref<16x128xf32, #tpu.memory_space<vmem>>, vector<16x128xf32>
    %c0_4 = arith.constant 0 : index
    %c0_5 = arith.constant 0 : index
    %5 = vector.load %arg4[%c0_4, %c0_5] : memref<128x128xbf16, #tpu.memory_space<vmem>>, vector<128x128xbf16>
    %cst = arith.constant dense<0.000000e+00> : vector<16x128xf32>
    %6 = tpu.matmul %3, %5, %cst {dimension_numbers = #tpu.dot_dimension_numbers<[1], [0], [0], [1], [0, 0, 1, 1], [], []>} : vector<16x128xbf16>, vector<128x128xbf16>, vector<16x128xf32> -> vector<16x128xf32>
    %7 = arith.addf %4, %6 : vector<16x128xf32>
    %c0_6 = arith.constant 0 : index
    %c0_7 = arith.constant 0 : index
    %8 = vector.load %arg8[%c0_6, %c0_7] : memref<16x128xf32, #tpu.memory_space<vmem>>, vector<16x128xf32>
    tpu.vector_store %arg8[%c0_6, %c0_7], %7 {strides = array<i32>} : memref<16x128xf32, #tpu.memory_space<vmem>>, vector<16x128xf32>,
    %c0_i32_8 = arith.constant 0 : i32
    %9 = arith.cmpi eq, %arg2, %c0_i32_8 : i32
    %10 = arith.extui %9 : i1 to i32
    %c0_i32_9 = arith.constant 0 : i32
    %11 = arith.cmpi ne, %10, %c0_i32_9 : i32
    scf.if %11 {
      %c0_10 = arith.constant 0 : index
      %c0_11 = arith.constant 0 : index
      %12 = vector.load %arg8[%c0_10, %c0_11] : memref<16x128xf32, #tpu.memory_space<vmem>>, vector<16x128xf32>
      %c0_12 = arith.constant 0 : index
      %c0_13 = arith.constant 0 : index
      %13 = vector.load %arg5[%c0_12, %c0_13] : memref<1x128xf32, #tpu.memory_space<vmem>>, vector<1x128xf32>
      %14 = vector.broadcast %13 : vector<1x128xf32> to vector<16x128xf32>
      %15 = arith.addf %12, %14 : vector<16x128xf32>
      %c0_14 = arith.constant 0 : index
      %c0_15 = arith.constant 0 : index
      %16 = vector.load %arg6[%c0_14, %c0_15] : memref<16x128xbf16, #tpu.memory_space<vmem>>, vector<16x128xbf16>
      %17 = arith.extf %16 : vector<16x128xbf16> to vector<16x128xf32>
      %18 = arith.addf %15, %17 : vector<16x128xf32>
      %19 = arith.truncf %18 : vector<16x128xf32> to vector<16x128xbf16>
      %c0_16 = arith.constant 0 : index
      %c0_17 = arith.constant 0 : index
      %20 = vector.load %arg7[%c0_16, %c0_17] : memref<16x128xbf16, #tpu.memory_space<vmem>>, vector<16x128xbf16>
      tpu.vector_store %arg7[%c0_16, %c0_17], %19 {strides = array<i32>} : memref<16x128xbf16, #tpu.memory_space<vmem>>, vector<16x128xbf16>,
    } else {
    }
    return
  }
  func.func @transform_0(%arg0: i32, %arg1: i32, %arg2: i32) -> (i32, i32) {
    %c0_i32 = arith.constant 0 : i32
    return %arg0, %arg2 : i32, i32
  }
  func.func @transform_1(%arg0: i32, %arg1: i32, %arg2: i32) -> (i32, i32) {
    %c0_i32 = arith.constant 0 : i32
    return %arg2, %arg1 : i32, i32
  }
  func.func @transform_2(%arg0: i32, %arg1: i32, %arg2: i32) -> (i32, i32) {
    %c0_i32 = arith.constant 0 : i32
    %c0_i32_0 = arith.constant 0 : i32
    return %c0_i32, %arg1 : i32, i32
  }
  func.func @transform_3(%arg0: i32, %arg1: i32, %arg2: i32) -> (i32, i32) {
    %c0_i32 = arith.constant 0 : i32
    return %arg0, %arg1 : i32, i32
  }
  func.func @transform_4(%arg0: i32, %arg1: i32, %arg2: i32) -> (i32, i32) {
    %c0_i32 = arith.constant 0 : i32
    return %arg0, %arg1 : i32, i32
  }
}

module attributes {stable_mosaic.version = 11 : i64} {
  func.func @_fused_matmul_kernel(%arg0: i32, %arg1: i32, %arg2: i32, %arg3: memref<16x128xbf16, #tpu.memory_space<vmem>>, %arg4: memref<128x512xbf16, #tpu.memory_space<vmem>>, %arg5: memref<1x512xf32, #tpu.memory_space<vmem>>, %arg6: memref<1x128xf32, #tpu.memory_space<vmem>>, %arg7: memref<1x128xf32, #tpu.memory_space<vmem>>, %arg8: memref<16x512xbf16, #tpu.memory_space<vmem>>, %arg9: memref<16x512xf32, #tpu.memory_space<vmem>>, %arg10: memref<16x128xbf16, #tpu.memory_space<vmem>>) attributes {dimension_semantics = [#tpu.dimension_semantics<parallel>, #tpu.dimension_semantics<arbitrary>, #tpu.dimension_semantics<arbitrary>], iteration_bounds = array<i64: 1, 1, 1>, scalar_prefetch = 0 : i64, scratch_operands = 2 : i64, tpu.core_type = #tpu.core_type<tc>, window_params = [{transform_indices = @transform_0, window_bounds = array<i64: 16, 128>}, {transform_indices = @transform_1, window_bounds = array<i64: 128, 512>}, {transform_indices = @transform_2, window_bounds = array<i64: 1, 512>}, {transform_indices = @transform_3, window_bounds = array<i64: 1, 128>}, {transform_indices = @transform_4, window_bounds = array<i64: 1, 128>}, {transform_indices = @transform_5, window_bounds = array<i64: 16, 512>}]} {
    %c0_i32 = arith.constant 0 : i32
    %0 = arith.cmpi eq, %arg2, %c0_i32 : i32
    %1 = arith.extui %0 : i1 to i32
    %c0_i32_0 = arith.constant 0 : i32
    %2 = arith.cmpi ne, %1, %c0_i32_0 : i32
    scf.if %2 {
      %cst_12 = arith.constant 0.000000e+00 : f32
      %15 = vector.broadcast %cst_12 : f32 to vector<16x512xf32>
      %c0_13 = arith.constant 0 : index
      %c0_14 = arith.constant 0 : index
      %16 = vector.load %arg9[%c0_13, %c0_14] : memref<16x512xf32, #tpu.memory_space<vmem>>, vector<16x512xf32>
      tpu.vector_store %arg9[%c0_13, %c0_14], %15 {strides = array<i32>} : memref<16x512xf32, #tpu.memory_space<vmem>>, vector<16x512xf32>,
    } else {
    }
    %c0_i32_1 = arith.constant 0 : i32
    %3 = arith.cmpi eq, %arg1, %c0_i32_1 : i32
    %4 = arith.extui %3 : i1 to i32
    %c0_i32_2 = arith.constant 0 : i32
    %5 = arith.cmpi ne, %4, %c0_i32_2 : i32
    scf.if %5 {
      %c0_12 = arith.constant 0 : index
      %c0_13 = arith.constant 0 : index
      %15 = vector.load %arg3[%c0_12, %c0_13] : memref<16x128xbf16, #tpu.memory_space<vmem>>, vector<16x128xbf16>
      %16 = arith.extf %15 : vector<16x128xbf16> to vector<16x128xf32>
      %cst_14 = arith.constant dense<0.000000e+00> : vector<16xf32>
      %17 = vector.multi_reduction <add>, %16, %cst_14 [1] : vector<16x128xf32> to vector<16xf32>
      %18 = vector.shape_cast %17 : vector<16xf32> to vector<16x1xf32>
      %cst_15 = arith.constant 1.280000e+02 : f32
      %19 = vector.broadcast %cst_15 : f32 to vector<16x1xf32>
      %20 = arith.divf %18, %19 : vector<16x1xf32>
      %21 = vector.broadcast %20 : vector<16x1xf32> to vector<16x128xf32>
      %22 = arith.subf %16, %21 : vector<16x128xf32>
      %23 = arith.mulf %22, %22 : vector<16x128xf32>
      %cst_16 = arith.constant dense<0.000000e+00> : vector<16xf32>
      %24 = vector.multi_reduction <add>, %23, %cst_16 [1] : vector<16x128xf32> to vector<16xf32>
      %25 = vector.shape_cast %24 : vector<16xf32> to vector<16x1xf32>
      %cst_17 = arith.constant 1.280000e+02 : f32
      %26 = vector.broadcast %cst_17 : f32 to vector<16x1xf32>
      %27 = arith.divf %25, %26 : vector<16x1xf32>
      %cst_18 = arith.constant 9.99999974E-6 : f32
      %28 = vector.broadcast %cst_18 : f32 to vector<16x1xf32>
      %29 = arith.addf %27, %28 : vector<16x1xf32>
      %30 = math.rsqrt %29 : vector<16x1xf32>
      %31 = vector.broadcast %30 : vector<16x1xf32> to vector<16x128xf32>
      %32 = arith.mulf %22, %31 : vector<16x128xf32>
      %c0_19 = arith.constant 0 : index
      %c0_20 = arith.constant 0 : index
      %33 = vector.load %arg6[%c0_19, %c0_20] : memref<1x128xf32, #tpu.memory_space<vmem>>, vector<1x128xf32>
      %34 = vector.broadcast %33 : vector<1x128xf32> to vector<16x128xf32>
      %35 = arith.mulf %32, %34 : vector<16x128xf32>
      %c0_21 = arith.constant 0 : index
      %c0_22 = arith.constant 0 : index
      %36 = vector.load %arg7[%c0_21, %c0_22] : memref<1x128xf32, #tpu.memory_space<vmem>>, vector<1x128xf32>
      %37 = vector.broadcast %36 : vector<1x128xf32> to vector<16x128xf32>
      %38 = arith.addf %35, %37 : vector<16x128xf32>
      %39 = arith.truncf %38 : vector<16x128xf32> to vector<16x128xbf16>
      %c0_23 = arith.constant 0 : index
      %c0_24 = arith.constant 0 : index
      %40 = vector.load %arg10[%c0_23, %c0_24] : memref<16x128xbf16, #tpu.memory_space<vmem>>, vector<16x128xbf16>
      tpu.vector_store %arg10[%c0_23, %c0_24], %39 {strides = array<i32>} : memref<16x128xbf16, #tpu.memory_space<vmem>>, vector<16x128xbf16>,
    } else {
    }
    %c0 = arith.constant 0 : index
    %c0_3 = arith.constant 0 : index
    %6 = vector.load %arg10[%c0, %c0_3] : memref<16x128xbf16, #tpu.memory_space<vmem>>, vector<16x128xbf16>
    %c0_4 = arith.constant 0 : index
    %c0_5 = arith.constant 0 : index
    %7 = vector.load %arg9[%c0_4, %c0_5] : memref<16x512xf32, #tpu.memory_space<vmem>>, vector<16x512xf32>
    %c0_6 = arith.constant 0 : index
    %c0_7 = arith.constant 0 : index
    %8 = vector.load %arg4[%c0_6, %c0_7] : memref<128x512xbf16, #tpu.memory_space<vmem>>, vector<128x512xbf16>
    %cst = arith.constant dense<0.000000e+00> : vector<16x512xf32>
    %9 = tpu.matmul %6, %8, %cst {dimension_numbers = #tpu.dot_dimension_numbers<[1], [0], [0], [1], [0, 0, 1, 1], [], []>} : vector<16x128xbf16>, vector<128x512xbf16>, vector<16x512xf32> -> vector<16x512xf32>
    %10 = arith.addf %7, %9 : vector<16x512xf32>
    %c0_8 = arith.constant 0 : index
    %c0_9 = arith.constant 0 : index
    %11 = vector.load %arg9[%c0_8, %c0_9] : memref<16x512xf32, #tpu.memory_space<vmem>>, vector<16x512xf32>
    tpu.vector_store %arg9[%c0_8, %c0_9], %10 {strides = array<i32>} : memref<16x512xf32, #tpu.memory_space<vmem>>, vector<16x512xf32>,
    %c0_i32_10 = arith.constant 0 : i32
    %12 = arith.cmpi eq, %arg2, %c0_i32_10 : i32
    %13 = arith.extui %12 : i1 to i32
    %c0_i32_11 = arith.constant 0 : i32
    %14 = arith.cmpi ne, %13, %c0_i32_11 : i32
    scf.if %14 {
      %c0_12 = arith.constant 0 : index
      %c0_13 = arith.constant 0 : index
      %15 = vector.load %arg9[%c0_12, %c0_13] : memref<16x512xf32, #tpu.memory_space<vmem>>, vector<16x512xf32>
      %c0_14 = arith.constant 0 : index
      %c0_15 = arith.constant 0 : index
      %16 = vector.load %arg5[%c0_14, %c0_15] : memref<1x512xf32, #tpu.memory_space<vmem>>, vector<1x512xf32>
      %17 = vector.broadcast %16 : vector<1x512xf32> to vector<16x512xf32>
      %18 = arith.addf %15, %17 : vector<16x512xf32>
      %cst_16 = arith.constant 1.702000e+00 : f32
      %19 = vector.broadcast %cst_16 : f32 to vector<16x512xf32>
      %20 = arith.mulf %19, %18 : vector<16x512xf32>
      %21 = arith.negf %20 : vector<16x512xf32>
      %22 = math.exp %21 : vector<16x512xf32>
      %cst_17 = arith.constant 1.000000e+00 : f32
      %23 = vector.broadcast %cst_17 : f32 to vector<16x512xf32>
      %24 = arith.addf %23, %22 : vector<16x512xf32>
      %25 = arith.divf %23, %24 : vector<16x512xf32>
      %26 = arith.mulf %18, %25 : vector<16x512xf32>
      %27 = arith.truncf %26 : vector<16x512xf32> to vector<16x512xbf16>
      %c0_18 = arith.constant 0 : index
      %c0_19 = arith.constant 0 : index
      %28 = vector.load %arg8[%c0_18, %c0_19] : memref<16x512xbf16, #tpu.memory_space<vmem>>, vector<16x512xbf16>
      tpu.vector_store %arg8[%c0_18, %c0_19], %27 {strides = array<i32>} : memref<16x512xbf16, #tpu.memory_space<vmem>>, vector<16x512xbf16>,
    } else {
    }
    return
  }
  func.func @transform_0(%arg0: i32, %arg1: i32, %arg2: i32) -> (i32, i32) {
    %c0_i32 = arith.constant 0 : i32
    return %arg0, %arg2 : i32, i32
  }
  func.func @transform_1(%arg0: i32, %arg1: i32, %arg2: i32) -> (i32, i32) {
    %c0_i32 = arith.constant 0 : i32
    return %arg2, %arg1 : i32, i32
  }
  func.func @transform_2(%arg0: i32, %arg1: i32, %arg2: i32) -> (i32, i32) {
    %c0_i32 = arith.constant 0 : i32
    %c0_i32_0 = arith.constant 0 : i32
    return %c0_i32, %arg1 : i32, i32
  }
  func.func @transform_3(%arg0: i32, %arg1: i32, %arg2: i32) -> (i32, i32) {
    %c0_i32 = arith.constant 0 : i32
    %c0_i32_0 = arith.constant 0 : i32
    return %c0_i32, %arg2 : i32, i32
  }
  func.func @transform_4(%arg0: i32, %arg1: i32, %arg2: i32) -> (i32, i32) {
    %c0_i32 = arith.constant 0 : i32
    %c0_i32_0 = arith.constant 0 : i32
    return %c0_i32, %arg2 : i32, i32
  }
  func.func @transform_5(%arg0: i32, %arg1: i32, %arg2: i32) -> (i32, i32) {
    %c0_i32 = arith.constant 0 : i32
    return %arg0, %arg1 : i32, i32
  }
}

module attributes {stable_mosaic.version = 11 : i64} {
  func.func @_fused_matmul_kernel(%arg0: i32, %arg1: i32, %arg2: i32, %arg3: memref<16x512xbf16, #tpu.memory_space<vmem>>, %arg4: memref<512x128xbf16, #tpu.memory_space<vmem>>, %arg5: memref<1x128xf32, #tpu.memory_space<vmem>>, %arg6: memref<16x128xbf16, #tpu.memory_space<vmem>>, %arg7: memref<16x128xbf16, #tpu.memory_space<vmem>>, %arg8: memref<16x128xf32, #tpu.memory_space<vmem>>) attributes {dimension_semantics = [#tpu.dimension_semantics<parallel>, #tpu.dimension_semantics<parallel>, #tpu.dimension_semantics<arbitrary>], iteration_bounds = array<i64: 1, 1, 1>, scalar_prefetch = 0 : i64, scratch_operands = 1 : i64, tpu.core_type = #tpu.core_type<tc>, window_params = [{transform_indices = @transform_0, window_bounds = array<i64: 16, 512>}, {transform_indices = @transform_1, window_bounds = array<i64: 512, 128>}, {transform_indices = @transform_2, window_bounds = array<i64: 1, 128>}, {transform_indices = @transform_3, window_bounds = array<i64: 16, 128>}, {transform_indices = @transform_4, window_bounds = array<i64: 16, 128>}]} {
    %c0_i32 = arith.constant 0 : i32
    %0 = arith.cmpi eq, %arg2, %c0_i32 : i32
    %1 = arith.extui %0 : i1 to i32
    %c0_i32_0 = arith.constant 0 : i32
    %2 = arith.cmpi ne, %1, %c0_i32_0 : i32
    scf.if %2 {
      %cst_10 = arith.constant 0.000000e+00 : f32
      %12 = vector.broadcast %cst_10 : f32 to vector<16x128xf32>
      %c0_11 = arith.constant 0 : index
      %c0_12 = arith.constant 0 : index
      %13 = vector.load %arg8[%c0_11, %c0_12] : memref<16x128xf32, #tpu.memory_space<vmem>>, vector<16x128xf32>
      tpu.vector_store %arg8[%c0_11, %c0_12], %12 {strides = array<i32>} : memref<16x128xf32, #tpu.memory_space<vmem>>, vector<16x128xf32>,
    } else {
    }
    %c0 = arith.constant 0 : index
    %c0_1 = arith.constant 0 : index
    %3 = vector.load %arg3[%c0, %c0_1] : memref<16x512xbf16, #tpu.memory_space<vmem>>, vector<16x512xbf16>
    %c0_2 = arith.constant 0 : index
    %c0_3 = arith.constant 0 : index
    %4 = vector.load %arg8[%c0_2, %c0_3] : memref<16x128xf32, #tpu.memory_space<vmem>>, vector<16x128xf32>
    %c0_4 = arith.constant 0 : index
    %c0_5 = arith.constant 0 : index
    %5 = vector.load %arg4[%c0_4, %c0_5] : memref<512x128xbf16, #tpu.memory_space<vmem>>, vector<512x128xbf16>
    %cst = arith.constant dense<0.000000e+00> : vector<16x128xf32>
    %6 = tpu.matmul %3, %5, %cst {dimension_numbers = #tpu.dot_dimension_numbers<[1], [0], [0], [1], [0, 0, 1, 1], [], []>} : vector<16x512xbf16>, vector<512x128xbf16>, vector<16x128xf32> -> vector<16x128xf32>
    %7 = arith.addf %4, %6 : vector<16x128xf32>
    %c0_6 = arith.constant 0 : index
    %c0_7 = arith.constant 0 : index
    %8 = vector.load %arg8[%c0_6, %c0_7] : memref<16x128xf32, #tpu.memory_space<vmem>>, vector<16x128xf32>
    tpu.vector_store %arg8[%c0_6, %c0_7], %7 {strides = array<i32>} : memref<16x128xf32, #tpu.memory_space<vmem>>, vector<16x128xf32>,
    %c0_i32_8 = arith.constant 0 : i32
    %9 = arith.cmpi eq, %arg2, %c0_i32_8 : i32
    %10 = arith.extui %9 : i1 to i32
    %c0_i32_9 = arith.constant 0 : i32
    %11 = arith.cmpi ne, %10, %c0_i32_9 : i32
    scf.if %11 {
      %c0_10 = arith.constant 0 : index
      %c0_11 = arith.constant 0 : index
      %12 = vector.load %arg8[%c0_10, %c0_11] : memref<16x128xf32, #tpu.memory_space<vmem>>, vector<16x128xf32>
      %c0_12 = arith.constant 0 : index
      %c0_13 = arith.constant 0 : index
      %13 = vector.load %arg5[%c0_12, %c0_13] : memref<1x128xf32, #tpu.memory_space<vmem>>, vector<1x128xf32>
      %14 = vector.broadcast %13 : vector<1x128xf32> to vector<16x128xf32>
      %15 = arith.addf %12, %14 : vector<16x128xf32>
      %c0_14 = arith.constant 0 : index
      %c0_15 = arith.constant 0 : index
      %16 = vector.load %arg6[%c0_14, %c0_15] : memref<16x128xbf16, #tpu.memory_space<vmem>>, vector<16x128xbf16>
      %17 = arith.extf %16 : vector<16x128xbf16> to vector<16x128xf32>
      %18 = arith.addf %15, %17 : vector<16x128xf32>
      %19 = arith.truncf %18 : vector<16x128xf32> to vector<16x128xbf16>
      %c0_16 = arith.constant 0 : index
      %c0_17 = arith.constant 0 : index
      %20 = vector.load %arg7[%c0_16, %c0_17] : memref<16x128xbf16, #tpu.memory_space<vmem>>, vector<16x128xbf16>
      tpu.vector_store %arg7[%c0_16, %c0_17], %19 {strides = array<i32>} : memref<16x128xbf16, #tpu.memory_space<vmem>>, vector<16x128xbf16>,
    } else {
    }
    return
  }
  func.func @transform_0(%arg0: i32, %arg1: i32, %arg2: i32) -> (i32, i32) {
    %c0_i32 = arith.constant 0 : i32
    return %arg0, %arg2 : i32, i32
  }
  func.func @transform_1(%arg0: i32, %arg1: i32, %arg2: i32) -> (i32, i32) {
    %c0_i32 = arith.constant 0 : i32
    return %arg2, %arg1 : i32, i32
  }
  func.func @transform_2(%arg0: i32, %arg1: i32, %arg2: i32) -> (i32, i32) {
    %c0_i32 = arith.constant 0 : i32
    %c0_i32_0 = arith.constant 0 : i32
    return %c0_i32, %arg1 : i32, i32
  }
  func.func @transform_3(%arg0: i32, %arg1: i32, %arg2: i32) -> (i32, i32) {
    %c0_i32 = arith.constant 0 : i32
    return %arg0, %arg1 : i32, i32
  }
  func.func @transform_4(%arg0: i32, %arg1: i32, %arg2: i32) -> (i32, i32) {
    %c0_i32 = arith.constant 0 : i32
    return %arg0, %arg1 : i32, i32
  }
}

module attributes {stable_mosaic.version = 11 : i64} {
  func.func @_fused_matmul_kernel(%arg0: i32, %arg1: i32, %arg2: i32, %arg3: memref<16x512xbf16, #tpu.memory_space<vmem>>, %arg4: memref<512x128xbf16, #tpu.memory_space<vmem>>, %arg5: memref<1x128xf32, #tpu.memory_space<vmem>>, %arg6: memref<16x128xbf16, #tpu.memory_space<vmem>>, %arg7: memref<16x128xbf16, #tpu.memory_space<vmem>>, %arg8: memref<16x128xf32, #tpu.memory_space<vmem>>) attributes {dimension_semantics = [#tpu.dimension_semantics<parallel>, #tpu.dimension_semantics<parallel>, #tpu.dimension_semantics<arbitrary>], iteration_bounds = array<i64: 1, 1, 1>, scalar_prefetch = 0 : i64, scratch_operands = 1 : i64, tpu.core_type = #tpu.core_type<tc>, window_params = [{transform_indices = @transform_0, window_bounds = array<i64: 16, 512>}, {transform_indices = @transform_1, window_bounds = array<i64: 512, 128>}, {transform_indices = @transform_2, window_bounds = array<i64: 1, 128>}, {transform_indices = @transform_3, window_bounds = array<i64: 16, 128>}, {transform_indices = @transform_4, window_bounds = array<i64: 16, 128>}]} {
    %c0_i32 = arith.constant 0 : i32
    %0 = arith.cmpi eq, %arg2, %c0_i32 : i32
    %1 = arith.extui %0 : i1 to i32
    %c0_i32_0 = arith.constant 0 : i32
    %2 = arith.cmpi ne, %1, %c0_i32_0 : i32
    scf.if %2 {
      %cst_10 = arith.constant 0.000000e+00 : f32
      %12 = vector.broadcast %cst_10 : f32 to vector<16x128xf32>
      %c0_11 = arith.constant 0 : index
      %c0_12 = arith.constant 0 : index
      %13 = vector.load %arg8[%c0_11, %c0_12] : memref<16x128xf32, #tpu.memory_space<vmem>>, vector<16x128xf32>
      tpu.vector_store %arg8[%c0_11, %c0_12], %12 {strides = array<i32>} : memref<16x128xf32, #tpu.memory_space<vmem>>, vector<16x128xf32>,
    } else {
    }
    %c0 = arith.constant 0 : index
    %c0_1 = arith.constant 0 : index
    %3 = vector.load %arg3[%c0, %c0_1] : memref<16x512xbf16, #tpu.memory_space<vmem>>, vector<16x512xbf16>
    %c0_2 = arith.constant 0 : index
    %c0_3 = arith.constant 0 : index
    %4 = vector.load %arg8[%c0_2, %c0_3] : memref<16x128xf32, #tpu.memory_space<vmem>>, vector<16x128xf32>
    %c0_4 = arith.constant 0 : index
    %c0_5 = arith.constant 0 : index
    %5 = vector.load %arg4[%c0_4, %c0_5] : memref<512x128xbf16, #tpu.memory_space<vmem>>, vector<512x128xbf16>
    %cst = arith.constant dense<0.000000e+00> : vector<16x128xf32>
    %6 = tpu.matmul %3, %5, %cst {dimension_numbers = #tpu.dot_dimension_numbers<[1], [0], [0], [1], [0, 0, 1, 1], [], []>} : vector<16x512xbf16>, vector<512x128xbf16>, vector<16x128xf32> -> vector<16x128xf32>
    %7 = arith.addf %4, %6 : vector<16x128xf32>
    %c0_6 = arith.constant 0 : index
    %c0_7 = arith.constant 0 : index
    %8 = vector.load %arg8[%c0_6, %c0_7] : memref<16x128xf32, #tpu.memory_space<vmem>>, vector<16x128xf32>
    tpu.vector_store %arg8[%c0_6, %c0_7], %7 {strides = array<i32>} : memref<16x128xf32, #tpu.memory_space<vmem>>, vector<16x128xf32>,
    %c0_i32_8 = arith.constant 0 : i32
    %9 = arith.cmpi eq, %arg2, %c0_i32_8 : i32
    %10 = arith.extui %9 : i1 to i32
    %c0_i32_9 = arith.constant 0 : i32
    %11 = arith.cmpi ne, %10, %c0_i32_9 : i32
    scf.if %11 {
      %c0_10 = arith.constant 0 : index
      %c0_11 = arith.constant 0 : index
      %12 = vector.load %arg8[%c0_10, %c0_11] : memref<16x128xf32, #tpu.memory_space<vmem>>, vector<16x128xf32>
      %c0_12 = arith.constant 0 : index
      %c0_13 = arith.constant 0 : index
      %13 = vector.load %arg5[%c0_12, %c0_13] : memref<1x128xf32, #tpu.memory_space<vmem>>, vector<1x128xf32>
      %14 = vector.broadcast %13 : vector<1x128xf32> to vector<16x128xf32>
      %15 = arith.addf %12, %14 : vector<16x128xf32>
      %c0_14 = arith.constant 0 : index
      %c0_15 = arith.constant 0 : index
      %16 = vector.load %arg6[%c0_14, %c0_15] : memref<16x128xbf16, #tpu.memory_space<vmem>>, vector<16x128xbf16>
      %17 = arith.extf %16 : vector<16x128xbf16> to vector<16x128xf32>
      %18 = arith.addf %15, %17 : vector<16x128xf32>
      %19 = arith.truncf %18 : vector<16x128xf32> to vector<16x128xbf16>
      %c0_16 = arith.constant 0 : index
      %c0_17 = arith.constant 0 : index
      %20 = vector.load %arg7[%c0_16, %c0_17] : memref<16x128xbf16, #tpu.memory_space<vmem>>, vector<16x128xbf16>
      tpu.vector_store %arg7[%c0_16, %c0_17], %19 {strides = array<i32>} : memref<16x128xbf16, #tpu.memory_space<vmem>>, vector<16x128xbf16>,
    } else {
    }
    return
  }
  func.func @transform_0(%arg0: i32, %arg1: i32, %arg2: i32) -> (i32, i32) {
    %c0_i32 = arith.constant 0 : i32
    return %arg0, %arg2 : i32, i32
  }
  func.func @transform_1(%arg0: i32, %arg1: i32, %arg2: i32) -> (i32, i32) {
    %c0_i32 = arith.constant 0 : i32
    return %arg2, %arg1 : i32, i32
  }
  func.func @transform_2(%arg0: i32, %arg1: i32, %arg2: i32) -> (i32, i32) {
    %c0_i32 = arith.constant 0 : i32
    %c0_i32_0 = arith.constant 0 : i32
    return %c0_i32, %arg1 : i32, i32
  }
  func.func @transform_3(%arg0: i32, %arg1: i32, %arg2: i32) -> (i32, i32) {
    %c0_i32 = arith.constant 0 : i32
    return %arg0, %arg1 : i32, i32
  }
  func.func @transform_4(%arg0: i32, %arg1: i32, %arg2: i32) -> (i32, i32) {
    %c0_i32 = arith.constant 0 : i32
    return %arg0, %arg1 : i32, i32
  }
}

module attributes {stable_mosaic.version = 11 : i64} {
  func.func @_fused_matmul_kernel(%arg0: i32, %arg1: i32, %arg2: i32, %arg3: memref<2x128xbf16, #tpu.memory_space<vmem>>, %arg4: memref<128x128xbf16, #tpu.memory_space<vmem>>, %arg5: memref<1x128xf32, #tpu.memory_space<vmem>>, %arg6: memref<1x128xf32, #tpu.memory_space<vmem>>, %arg7: memref<1x128xf32, #tpu.memory_space<vmem>>, %arg8: memref<2x128xf32, #tpu.memory_space<vmem>>, %arg9: memref<2x128xf32, #tpu.memory_space<vmem>>, %arg10: memref<2x128xbf16, #tpu.memory_space<vmem>>) attributes {dimension_semantics = [#tpu.dimension_semantics<parallel>, #tpu.dimension_semantics<arbitrary>, #tpu.dimension_semantics<arbitrary>], iteration_bounds = array<i64: 1, 1, 1>, scalar_prefetch = 0 : i64, scratch_operands = 2 : i64, tpu.core_type = #tpu.core_type<tc>, window_params = [{transform_indices = @transform_0, window_bounds = array<i64: 2, 128>}, {transform_indices = @transform_1, window_bounds = array<i64: 128, 128>}, {transform_indices = @transform_2, window_bounds = array<i64: 1, 128>}, {transform_indices = @transform_3, window_bounds = array<i64: 1, 128>}, {transform_indices = @transform_4, window_bounds = array<i64: 1, 128>}, {transform_indices = @transform_5, window_bounds = array<i64: 2, 128>}]} {
    %c0_i32 = arith.constant 0 : i32
    %0 = arith.cmpi eq, %arg2, %c0_i32 : i32
    %1 = arith.extui %0 : i1 to i32
    %c0_i32_0 = arith.constant 0 : i32
    %2 = arith.cmpi ne, %1, %c0_i32_0 : i32
    scf.if %2 {
      %cst_12 = arith.constant 0.000000e+00 : f32
      %15 = vector.broadcast %cst_12 : f32 to vector<2x128xf32>
      %c0_13 = arith.constant 0 : index
      %c0_14 = arith.constant 0 : index
      %16 = vector.load %arg9[%c0_13, %c0_14] : memref<2x128xf32, #tpu.memory_space<vmem>>, vector<2x128xf32>
      tpu.vector_store %arg9[%c0_13, %c0_14], %15 {strides = array<i32>} : memref<2x128xf32, #tpu.memory_space<vmem>>, vector<2x128xf32>,
    } else {
    }
    %c0_i32_1 = arith.constant 0 : i32
    %3 = arith.cmpi eq, %arg1, %c0_i32_1 : i32
    %4 = arith.extui %3 : i1 to i32
    %c0_i32_2 = arith.constant 0 : i32
    %5 = arith.cmpi ne, %4, %c0_i32_2 : i32
    scf.if %5 {
      %c0_12 = arith.constant 0 : index
      %c0_13 = arith.constant 0 : index
      %15 = vector.load %arg3[%c0_12, %c0_13] : memref<2x128xbf16, #tpu.memory_space<vmem>>, vector<2x128xbf16>
      %16 = arith.extf %15 : vector<2x128xbf16> to vector<2x128xf32>
      %cst_14 = arith.constant dense<0.000000e+00> : vector<2xf32>
      %17 = vector.multi_reduction <add>, %16, %cst_14 [1] : vector<2x128xf32> to vector<2xf32>
      %18 = vector.shape_cast %17 : vector<2xf32> to vector<2x1xf32>
      %cst_15 = arith.constant 1.280000e+02 : f32
      %19 = vector.broadcast %cst_15 : f32 to vector<2x1xf32>
      %20 = arith.divf %18, %19 : vector<2x1xf32>
      %21 = vector.broadcast %20 : vector<2x1xf32> to vector<2x128xf32>
      %22 = arith.subf %16, %21 : vector<2x128xf32>
      %23 = arith.mulf %22, %22 : vector<2x128xf32>
      %cst_16 = arith.constant dense<0.000000e+00> : vector<2xf32>
      %24 = vector.multi_reduction <add>, %23, %cst_16 [1] : vector<2x128xf32> to vector<2xf32>
      %25 = vector.shape_cast %24 : vector<2xf32> to vector<2x1xf32>
      %cst_17 = arith.constant 1.280000e+02 : f32
      %26 = vector.broadcast %cst_17 : f32 to vector<2x1xf32>
      %27 = arith.divf %25, %26 : vector<2x1xf32>
      %cst_18 = arith.constant 9.99999974E-6 : f32
      %28 = vector.broadcast %cst_18 : f32 to vector<2x1xf32>
      %29 = arith.addf %27, %28 : vector<2x1xf32>
      %30 = math.rsqrt %29 : vector<2x1xf32>
      %31 = vector.broadcast %30 : vector<2x1xf32> to vector<2x128xf32>
      %32 = arith.mulf %22, %31 : vector<2x128xf32>
      %c0_19 = arith.constant 0 : index
      %c0_20 = arith.constant 0 : index
      %33 = vector.load %arg6[%c0_19, %c0_20] : memref<1x128xf32, #tpu.memory_space<vmem>>, vector<1x128xf32>
      %34 = vector.broadcast %33 : vector<1x128xf32> to vector<2x128xf32>
      %35 = arith.mulf %32, %34 : vector<2x128xf32>
      %c0_21 = arith.constant 0 : index
      %c0_22 = arith.constant 0 : index
      %36 = vector.load %arg7[%c0_21, %c0_22] : memref<1x128xf32, #tpu.memory_space<vmem>>, vector<1x128xf32>
      %37 = vector.broadcast %36 : vector<1x128xf32> to vector<2x128xf32>
      %38 = arith.addf %35, %37 : vector<2x128xf32>
      %39 = arith.truncf %38 : vector<2x128xf32> to vector<2x128xbf16>
      %c0_23 = arith.constant 0 : index
      %c0_24 = arith.constant 0 : index
      %40 = vector.load %arg10[%c0_23, %c0_24] : memref<2x128xbf16, #tpu.memory_space<vmem>>, vector<2x128xbf16>
      tpu.vector_store %arg10[%c0_23, %c0_24], %39 {strides = array<i32>} : memref<2x128xbf16, #tpu.memory_space<vmem>>, vector<2x128xbf16>,
    } else {
    }
    %c0 = arith.constant 0 : index
    %c0_3 = arith.constant 0 : index
    %6 = vector.load %arg10[%c0, %c0_3] : memref<2x128xbf16, #tpu.memory_space<vmem>>, vector<2x128xbf16>
    %c0_4 = arith.constant 0 : index
    %c0_5 = arith.constant 0 : index
    %7 = vector.load %arg9[%c0_4, %c0_5] : memref<2x128xf32, #tpu.memory_space<vmem>>, vector<2x128xf32>
    %c0_6 = arith.constant 0 : index
    %c0_7 = arith.constant 0 : index
    %8 = vector.load %arg4[%c0_6, %c0_7] : memref<128x128xbf16, #tpu.memory_space<vmem>>, vector<128x128xbf16>
    %cst = arith.constant dense<0.000000e+00> : vector<2x128xf32>
    %9 = tpu.matmul %6, %8, %cst {dimension_numbers = #tpu.dot_dimension_numbers<[1], [0], [0], [1], [0, 0, 1, 1], [], []>} : vector<2x128xbf16>, vector<128x128xbf16>, vector<2x128xf32> -> vector<2x128xf32>
    %10 = arith.addf %7, %9 : vector<2x128xf32>
    %c0_8 = arith.constant 0 : index
    %c0_9 = arith.constant 0 : index
    %11 = vector.load %arg9[%c0_8, %c0_9] : memref<2x128xf32, #tpu.memory_space<vmem>>, vector<2x128xf32>
    tpu.vector_store %arg9[%c0_8, %c0_9], %10 {strides = array<i32>} : memref<2x128xf32, #tpu.memory_space<vmem>>, vector<2x128xf32>,
    %c0_i32_10 = arith.constant 0 : i32
    %12 = arith.cmpi eq, %arg2, %c0_i32_10 : i32
    %13 = arith.extui %12 : i1 to i32
    %c0_i32_11 = arith.constant 0 : i32
    %14 = arith.cmpi ne, %13, %c0_i32_11 : i32
    scf.if %14 {
      %c0_12 = arith.constant 0 : index
      %c0_13 = arith.constant 0 : index
      %15 = vector.load %arg9[%c0_12, %c0_13] : memref<2x128xf32, #tpu.memory_space<vmem>>, vector<2x128xf32>
      %c0_14 = arith.constant 0 : index
      %c0_15 = arith.constant 0 : index
      %16 = vector.load %arg5[%c0_14, %c0_15] : memref<1x128xf32, #tpu.memory_space<vmem>>, vector<1x128xf32>
      %17 = vector.broadcast %16 : vector<1x128xf32> to vector<2x128xf32>
      %18 = arith.addf %15, %17 : vector<2x128xf32>
      %c0_16 = arith.constant 0 : index
      %c0_17 = arith.constant 0 : index
      %19 = vector.load %arg8[%c0_16, %c0_17] : memref<2x128xf32, #tpu.memory_space<vmem>>, vector<2x128xf32>
      tpu.vector_store %arg8[%c0_16, %c0_17], %18 {strides = array<i32>} : memref<2x128xf32, #tpu.memory_space<vmem>>, vector<2x128xf32>,
    } else {
    }
    return
  }
  func.func @transform_0(%arg0: i32, %arg1: i32, %arg2: i32) -> (i32, i32) {
    %c0_i32 = arith.constant 0 : i32
    return %arg0, %arg2 : i32, i32
  }
  func.func @transform_1(%arg0: i32, %arg1: i32, %arg2: i32) -> (i32, i32) {
    %c0_i32 = arith.constant 0 : i32
    return %arg2, %arg1 : i32, i32
  }
  func.func @transform_2(%arg0: i32, %arg1: i32, %arg2: i32) -> (i32, i32) {
    %c0_i32 = arith.constant 0 : i32
    %c0_i32_0 = arith.constant 0 : i32
    return %c0_i32, %arg1 : i32, i32
  }
  func.func @transform_3(%arg0: i32, %arg1: i32, %arg2: i32) -> (i32, i32) {
    %c0_i32 = arith.constant 0 : i32
    %c0_i32_0 = arith.constant 0 : i32
    return %c0_i32, %arg2 : i32, i32
  }
  func.func @transform_4(%arg0: i32, %arg1: i32, %arg2: i32) -> (i32, i32) {
    %c0_i32 = arith.constant 0 : i32
    %c0_i32_0 = arith.constant 0 : i32
    return %c0_i32, %arg2 : i32, i32
  }
  func.func @transform_5(%arg0: i32, %arg1: i32, %arg2: i32) -> (i32, i32) {
    %c0_i32 = arith.constant 0 : i32
    return %arg0, %arg1 : i32, i32
  }
}

</mosaic_0001>

<llo_original>
// kernel: clip_forward.14
$region0: #{clip_forward.14}
  #allocation0 [shape = 'u32[]', space=smem, size = 0x4, offset = 0x4, fixed_abs, tag = 'smem constant byte address 0x4 - core index']
  #allocation1 [shape = 'u32[72,128]{1,0:T(1,128)}', space=vmem, size = 0x9000, scoped, tag = 'internal scratch']
  %s0 = inlined_call_operand.vmem [shape: bf16[2,4,128], index: 0, kind: input, shape index: {}]
  %s1 = inlined_call_operand.vmem [shape: f32[8,128], index: 1, kind: input, shape index: {}]
  %s2 = inlined_call_operand.vmem [shape: f32[1,128], index: 2, kind: input, shape index: {}]
  %s3 = inlined_call_operand.vmem [shape: f32[1,128], index: 3, kind: input, shape index: {}]
  %s4 = inlined_call_operand.vmem [shape: bf16[2,8,128], index: 4, kind: output, shape index: {}]
  %s5 = sld [smem:[#allocation0]]
  $region49: #{clip_forward.14} parent=0
    _
  %s7 = ssub.s32 1, %s5
  %s8 = scalar_select 0, %s7, %s5
  loop: start=0, step=1, limit=4
  $region2: #{clip_forward.14} parent=0 // loop_pre_header
    _
  $region3: #{clip_forward.14} parent=0 // loop_header
    %s10 = sphi 0, %s14
    %p11 = scmp.ge.s32.totalorder %s10, 4
    %s20 = sphi 0, %s22
    %s23 = sphi 0, %s20
    %s24 = sphi 0, %s23
    %s40 = sphi 0, %s24
    %s44 = sphi 0, %s44
    %s46 = sphi 0, %s44
    %s47 = sphi 0, %s46
    %s61 = sphi 0, %s47
    %s65 = sphi 0, %s65
    %s67 = sphi 0, %s65
    %s68 = sphi 0, %s67
    %s82 = sphi 0, %s68
    %s86 = sphi 0, %s86
    %s88 = sphi 0, %s86
    %s89 = sphi 0, %s88
    %s103 = sphi 0, %s89
    %s109 = sphi 0, %s111
    %s112 = sphi 0, %s109
    %s113 = sphi 0, %s112
    %s129 = sphi 0, %s113
  $region4: #{clip_forward.14} parent=0 // loop_header_branch
    %13 = sbr.rel (%p11) target = $region8
  $region5: #{clip_forward.14} parent=0 // loop_body
    %s15 = ssub.s32 %s10, 1
    %s16 = ssub.s32 %s10, 2
    %s17 = sadd.s32 %s10, 1
    %s18 = ssub.s32 %s10, %s17
    %p19 = scmp.eq.s32.totalorder %s18, 0
    %s21 = sadd.s32 %s20, 1
    %s22 = scalar_select %p19, %s20, %s21
    %p25 = pneg %p19
    %p26 = scmp.eq.s32.totalorder %s10, 1
    %p27 = por %p25, %p26
    %p28 = scmp.ne.s32.totalorder %s20, %s23
    %p29 = scmp.eq.s32.totalorder %s10, 0
    %p30 = por %p28, %p29
    %p31 = scmp.ne.s32.totalorder %s20, %s23
    %p32 = scmp.eq.s32.totalorder %s15, 1
    %p33 = por %p31, %p32
    %p34 = scmp.ne.s32.totalorder %s23, %s24
    %p35 = scmp.eq.s32.totalorder %s15, 0
    %p36 = por %p34, %p35
    %p37 = scmp.ne.s32.totalorder %s23, %s24
    %p38 = scmp.eq.s32.totalorder %s16, 1
    %p39 = por %p37, %p38
    %p41 = scmp.ne.s32.totalorder %s24, %s40
    %p42 = scmp.eq.s32.totalorder %s16, 0
    %p43 = por %p41, %p42
    %s45 = sadd.s32 %s44, 1
    %p48 = scmp.eq.s32.totalorder %s10, 1
    %p49 = scmp.ne.s32.totalorder %s44, %s46
    %p50 = scmp.eq.s32.totalorder %s10, 0
    %p51 = por %p49, %p50
    %p52 = scmp.ne.s32.totalorder %s44, %s46
    %p53 = scmp.eq.s32.totalorder %s15, 1
    %p54 = por %p52, %p53
    %p55 = scmp.ne.s32.totalorder %s46, %s47
    %p56 = scmp.eq.s32.totalorder %s15, 0
    %p57 = por %p55, %p56
    %p58 = scmp.ne.s32.totalorder %s46, %s47
    %p59 = scmp.eq.s32.totalorder %s16, 1
    %p60 = por %p58, %p59
    %p62 = scmp.ne.s32.totalorder %s47, %s61
    %p63 = scmp.eq.s32.totalorder %s16, 0
    %p64 = por %p62, %p63
    %s66 = sadd.s32 %s65, 1
    %p69 = scmp.eq.s32.totalorder %s10, 1
    %p70 = scmp.ne.s32.totalorder %s65, %s67
    %p71 = scmp.eq.s32.totalorder %s10, 0
    %p72 = por %p70, %p71
    %p73 = scmp.ne.s32.totalorder %s65, %s67
    %p74 = scmp.eq.s32.totalorder %s15, 1
    %p75 = por %p73, %p74
    %p76 = scmp.ne.s32.totalorder %s67, %s68
    %p77 = scmp.eq.s32.totalorder %s15, 0
    %p78 = por %p76, %p77
    %p79 = scmp.ne.s32.totalorder %s67, %s68
    %p80 = scmp.eq.s32.totalorder %s16, 1
    %p81 = por %p79, %p80
    %p83 = scmp.ne.s32.totalorder %s68, %s82
    %p84 = scmp.eq.s32.totalorder %s16, 0
    %p85 = por %p83, %p84
    %s87 = sadd.s32 %s86, 1
    %p90 = scmp.eq.s32.totalorder %s10, 1
    %p91 = scmp.ne.s32.totalorder %s86, %s88
    %p92 = scmp.eq.s32.totalorder %s10, 0
    %p93 = por %p91, %p92
    %p94 = scmp.ne.s32.totalorder %s86, %s88
    %p95 = scmp.eq.s32.totalorder %s15, 1
    %p96 = por %p94, %p95
    %p97 = scmp.ne.s32.totalorder %s88, %s89
    %p98 = scmp.eq.s32.totalorder %s15, 0
    %p99 = por %p97, %p98
    %p100 = scmp.ne.s32.totalorder %s88, %s89
    %p101 = scmp.eq.s32.totalorder %s16, 1
    %p102 = por %p100, %p101
    %p104 = scmp.ne.s32.totalorder %s89, %s103
    %p105 = scmp.eq.s32.totalorder %s16, 0
    %p106 = por %p104, %p105
    %s107 = ssub.s32 %s10, %s17
    %p108 = scmp.eq.s32.totalorder %s107, 0
    %s110 = sadd.s32 %s109, 1
    %s111 = scalar_select %p108, %s109, %s110
    %p114 = pneg %p108
    %p115 = scmp.eq.s32.totalorder %s10, 1
    %p116 = por %p114, %p115
    %p117 = scmp.ne.s32.totalorder %s109, %s112
    %p118 = scmp.eq.s32.totalorder %s10, 0
    %p119 = por %p117, %p118
    %p120 = scmp.ne.s32.totalorder %s109, %s112
    %p121 = scmp.eq.s32.totalorder %s15, 1
    %p122 = por %p120, %p121
    %p123 = scmp.ne.s32.totalorder %s112, %s113
    %p124 = scmp.eq.s32.totalorder %s15, 0
    %p125 = por %p123, %p124
    %p126 = scmp.ne.s32.totalorder %s112, %s113
    %p127 = scmp.eq.s32.totalorder %s16, 1
    %p128 = por %p126, %p127
    %p130 = scmp.ne.s32.totalorder %s113, %s129
    %p131 = scmp.eq.s32.totalorder %s16, 0
    %p132 = por %p130, %p131
    %p133 = scmp.le.s32.totalorder 1, %s10
    %p134 = scmp.lt.s32.totalorder %s10, 3
    %p135 = pnand %p133, %p134
    %p136 = pneg %p135
    // Predicated region
    $region9: #{clip_forward.14} parent=5 // pred_check
      _
    $region10: #{clip_forward.14} parent=5 // pred_check_branch
      %138 = sbr.rel (%p135) target = $region12
    $region11: #{clip_forward.14} parent=5 // pred_region
      %s139 = ssub.s32 %s10, 1
      // Predicated region
      $region13: #{clip_forward.14} parent=11 // pred_check
        %p140 = pneg %p57
      $region14: #{clip_forward.14} parent=11 // pred_check_branch
        %142 = sbr.rel (%p140) target = $region16
      $region15: #{clip_forward.14} parent=11 // pred_region
        _
      $region16: #{clip_forward.14} parent=11 // pred_fallthru
        _
      // Predicated region
      $region17: #{clip_forward.14} parent=11 // pred_check
        %p143 = pneg %p78
      $region18: #{clip_forward.14} parent=11 // pred_check_branch
        %145 = sbr.rel (%p143) target = $region20
      $region19: #{clip_forward.14} parent=11 // pred_region
        _
      $region20: #{clip_forward.14} parent=11 // pred_fallthru
        _
      // Predicated region
      $region21: #{clip_forward.14} parent=11 // pred_check
        %p146 = pneg %p99
      $region22: #{clip_forward.14} parent=11 // pred_check_branch
        %148 = sbr.rel (%p146) target = $region24
      $region23: #{clip_forward.14} parent=11 // pred_region
        _
      $region24: #{clip_forward.14} parent=11 // pred_fallthru
        _
    $region12: #{clip_forward.14} parent=5 // pred_fallthru
      _
    %p149 = scmp.lt.s32.totalorder %s10, 2
    // Predicated region
    $region25: #{clip_forward.14} parent=5 // pred_check
      %p150 = pneg %p149
    $region26: #{clip_forward.14} parent=5 // pred_check_branch
      %152 = sbr.rel (%p150) target = $region28
    $region27: #{clip_forward.14} parent=5 // pred_region
      // Predicated region
      $region29: #{clip_forward.14} parent=27 // pred_check
        %p153 = pneg %p30
      $region30: #{clip_forward.14} parent=27 // pred_check_branch
        %155 = sbr.rel (%p153) target = $region32
      $region31: #{clip_forward.14} parent=27 // pred_region
        %p156 = scmp.lt.s32.totalorder %s10, 1
        %s157 = scalar_select %p156, %s10, 1
        %s158 = smul.addr %s157, 2
        %s159 = scalar_lea.vmem %s0, %s158
      $region32: #{clip_forward.14} parent=27 // pred_fallthru
        _
    $region28: #{clip_forward.14} parent=5 // pred_fallthru
      _
    %p160 = scmp.le.s32.totalorder 1, %s10
    %p161 = scmp.lt.s32.totalorder %s10, 3
    %p162 = pnand %p160, %p161
    %p163 = pneg %p162
    // Predicated region
    $region33: #{clip_forward.14} parent=5 // pred_check
      _
    $region34: #{clip_forward.14} parent=5 // pred_check_branch
      %165 = sbr.rel (%p162) target = $region36
    $region35: #{clip_forward.14} parent=5 // pred_region
      %s166 = ssub.s32 %s10, 1
      %p167 = scmp.lt.s32.totalorder %s15, 1
      %s168 = scalar_select %p167, %s15, 1
      %s169 = smul.addr %s168, 2
      %s170 = scalar_lea.vmem %s0, %s169
      %p171 = pneg %p36
      %p172 = pneg %p33
      %p173 = pneg %p57
      %p174 = pneg %p54
      %p175 = pneg %p78
      %p176 = pneg %p75
      %p177 = pneg %p99
      %p178 = pneg %p96
      %p179 = pneg %p125
      %p180 = pneg %p122
      %p181 = scmp.lt.s32.totalorder %s15, 1
      %s182 = scalar_select %p181, %s15, 1
      %s183 = smul.addr %s182, 4
      %s184 = scalar_lea.vmem %s4, %s183
      %p185 = scmp.lt.s32.totalorder %s15, 1
      %s186 = scalar_select %p185, %s15, 1
      %s187 = smul.addr %s186, 2
      %s188 = scalar_lea.vmem %s0, %s187
      %p189 = scmp.lt.s32.totalorder %s15, 1
      %s190 = scalar_select %p189, %s15, 1
      %s191 = smul.addr %s190, 4
      %s192 = scalar_lea.vmem %s4, %s191
      %v193 = vld [vmem:[%s188] sm:$0x3]
      %v194 = vunpack.c.l.bf16 %v193
      %196 = vst [vmem:[#allocation1] ss:$2 sm:$0xff] %v194
      %v197 = vld.sshfl [vmem:[#allocation1] sm:$0xff pattern:$0x75316420]
      %v198 = vrot.slane %v197, 7
      %vm200 = vcmask 1040384
      %v201 = vsel %vm200, 0.0, %v198
      %vm202 = vcmask 1044480
      %v203 = vsel %vm202, %v201, 0.0
      %v204 = vld [vmem:[%s1] sm:$0xff]
      %v205 = vadd.f32 %v203, %v204
      %206 = vadd.xlane.f32.xlu0 %v205
      %v207 = vpop.xlane.xlu0 %206
      %v208 = vrcp.pop 128.0
      %v209 = vmul.f32 128.0, %v208
      %v210 = vsub.f32 1.0, %v209
      %v211 = vmul.f32 %v208, %v210
      %v212 = vadd.f32 %v208, %v211
      %vm213 = vweird.f32 %v208
      %v214 = vsel %vm213, %v208, %v212
      %v215 = vmul.f32 %v207, %v214
      %v216 = vsub.f32 %v205, %v215
      %v217 = vmul.f32 %v216, %v216
      %218 = vadd.xlane.f32.xlu0 %v217
      %v219 = vpop.xlane.xlu0 %218
      %v220 = vmul.f32 %v219, %v214
      %v221 = vadd.f32 %v220, 1e-05
      %v222 = vrsqrt.pop %v221
      %v223 = vmul.f32 %v222, %v221
      %v224 = vmul.f32 %v223, %v222
      %v225 = vmul.f32 0.5, %v224
      %v226 = vsub.f32 1.5, %v225
      %v227 = vmul.f32 %v222, %v226
      %vm228 = vweird.f32 %v221
      %vm229 = vweird.f32 %v222
      %vm230 = vmor %vm228, %vm229
      %v231 = vsel %vm230, %v222, %v227
      %v232 = vmul.f32 %v216, %v231
      %v233 = vld [vmem:[%s2] sm:$0x1]
      %v235 = vperm.slane %v233, 0
      %v237 = vmul.f32 %v232, %v235
      %v238 = vld [vmem:[%s3] sm:$0x1]
      %v240 = vperm.slane %v238, 0
      %v242 = vadd.f32 %v237, %v240
      %v243 = vpack.c.bf16 %v242, %v242
      %244 = vst [vmem:[%s192] sm:$0xf] %v243
      %p245 = scmp.lt.s32.totalorder %s15, 1
      %s246 = scalar_select %p245, %s15, 1
      %s247 = smul.addr %s246, 4
      %s248 = scalar_lea.vmem %s4, %s247
      // Predicated region
      $region37: #{clip_forward.14} parent=35 // pred_check
        %p249 = pneg %p122
      $region38: #{clip_forward.14} parent=35 // pred_check_branch
        %251 = sbr.rel (%p249) target = $region40
      $region39: #{clip_forward.14} parent=35 // pred_region
        _
      $region40: #{clip_forward.14} parent=35 // pred_fallthru
        _
    $region36: #{clip_forward.14} parent=5 // pred_fallthru
      _
    %p252 = scmp.le.s32.totalorder 2, %s10
    // Predicated region
    $region41: #{clip_forward.14} parent=5 // pred_check
      %p253 = pneg %p252
    $region42: #{clip_forward.14} parent=5 // pred_check_branch
      %255 = sbr.rel (%p253) target = $region44
    $region43: #{clip_forward.14} parent=5 // pred_region
      %s256 = ssub.s32 %s10, 2
      // Predicated region
      $region45: #{clip_forward.14} parent=43 // pred_check
        %p257 = pneg %p128
      $region46: #{clip_forward.14} parent=43 // pred_check_branch
        %259 = sbr.rel (%p257) target = $region48
      $region47: #{clip_forward.14} parent=43 // pred_region
        %p260 = scmp.lt.s32.totalorder %s16, 1
        %s261 = scalar_select %p260, %s16, 1
        %s262 = smul.addr %s261, 4
        %s263 = scalar_lea.vmem %s4, %s262
      $region48: #{clip_forward.14} parent=43 // pred_fallthru
        _
    $region44: #{clip_forward.14} parent=5 // pred_fallthru
      _
  $region6: #{clip_forward.14} parent=0 // loop_footer
    %s14 = sadd.s32 1, %s10
  $region7: #{clip_forward.14} parent=0 // loop_footer_branch
    %9 = sbr.rel target = $region3
  $region8: #{clip_forward.14} parent=0 // loop_exit
    _

// kernel: clip_forward.13
$region0: #{clip_forward.13}
  #allocation0 [shape = 'u32[]', space=smem, size = 0x4, offset = 0x4, fixed_abs, tag = 'smem constant byte address 0x4 - core index']
  #allocation1 [shape = 'u32[72,128]{1,0:T(1,128)}', space=vmem, size = 0x9000, scoped, tag = 'internal scratch']
  #allocation2 [shape = 'f32[8,128]{1,0:T(8,128)}', space=vmem, size = 0x1000, scoped, tag = 'scratch operand']
  %s0 = inlined_call_operand.vmem [shape: f32[8,192], index: 0, kind: input, shape index: {}]
  %s1 = inlined_call_operand.vmem [shape: bf16[192,128], index: 1, kind: input, shape index: {}]
  %s2 = inlined_call_operand.vmem [shape: f32[1,128], index: 2, kind: input, shape index: {}]
  %s3 = inlined_call_operand.vmem [shape: bf16[8,128], index: 3, kind: output, shape index: {}]
  %s4 = sld [smem:[#allocation0]]
  $region30: #{clip_forward.13} parent=0
    _
  %s6 = ssub.s32 1, %s4
  %s7 = scalar_select 0, %s6, %s4
  // Predicated region
  $region2: #{clip_forward.13} parent=0 // pred_check
    _
  $region3: #{clip_forward.13} parent=0 // pred_check_branch
    %9 = sbr.rel (0) target = $region5
  $region4: #{clip_forward.13} parent=0 // pred_region
    _
  $region5: #{clip_forward.13} parent=0 // pred_fallthru
    _
  // Predicated region
  $region6: #{clip_forward.13} parent=0 // pred_check
    _
  $region7: #{clip_forward.13} parent=0 // pred_check_branch
    %11 = sbr.rel (0) target = $region9
  $region8: #{clip_forward.13} parent=0 // pred_region
    _
  $region9: #{clip_forward.13} parent=0 // pred_fallthru
    _
  // Predicated region
  $region10: #{clip_forward.13} parent=0 // pred_check
    _
  $region11: #{clip_forward.13} parent=0 // pred_check_branch
    %13 = sbr.rel (0) target = $region13
  $region12: #{clip_forward.13} parent=0 // pred_region
    _
  $region13: #{clip_forward.13} parent=0 // pred_fallthru
    _
  %p15 = scmp.eq.s32.totalorder 0, 0
  // Predicated region
  $region14: #{clip_forward.13} parent=0 // pred_check
    %p16 = pneg %p15
  $region15: #{clip_forward.13} parent=0 // pred_check_branch
    %18 = sbr.rel (%p16) target = $region17
  $region16: #{clip_forward.13} parent=0 // pred_region
    %19 = vst [vmem:[#allocation2] sm:$0xff] 0.0
  $region17: #{clip_forward.13} parent=0 // pred_fallthru
    _
  %v20 = vld [vmem:[%s0] sm:$0xff]
  %v21 = vld [vmem:[%s0 + $0x8] sm:$0xff]
  %v22 = vpack.c.bf16 %v20, %v20
  %v23 = vpack.c.bf16 %v21, %v21
  %v24 = vld [vmem:[#allocation2] sm:$0xff]
  %v25 = vld [vmem:[%s1] sm:$0xf]
  %v26 = vld [vmem:[%s1 + $0x4] sm:$0xf]
  %v27 = vld [vmem:[%s1 + $0x8] sm:$0xf]
  %v28 = vld [vmem:[%s1 + $0xc] sm:$0xf]
  %v29 = vld [vmem:[%s1 + $0x10] sm:$0xf]
  %v30 = vld [vmem:[%s1 + $0x14] sm:$0xf]
  %v31 = vld [vmem:[%s1 + $0x18] sm:$0xf]
  %v32 = vld [vmem:[%s1 + $0x1c] sm:$0xf]
  %v33 = vld [vmem:[%s1 + $0x20] sm:$0xf]
  %v34 = vld [vmem:[%s1 + $0x24] sm:$0xf]
  %v35 = vld [vmem:[%s1 + $0x28] sm:$0xf]
  %v36 = vld [vmem:[%s1 + $0x2c] sm:$0xf]
  %v37 = vld [vmem:[%s1 + $0x30] sm:$0xf]
  %v38 = vld [vmem:[%s1 + $0x34] sm:$0xf]
  %v39 = vld [vmem:[%s1 + $0x38] sm:$0xf]
  %v40 = vld [vmem:[%s1 + $0x3c] sm:$0xf]
  %v41 = vld [vmem:[%s1 + $0x40] sm:$0xf]
  %v42 = vld [vmem:[%s1 + $0x44] sm:$0xf]
  %v43 = vld [vmem:[%s1 + $0x48] sm:$0xf]
  %v44 = vld [vmem:[%s1 + $0x4c] sm:$0xf]
  %v45 = vld [vmem:[%s1 + $0x50] sm:$0xf]
  %v46 = vld [vmem:[%s1 + $0x54] sm:$0xf]
  %v47 = vld [vmem:[%s1 + $0x58] sm:$0xf]
  %v48 = vld [vmem:[%s1 + $0x5c] sm:$0xf]
  %v73 = vunpack.c.l.b16 %v25
  %v74 = vunpack.c.l.b16 %v26
  %v75 = vunpack.c.l.b16 %v27
  %v76 = vunpack.c.l.b16 %v28
  %v77 = vunpack.c.l.b16 %v29
  %v78 = vunpack.c.l.b16 %v30
  %v79 = vunpack.c.l.b16 %v31
  %v80 = vunpack.c.l.b16 %v32
  %v81 = vunpack.c.l.b16 %v33
  %v82 = vunpack.c.l.b16 %v34
  %v83 = vunpack.c.l.b16 %v35
  %v84 = vunpack.c.l.b16 %v36
  %v85 = vunpack.c.l.b16 %v37
  %v86 = vunpack.c.l.b16 %v38
  %v87 = vunpack.c.l.b16 %v39
  %v88 = vunpack.c.l.b16 %v40
  %v89 = vunpack.c.l.b16 %v41
  %v90 = vunpack.c.l.b16 %v42
  %v91 = vunpack.c.l.b16 %v43
  %v92 = vunpack.c.l.b16 %v44
  %v93 = vunpack.c.l.b16 %v45
  %v94 = vunpack.c.l.b16 %v46
  %v95 = vunpack.c.l.b16 %v47
  %v96 = vunpack.c.l.b16 %v48
  %v97 = vpack.c.b16 %v74, %v73
  %v98 = vpack.c.b16 %v76, %v75
  %v99 = vpack.c.b16 %v78, %v77
  %v100 = vpack.c.b16 %v80, %v79
  %v101 = vpack.c.b16 %v82, %v81
  %v102 = vpack.c.b16 %v84, %v83
  %v103 = vpack.c.b16 %v86, %v85
  %v104 = vpack.c.b16 %v88, %v87
  %v105 = vpack.c.b16 %v90, %v89
  %v106 = vpack.c.b16 %v92, %v91
  %v107 = vpack.c.b16 %v94, %v93
  %v108 = vpack.c.b16 %v96, %v95
  %vm121 = vcmask 523264
  %v123 = vsel %vm121, %v23, 0
  %125 = vmatpush.bf16.msra.mxu0 %v104
  %126 = vmatpush.bf16.msra.mxu0 %v103
  %127 = vmatpush.bf16.msra.mxu0 %v102
  %128 = vmatpush.bf16.msra.mxu0 %v101
  %129 = vmatpush.bf16.msra.mxu0 %v100
  %130 = vmatpush.bf16.msra.mxu0 %v99
  %131 = vmatpush.bf16.msra.mxu0 %v98
  %132 = vmatpush.bf16.msra.mxu0 %v97
  %133 = vmatmul.bf16.gmra.mxu0 %v22
  %v134 = vpop.f32.mrf.mxu0
  %v135 = vadd.f32 0.0, %v134
  %v136 = vpop.f32.mrf.mxu0
  %137 = vdwg.mxu0
  %138 = vmatpush.bf16.msra.mxu0 0
  %139 = vmatpush.bf16.msra.mxu0 0
  %140 = vmatpush.bf16.msra.mxu0 0
  %141 = vmatpush.bf16.msra.mxu0 0
  %142 = vmatpush.bf16.msra.mxu0 %v108
  %143 = vmatpush.bf16.msra.mxu0 %v107
  %144 = vmatpush.bf16.msra.mxu0 %v106
  %145 = vmatpush.bf16.msra.mxu0 %v105
  %146 = vmatmul.bf16.gmra.mxu0 %v123
  %v147 = vpop.f32.mrf.mxu0
  %v148 = vadd.f32 %v135, %v147
  %v149 = vpop.f32.mrf.mxu0
  %150 = vdwg.mxu0
  %v151 = vadd.f32 %v24, %v148
  %152 = vst [vmem:[#allocation2] sm:$0xff] %v151
  // Predicated region
  $region18: #{clip_forward.13} parent=0 // pred_check
    %p153 = pneg %p15
  $region19: #{clip_forward.13} parent=0 // pred_check_branch
    %155 = sbr.rel (%p153) target = $region21
  $region20: #{clip_forward.13} parent=0 // pred_region
    %v156 = vld [vmem:[#allocation2] sm:$0xff]
    %v157 = vld [vmem:[%s2] sm:$0x1]
    %v159 = vperm.slane %v157, 0
    %v161 = vadd.f32 %v156, %v159
    %v162 = vpack.c.bf16 %v161, %v161
    %163 = vst [vmem:[%s3] sm:$0xf] %v162
  $region21: #{clip_forward.13} parent=0 // pred_fallthru
    _
  // Predicated region
  $region22: #{clip_forward.13} parent=0 // pred_check
    _
  $region23: #{clip_forward.13} parent=0 // pred_check_branch
    %165 = sbr.rel (0) target = $region25
  $region24: #{clip_forward.13} parent=0 // pred_region
    _
  $region25: #{clip_forward.13} parent=0 // pred_fallthru
    _
  // Predicated region
  $region26: #{clip_forward.13} parent=0 // pred_check
    _
  $region27: #{clip_forward.13} parent=0 // pred_check_branch
    %167 = sbr.rel (0) target = $region29
  $region28: #{clip_forward.13} parent=0 // pred_region
    _
  $region29: #{clip_forward.13} parent=0 // pred_fallthru
    _

// kernel: clip_forward.16
$region0: #{clip_forward.16}
  #allocation0 [shape = 'u32[]', space=smem, size = 0x4, offset = 0x4, fixed_abs, tag = 'smem constant byte address 0x4 - core index']
  #allocation1 [shape = 'u32[72,128]{1,0:T(1,128)}', space=vmem, size = 0x9000, scoped, tag = 'internal scratch']
  %s0 = inlined_call_operand.vmem [shape: bf16[2,8,384], index: 0, kind: input, shape index: {}, may-alias: {0,1,2}]
  %s1 = inlined_call_operand.vmem [shape: bf16[2,8,384], index: 1, kind: input, shape index: {}, may-alias: {0,1,2}]
  %s2 = inlined_call_operand.vmem [shape: bf16[2,8,384], index: 2, kind: input, shape index: {}, may-alias: {0,1,2}]
  %s3 = inlined_call_operand.vmem [shape: bf16[2,8,128], index: 3, kind: output, shape index: {}]
  %s4 = sld [smem:[#allocation0]]
  $region45: #{clip_forward.16} parent=0
    _
  %s6 = ssub.s32 1, %s4
  %s7 = scalar_select 0, %s6, %s4
  loop: start=0, step=1, limit=4
  $region2: #{clip_forward.16} parent=0 // loop_pre_header
    _
  $region3: #{clip_forward.16} parent=0 // loop_header
    %s9 = sphi 0, %s13
    %p10 = scmp.ge.s32.totalorder %s9, 4
    %s16 = sphi 0, %s28
    %s17 = sphi 0, %s24
    %s18 = sphi 0, %s16
    %s19 = sphi 0, %s17
    %s20 = sphi 0, %s18
    %s21 = sphi 0, %s19
    %s33 = sphi 0, %s35
    %s36 = sphi 0, %s33
    %s37 = sphi 0, %s36
    %s53 = sphi 0, %s37
    %s63 = sphi 0, %s65
    %s66 = sphi 0, %s63
    %s67 = sphi 0, %s66
    %s83 = sphi 0, %s67
    %s93 = sphi 0, %s95
    %s96 = sphi 0, %s93
    %s97 = sphi 0, %s96
    %s113 = sphi 0, %s97
    %s121 = sphi 0, %s123
    %s124 = sphi 0, %s121
    %s125 = sphi 0, %s124
    %s141 = sphi 0, %s125
  $region4: #{clip_forward.16} parent=0 // loop_header_branch
    %12 = sbr.rel (%p10) target = $region8
  $region5: #{clip_forward.16} parent=0 // loop_body
    %s14 = ssub.s32 %s9, 1
    %s15 = ssub.s32 %s9, 2
    %s22 = sadd.s32 1, %s17
    %p23 = scmp.ge.s32.totalorder %s22, 1
    %s24 = scalar_select %p23, 0, %s22
    %s25 = sadd.s32 1, %s16
    %s26 = scalar_select %p23, %s25, %s16
    %p27 = scmp.ge.s32.totalorder %s26, 2
    %s28 = scalar_select %p27, 0, %s26
    %s29 = ssub.s32 %s16, %s28
    %s30 = ssub.s32 %s17, %s24
    %s31 = sor.u32 %s29, %s30
    %p32 = scmp.eq.s32.totalorder %s31, 0
    %s34 = sadd.s32 %s33, 1
    %s35 = scalar_select %p32, %s33, %s34
    %p38 = pneg %p32
    %p39 = scmp.eq.s32.totalorder %s9, 1
    %p40 = por %p38, %p39
    %p41 = scmp.ne.s32.totalorder %s33, %s36
    %p42 = scmp.eq.s32.totalorder %s9, 0
    %p43 = por %p41, %p42
    %p44 = scmp.ne.s32.totalorder %s33, %s36
    %p45 = scmp.eq.s32.totalorder %s14, 1
    %p46 = por %p44, %p45
    %p47 = scmp.ne.s32.totalorder %s36, %s37
    %p48 = scmp.eq.s32.totalorder %s14, 0
    %p49 = por %p47, %p48
    %p50 = scmp.ne.s32.totalorder %s36, %s37
    %p51 = scmp.eq.s32.totalorder %s15, 1
    %p52 = por %p50, %p51
    %p54 = scmp.ne.s32.totalorder %s37, %s53
    %p55 = scmp.eq.s32.totalorder %s15, 0
    %p56 = por %p54, %p55
    %s57 = sadd.s32 %s17, 1
    %s58 = sadd.s32 %s24, 1
    %s59 = ssub.s32 %s16, %s28
    %s60 = ssub.s32 %s57, %s58
    %s61 = sor.u32 %s59, %s60
    %p62 = scmp.eq.s32.totalorder %s61, 0
    %s64 = sadd.s32 %s63, 1
    %s65 = scalar_select %p62, %s63, %s64
    %p68 = pneg %p62
    %p69 = scmp.eq.s32.totalorder %s9, 1
    %p70 = por %p68, %p69
    %p71 = scmp.ne.s32.totalorder %s63, %s66
    %p72 = scmp.eq.s32.totalorder %s9, 0
    %p73 = por %p71, %p72
    %p74 = scmp.ne.s32.totalorder %s63, %s66
    %p75 = scmp.eq.s32.totalorder %s14, 1
    %p76 = por %p74, %p75
    %p77 = scmp.ne.s32.totalorder %s66, %s67
    %p78 = scmp.eq.s32.totalorder %s14, 0
    %p79 = por %p77, %p78
    %p80 = scmp.ne.s32.totalorder %s66, %s67
    %p81 = scmp.eq.s32.totalorder %s15, 1
    %p82 = por %p80, %p81
    %p84 = scmp.ne.s32.totalorder %s67, %s83
    %p85 = scmp.eq.s32.totalorder %s15, 0
    %p86 = por %p84, %p85
    %s87 = sadd.s32 %s17, 2
    %s88 = sadd.s32 %s24, 2
    %s89 = ssub.s32 %s16, %s28
    %s90 = ssub.s32 %s87, %s88
    %s91 = sor.u32 %s89, %s90
    %p92 = scmp.eq.s32.totalorder %s91, 0
    %s94 = sadd.s32 %s93, 1
    %s95 = scalar_select %p92, %s93, %s94
    %p98 = pneg %p92
    %p99 = scmp.eq.s32.totalorder %s9, 1
    %p100 = por %p98, %p99
    %p101 = scmp.ne.s32.totalorder %s93, %s96
    %p102 = scmp.eq.s32.totalorder %s9, 0
    %p103 = por %p101, %p102
    %p104 = scmp.ne.s32.totalorder %s93, %s96
    %p105 = scmp.eq.s32.totalorder %s14, 1
    %p106 = por %p104, %p105
    %p107 = scmp.ne.s32.totalorder %s96, %s97
    %p108 = scmp.eq.s32.totalorder %s14, 0
    %p109 = por %p107, %p108
    %p110 = scmp.ne.s32.totalorder %s96, %s97
    %p111 = scmp.eq.s32.totalorder %s15, 1
    %p112 = por %p110, %p111
    %p114 = scmp.ne.s32.totalorder %s97, %s113
    %p115 = scmp.eq.s32.totalorder %s15, 0
    %p116 = por %p114, %p115
    %s117 = ssub.s32 %s16, %s28
    %s118 = ssub.s32 %s17, %s24
    %s119 = sor.u32 %s117, %s118
    %p120 = scmp.eq.s32.totalorder %s119, 0
    %s122 = sadd.s32 %s121, 1
    %s123 = scalar_select %p120, %s121, %s122
    %p126 = pneg %p120
    %p127 = scmp.eq.s32.totalorder %s9, 1
    %p128 = por %p126, %p127
    %p129 = scmp.ne.s32.totalorder %s121, %s124
    %p130 = scmp.eq.s32.totalorder %s9, 0
    %p131 = por %p129, %p130
    %p132 = scmp.ne.s32.totalorder %s121, %s124
    %p133 = scmp.eq.s32.totalorder %s14, 1
    %p134 = por %p132, %p133
    %p135 = scmp.ne.s32.totalorder %s124, %s125
    %p136 = scmp.eq.s32.totalorder %s14, 0
    %p137 = por %p135, %p136
    %p138 = scmp.ne.s32.totalorder %s124, %s125
    %p139 = scmp.eq.s32.totalorder %s15, 1
    %p140 = por %p138, %p139
    %p142 = scmp.ne.s32.totalorder %s125, %s141
    %p143 = scmp.eq.s32.totalorder %s15, 0
    %p144 = por %p142, %p143
    %p145 = scmp.le.s32.totalorder 1, %s9
    %p146 = scmp.lt.s32.totalorder %s9, 3
    %p147 = pnand %p145, %p146
    %p148 = pneg %p147
    // Predicated region
    $region9: #{clip_forward.16} parent=5 // pred_check
      _
    $region10: #{clip_forward.16} parent=5 // pred_check_branch
      %150 = sbr.rel (%p147) target = $region12
    $region11: #{clip_forward.16} parent=5 // pred_region
      %s151 = ssub.s32 %s9, 1
    $region12: #{clip_forward.16} parent=5 // pred_fallthru
      _
    %p152 = scmp.lt.s32.totalorder %s9, 2
    // Predicated region
    $region13: #{clip_forward.16} parent=5 // pred_check
      %p153 = pneg %p152
    $region14: #{clip_forward.16} parent=5 // pred_check_branch
      %155 = sbr.rel (%p153) target = $region16
    $region15: #{clip_forward.16} parent=5 // pred_region
      // Predicated region
      $region17: #{clip_forward.16} parent=15 // pred_check
        %p156 = pneg %p43
      $region18: #{clip_forward.16} parent=15 // pred_check_branch
        %158 = sbr.rel (%p156) target = $region20
      $region19: #{clip_forward.16} parent=15 // pred_region
        %p159 = scmp.lt.s32.totalorder %s16, 1
        %s160 = scalar_select %p159, %s16, 1
        %p161 = scmp.lt.s32.totalorder %s17, 2
        %s162 = scalar_select %p161, %s17, 2
        %s163 = smul.addr %s160, 3
        %s164 = sadd.s32 %s162, %s163
        %s165 = smul.addr %s164, 4
        %s166 = scalar_lea.vmem %s0, %s165
      $region20: #{clip_forward.16} parent=15 // pred_fallthru
        _
      // Predicated region
      $region21: #{clip_forward.16} parent=15 // pred_check
        %p167 = pneg %p73
      $region22: #{clip_forward.16} parent=15 // pred_check_branch
        %169 = sbr.rel (%p167) target = $region24
      $region23: #{clip_forward.16} parent=15 // pred_region
        %s170 = sadd.s32 %s17, 1
        %p171 = scmp.lt.s32.totalorder %s16, 1
        %s172 = scalar_select %p171, %s16, 1
        %p173 = scmp.lt.s32.totalorder %s170, 2
        %s174 = scalar_select %p173, %s170, 2
        %s175 = smul.addr %s172, 3
        %s176 = sadd.s32 %s174, %s175
        %s177 = smul.addr %s176, 4
        %s178 = scalar_lea.vmem %s1, %s177
        %s179 = sadd.s32 %s17, 1
      $region24: #{clip_forward.16} parent=15 // pred_fallthru
        _
      // Predicated region
      $region25: #{clip_forward.16} parent=15 // pred_check
        %p180 = pneg %p103
      $region26: #{clip_forward.16} parent=15 // pred_check_branch
        %182 = sbr.rel (%p180) target = $region28
      $region27: #{clip_forward.16} parent=15 // pred_region
        %s183 = sadd.s32 %s17, 2
        %p184 = scmp.lt.s32.totalorder %s16, 1
        %s185 = scalar_select %p184, %s16, 1
        %p186 = scmp.lt.s32.totalorder %s183, 2
        %s187 = scalar_select %p186, %s183, 2
        %s188 = smul.addr %s185, 3
        %s189 = sadd.s32 %s187, %s188
        %s190 = smul.addr %s189, 4
        %s191 = scalar_lea.vmem %s2, %s190
        %s192 = sadd.s32 %s17, 2
      $region28: #{clip_forward.16} parent=15 // pred_fallthru
        _
    $region16: #{clip_forward.16} parent=5 // pred_fallthru
      _
    %p193 = scmp.le.s32.totalorder 1, %s9
    %p194 = scmp.lt.s32.totalorder %s9, 3
    %p195 = pnand %p193, %p194
    %p196 = pneg %p195
    // Predicated region
    $region29: #{clip_forward.16} parent=5 // pred_check
      _
    $region30: #{clip_forward.16} parent=5 // pred_check_branch
      %198 = sbr.rel (%p195) target = $region32
    $region31: #{clip_forward.16} parent=5 // pred_region
      %s199 = ssub.s32 %s9, 1
      %p200 = scmp.lt.s32.totalorder %s18, 1
      %s201 = scalar_select %p200, %s18, 1
      %p202 = scmp.lt.s32.totalorder %s19, 2
      %s203 = scalar_select %p202, %s19, 2
      %s204 = smul.addr %s201, 3
      %s205 = sadd.s32 %s203, %s204
      %s206 = smul.addr %s205, 4
      %s207 = scalar_lea.vmem %s0, %s206
      %p208 = pneg %p49
      %p209 = pneg %p46
      %s210 = sadd.s32 %s19, 1
      %p211 = scmp.lt.s32.totalorder %s18, 1
      %s212 = scalar_select %p211, %s18, 1
      %p213 = scmp.lt.s32.totalorder %s210, 2
      %s214 = scalar_select %p213, %s210, 2
      %s215 = smul.addr %s212, 3
      %s216 = sadd.s32 %s214, %s215
      %s217 = smul.addr %s216, 4
      %s218 = scalar_lea.vmem %s1, %s217
      %p219 = pneg %p79
      %p220 = pneg %p76
      %s221 = sadd.s32 %s19, 2
      %p222 = scmp.lt.s32.totalorder %s18, 1
      %s223 = scalar_select %p222, %s18, 1
      %p224 = scmp.lt.s32.totalorder %s221, 2
      %s225 = scalar_select %p224, %s221, 2
      %s226 = smul.addr %s223, 3
      %s227 = sadd.s32 %s225, %s226
      %s228 = smul.addr %s227, 4
      %s229 = scalar_lea.vmem %s2, %s228
      %p230 = pneg %p109
      %p231 = pneg %p106
      %p232 = pneg %p137
      %p233 = pneg %p134
      %p234 = scmp.lt.s32.totalorder %s18, 1
      %s235 = scalar_select %p234, %s18, 1
      %p236 = scmp.lt.s32.totalorder %s19, 0
      %s237 = scalar_select %p236, %s19, 0
      %s238 = sadd.s32 %s237, %s235
      %s239 = smul.addr %s238, 4
      %s240 = scalar_lea.vmem %s3, %s239
      %p241 = scmp.lt.s32.totalorder %s18, 1
      %s242 = scalar_select %p241, %s18, 1
      %p243 = scmp.lt.s32.totalorder %s19, 2
      %s244 = scalar_select %p243, %s19, 2
      %s245 = smul.addr %s242, 3
      %s246 = sadd.s32 %s244, %s245
      %s247 = smul.addr %s246, 4
      %s248 = scalar_lea.vmem %s0, %s247
      %s249 = sadd.s32 %s19, 1
      %p250 = scmp.lt.s32.totalorder %s18, 1
      %s251 = scalar_select %p250, %s18, 1
      %p252 = scmp.lt.s32.totalorder %s249, 2
      %s253 = scalar_select %p252, %s249, 2
      %s254 = smul.addr %s251, 3
      %s255 = sadd.s32 %s253, %s254
      %s256 = smul.addr %s255, 4
      %s257 = scalar_lea.vmem %s1, %s256
      %s258 = sadd.s32 %s19, 1
      %s259 = sadd.s32 %s19, 2
      %p260 = scmp.lt.s32.totalorder %s18, 1
      %s261 = scalar_select %p260, %s18, 1
      %p262 = scmp.lt.s32.totalorder %s259, 2
      %s263 = scalar_select %p262, %s259, 2
      %s264 = smul.addr %s261, 3
      %s265 = sadd.s32 %s263, %s264
      %s266 = smul.addr %s265, 4
      %s267 = scalar_lea.vmem %s2, %s266
      %s268 = sadd.s32 %s19, 2
      %p269 = scmp.lt.s32.totalorder %s18, 1
      %s270 = scalar_select %p269, %s18, 1
      %p271 = scmp.lt.s32.totalorder %s19, 0
      %s272 = scalar_select %p271, %s19, 0
      %s273 = sadd.s32 %s272, %s270
      %s274 = smul.addr %s273, 4
      %s275 = scalar_lea.vmem %s3, %s274
      %v277 = vld [vmem:[%s248] sm:$0xf]
      %v278 = vld [vmem:[%s257] sm:$0xf]
      %v279 = vld [vmem:[%s267] sm:$0xf]
      %v280 = vlaneseq
      %v281 = vand.u32 %v280, 127
      %vm282 = vcmp.lt.s32.totalorder %v281, 5
      %v283 = vsel %vm282, 0.0, -1e+30
      %vm284 = vcmask 261120
      %v286 = vsel %vm284, %v277, 0
      %v289 = vsel %vm284, %v278, 0
      %291 = vmatpush.bf16.xpose.msra.mxu0 0
      %292 = vmatpush.bf16.xpose.msra.mxu0 0
      %293 = vmatpush.bf16.xpose.msra.mxu0 0
      %294 = vmatpush.bf16.xpose.msra.mxu0 0
      %295 = vmatpush.bf16.xpose.msra.mxu0 0
      %296 = vmatpush.bf16.xpose.msra.mxu0 0
      %297 = vmatpush.bf16.xpose.msra.mxu0 0
      %298 = vmatpush.bf16.xpose.msra.mxu0 %v289
      %299 = vmatmul.bf16.gmra.mxu0 %v286
      %v300 = vpop.f32.mrf.mxu0
      %v301 = vadd.f32 %v283, %v300
      %v302 = vpop.f32.mrf.mxu0
      %303 = vdwg.mxu0
      %vm304 = vcmask 64512
      %v305 = vsel %vm304, %v301, -inf
      %306 = vmax.xlane.f32.xlu0 %v305
      %v307 = vpop.xlane.xlu0 %306
      %v308 = vsub.f32 %v301, %v307
      %v309 = vmul.f32 %v308, 1.442695
      %v310 = vpow.pop %v309
      %v311 = vsel %vm304, %v310, 0.0
      %312 = vadd.xlane.f32.xlu0 %v311
      %v313 = vpop.xlane.xlu0 %312
      %v314 = vrcp.pop %v313
      %v315 = vpack.c.bf16 %v310, %v310
      %v317 = vsel %vm304, %v315, 0
      %vm319 = vcmask 1043456
      %v321 = vsel %vm319, %v279, 0
      %323 = vmatpush.bf16.msra.mxu0 0
      %324 = vmatpush.bf16.msra.mxu0 0
      %325 = vmatpush.bf16.msra.mxu0 0
      %326 = vmatpush.bf16.msra.mxu0 0
      %327 = vmatpush.bf16.msra.mxu0 0
      %328 = vmatpush.bf16.msra.mxu0 0
      %329 = vmatpush.bf16.msra.mxu0 0
      %330 = vmatpush.bf16.msra.mxu0 %v321
      %331 = vmatmul.bf16.gmra.mxu0 %v317
      %v332 = vpop.f32.mrf.mxu0
      %v333 = vadd.f32 0.0, %v332
      %v334 = vpop.f32.mrf.mxu0
      %335 = vdwg.mxu0
      %v336 = vmul.f32 %v333, %v314
      %v338 = vunpack.c.l.b16 %v277
      %v339 = vpack.c.b16 %v338, %v338
      %340 = vrot.lane.b32.xlu0 %v339, 96
      %v341 = vpop.permute.xlu0 %340
      %v343 = vunpack.c.l.b16 %v278
      %v344 = vpack.c.b16 %v343, %v343
      %345 = vrot.lane.b32.xlu0 %v344, 96
      %v346 = vpop.permute.xlu0 %345
      %v348 = vsel %vm284, %v341, 0
      %v351 = vsel %vm284, %v346, 0
      %353 = vmatpush.bf16.xpose.msra.mxu0 0
      %354 = vmatpush.bf16.xpose.msra.mxu0 0
      %355 = vmatpush.bf16.xpose.msra.mxu0 0
      %356 = vmatpush.bf16.xpose.msra.mxu0 0
      %357 = vmatpush.bf16.xpose.msra.mxu0 0
      %358 = vmatpush.bf16.xpose.msra.mxu0 0
      %359 = vmatpush.bf16.xpose.msra.mxu0 0
      %360 = vmatpush.bf16.xpose.msra.mxu0 %v351
      %361 = vmatmul.bf16.gmra.mxu0 %v348
      %v362 = vpop.f32.mrf.mxu0
      %v363 = vadd.f32 %v283, %v362
      %v364 = vpop.f32.mrf.mxu0
      %365 = vdwg.mxu0
      %v366 = vsel %vm304, %v363, -inf
      %367 = vmax.xlane.f32.xlu0 %v366
      %v368 = vpop.xlane.xlu0 %367
      %v369 = vsub.f32 %v363, %v368
      %v370 = vmul.f32 %v369, 1.442695
      %v371 = vpow.pop %v370
      %v372 = vsel %vm304, %v371, 0.0
      %373 = vadd.xlane.f32.xlu0 %v372
      %v374 = vpop.xlane.xlu0 %373
      %v375 = vrcp.pop %v374
      %v376 = vpack.c.bf16 %v371, %v371
      %v378 = vunpack.c.l.b16 %v279
      %v379 = vpack.c.b16 %v378, %v378
      %380 = vrot.lane.b32.xlu0 %v379, 96
      %v381 = vpop.permute.xlu0 %380
      %v383 = vsel %vm304, %v376, 0
      %v386 = vsel %vm319, %v381, 0
      %388 = vmatpush.bf16.msra.mxu0 0
      %389 = vmatpush.bf16.msra.mxu0 0
      %390 = vmatpush.bf16.msra.mxu0 0
      %391 = vmatpush.bf16.msra.mxu0 0
      %392 = vmatpush.bf16.msra.mxu0 0
      %393 = vmatpush.bf16.msra.mxu0 0
      %394 = vmatpush.bf16.msra.mxu0 0
      %395 = vmatpush.bf16.msra.mxu0 %v386
      %396 = vmatmul.bf16.gmra.mxu0 %v383
      %v397 = vpop.f32.mrf.mxu0
      %v398 = vadd.f32 0.0, %v397
      %v399 = vpop.f32.mrf.mxu0
      %400 = vdwg.mxu0
      %v401 = vmul.f32 %v398, %v375
      %402 = vrot.lane.b32.xlu0 %v339, 64
      %v403 = vpop.permute.xlu0 %402
      %404 = vrot.lane.b32.xlu0 %v344, 64
      %v405 = vpop.permute.xlu0 %404
      %v407 = vsel %vm284, %v403, 0
      %v410 = vsel %vm284, %v405, 0
      %412 = vmatpush.bf16.xpose.msra.mxu0 0
      %413 = vmatpush.bf16.xpose.msra.mxu0 0
      %414 = vmatpush.bf16.xpose.msra.mxu0 0
      %415 = vmatpush.bf16.xpose.msra.mxu0 0
      %416 = vmatpush.bf16.xpose.msra.mxu0 0
      %417 = vmatpush.bf16.xpose.msra.mxu0 0
      %418 = vmatpush.bf16.xpose.msra.mxu0 0
      %419 = vmatpush.bf16.xpose.msra.mxu0 %v410
      %420 = vmatmul.bf16.gmra.mxu0 %v407
      %v421 = vpop.f32.mrf.mxu0
      %v422 = vadd.f32 %v283, %v421
      %v423 = vpop.f32.mrf.mxu0
      %424 = vdwg.mxu0
      %v425 = vsel %vm304, %v422, -inf
      %426 = vmax.xlane.f32.xlu0 %v425
      %v427 = vpop.xlane.xlu0 %426
      %v428 = vsub.f32 %v422, %v427
      %v429 = vmul.f32 %v428, 1.442695
      %v430 = vpow.pop %v429
      %v431 = vsel %vm304, %v430, 0.0
      %432 = vadd.xlane.f32.xlu0 %v431
      %v433 = vpop.xlane.xlu0 %432
      %v434 = vrcp.pop %v433
      %v435 = vpack.c.bf16 %v430, %v430
      %436 = vrot.lane.b32.xlu0 %v379, 64
      %v437 = vpop.permute.xlu0 %436
      %v439 = vsel %vm304, %v435, 0
      %v442 = vsel %vm319, %v437, 0
      %444 = vmatpush.bf16.msra.mxu0 0
      %445 = vmatpush.bf16.msra.mxu0 0
      %446 = vmatpush.bf16.msra.mxu0 0
      %447 = vmatpush.bf16.msra.mxu0 0
      %448 = vmatpush.bf16.msra.mxu0 0
      %449 = vmatpush.bf16.msra.mxu0 0
      %450 = vmatpush.bf16.msra.mxu0 0
      %451 = vmatpush.bf16.msra.mxu0 %v442
      %452 = vmatmul.bf16.gmra.mxu0 %v439
      %v453 = vpop.f32.mrf.mxu0
      %v454 = vadd.f32 0.0, %v453
      %v455 = vpop.f32.mrf.mxu0
      %456 = vdwg.mxu0
      %v457 = vmul.f32 %v454, %v434
      %458 = vrot.lane.b32.xlu0 %v339, 32
      %v459 = vpop.permute.xlu0 %458
      %460 = vrot.lane.b32.xlu0 %v344, 32
      %v461 = vpop.permute.xlu0 %460
      %v463 = vsel %vm284, %v459, 0
      %v466 = vsel %vm284, %v461, 0
      %468 = vmatpush.bf16.xpose.msra.mxu0 0
      %469 = vmatpush.bf16.xpose.msra.mxu0 0
      %470 = vmatpush.bf16.xpose.msra.mxu0 0
      %471 = vmatpush.bf16.xpose.msra.mxu0 0
      %472 = vmatpush.bf16.xpose.msra.mxu0 0
      %473 = vmatpush.bf16.xpose.msra.mxu0 0
      %474 = vmatpush.bf16.xpose.msra.mxu0 0
      %475 = vmatpush.bf16.xpose.msra.mxu0 %v466
      %476 = vmatmul.bf16.gmra.mxu0 %v463
      %v477 = vpop.f32.mrf.mxu0
      %v478 = vadd.f32 %v283, %v477
      %v479 = vpop.f32.mrf.mxu0
      %480 = vdwg.mxu0
      %v481 = vsel %vm304, %v478, -inf
      %482 = vmax.xlane.f32.xlu0 %v481
      %v483 = vpop.xlane.xlu0 %482
      %v484 = vsub.f32 %v478, %v483
      %v485 = vmul.f32 %v484, 1.442695
      %v486 = vpow.pop %v485
      %v487 = vsel %vm304, %v486, 0.0
      %488 = vadd.xlane.f32.xlu0 %v487
      %v489 = vpop.xlane.xlu0 %488
      %v490 = vrcp.pop %v489
      %v491 = vpack.c.bf16 %v486, %v486
      %492 = vrot.lane.b32.xlu0 %v379, 32
      %v493 = vpop.permute.xlu0 %492
      %v495 = vsel %vm304, %v491, 0
      %v498 = vsel %vm319, %v493, 0
      %500 = vmatpush.bf16.msra.mxu0 0
      %501 = vmatpush.bf16.msra.mxu0 0
      %502 = vmatpush.bf16.msra.mxu0 0
      %503 = vmatpush.bf16.msra.mxu0 0
      %504 = vmatpush.bf16.msra.mxu0 0
      %505 = vmatpush.bf16.msra.mxu0 0
      %506 = vmatpush.bf16.msra.mxu0 0
      %507 = vmatpush.bf16.msra.mxu0 %v498
      %508 = vmatmul.bf16.gmra.mxu0 %v495
      %v509 = vpop.f32.mrf.mxu0
      %v510 = vadd.f32 0.0, %v509
      %v511 = vpop.f32.mrf.mxu0
      %512 = vdwg.mxu0
      %v513 = vmul.f32 %v510, %v490
      %515 = vrot.lane.b32.xlu0 %v401, 32
      %v516 = vpop.permute.xlu0 %515
      %519 = vrot.lane.b32.xlu0 %v457, 64
      %v520 = vpop.permute.xlu0 %519
      %523 = vrot.lane.b32.xlu0 %v513, 96
      %v524 = vpop.permute.xlu0 %523
      %v526 = vsel %vm284, %v336, %v516
      %vm527 = vcmask 523264
      %v528 = vsel %vm527, %v526, %v520
      %vm529 = vcmask 785408
      %v530 = vsel %vm529, %v528, %v524
      %v531 = vpack.c.bf16 %v530, %v530
      %532 = vst [vmem:[%s275] sm:$0xf] %v531
      %p533 = scmp.lt.s32.totalorder %s18, 1
      %s534 = scalar_select %p533, %s18, 1
      %p535 = scmp.lt.s32.totalorder %s19, 0
      %s536 = scalar_select %p535, %s19, 0
      %s537 = sadd.s32 %s536, %s534
      %s538 = smul.addr %s537, 4
      %s539 = scalar_lea.vmem %s3, %s538
      // Predicated region
      $region33: #{clip_forward.16} parent=31 // pred_check
        %p540 = pneg %p134
      $region34: #{clip_forward.16} parent=31 // pred_check_branch
        %542 = sbr.rel (%p540) target = $region36
      $region35: #{clip_forward.16} parent=31 // pred_region
        _
      $region36: #{clip_forward.16} parent=31 // pred_fallthru
        _
    $region32: #{clip_forward.16} parent=5 // pred_fallthru
      _
    %p543 = scmp.le.s32.totalorder 2, %s9
    // Predicated region
    $region37: #{clip_forward.16} parent=5 // pred_check
      %p544 = pneg %p543
    $region38: #{clip_forward.16} parent=5 // pred_check_branch
      %546 = sbr.rel (%p544) target = $region40
    $region39: #{clip_forward.16} parent=5 // pred_region
      %s547 = ssub.s32 %s9, 2
      // Predicated region
      $region41: #{clip_forward.16} parent=39 // pred_check
        %p548 = pneg %p140
      $region42: #{clip_forward.16} parent=39 // pred_check_branch
        %550 = sbr.rel (%p548) target = $region44
      $region43: #{clip_forward.16} parent=39 // pred_region
        %p551 = scmp.lt.s32.totalorder %s20, 1
        %s552 = scalar_select %p551, %s20, 1
        %p553 = scmp.lt.s32.totalorder %s21, 0
        %s554 = scalar_select %p553, %s21, 0
        %s555 = sadd.s32 %s554, %s552
        %s556 = smul.addr %s555, 4
        %s557 = scalar_lea.vmem %s3, %s556
      $region44: #{clip_forward.16} parent=39 // pred_fallthru
        _
    $region40: #{clip_forward.16} parent=5 // pred_fallthru
      _
  $region6: #{clip_forward.16} parent=0 // loop_footer
    %s13 = sadd.s32 1, %s9
  $region7: #{clip_forward.16} parent=0 // loop_footer_branch
    %8 = sbr.rel target = $region3
  $region8: #{clip_forward.16} parent=0 // loop_exit
    _

// kernel: clip_forward.15
$region0: #{clip_forward.15}
  #allocation0 [shape = 'u32[]', space=smem, size = 0x4, offset = 0x4, fixed_abs, tag = 'smem constant byte address 0x4 - core index']
  #allocation1 [shape = 'u32[72,128]{1,0:T(1,128)}', space=vmem, size = 0x9000, scoped, tag = 'internal scratch']
  #allocation2 [shape = 'f32[16,384]{1,0:T(8,128)}', space=vmem, size = 0x6000, scoped, tag = 'scratch operand']
  #allocation3 [shape = 'bf16[16,128]{1,0:T(8,128)(2,1)}', space=vmem, size = 0x1000, scoped, tag = 'scratch operand']
  %s0 = inlined_call_operand.vmem [shape: bf16[16,128], index: 0, kind: input, shape index: {}]
  %s1 = inlined_call_operand.hbm [shape: bf16[128,384], index: 1, kind: input, shape index: {}]
  %s2 = inlined_call_operand.vmem [shape: f32[1,384], index: 2, kind: input, shape index: {}]
  %s3 = inlined_call_operand.vmem [shape: f32[1,128], index: 3, kind: input, shape index: {}]
  %s4 = inlined_call_operand.vmem [shape: f32[1,128], index: 4, kind: input, shape index: {}]
  %s5 = inlined_call_operand.vmem [shape: bf16[16,384], index: 5, kind: output, shape index: {}]
  %s6 = sld [smem:[#allocation0]]
  $region46: #{clip_forward.15} parent=0
    _
  %s8 = ssub.s32 1, %s6
  %s9 = scalar_select 0, %s8, %s6
  $region1: #{clip_forward.15} parent=0
    #allocation4 [shape = 'u8[98304]{0}', space=vmem, size = 0x18000, scoped, tag = 'input window, operand 1, single buffered']
    #allocation5 [shape = 's32[1]{0}', space=sflag, size = 0x4, scoped, tag = 'scoped memory for clip_forward.15']
    %10 = vsyncpa [#allocation5], 0
    // Predicated region
    $region2: #{clip_forward.15} parent=1 // pred_check
      _
    $region3: #{clip_forward.15} parent=1 // pred_check_branch
      %12 = sbr.rel (0) target = $region5
    $region4: #{clip_forward.15} parent=1 // pred_region
      _
    $region5: #{clip_forward.15} parent=1 // pred_fallthru
      _
    // Predicated region
    $region6: #{clip_forward.15} parent=1 // pred_check
      _
    $region7: #{clip_forward.15} parent=1 // pred_check_branch
      %14 = sbr.rel (0) target = $region9
    $region8: #{clip_forward.15} parent=1 // pred_region
      %16 = vsyncadd [#allocation5], 0
      %s17 = sshll.u32 %s1, 4
      %s18 = int_to_ptr.hbm [resolvable:$true] %s17
      %s19 = sshll.u32 [#allocation4], 4
      %s20 = int_to_ptr.vmem [resolvable:$true] %s19
      %25 = dma.hbm_to_vmem [thread:$0]  %s18, 3072, %s20, [#allocation5], 192, 192, 12
    $region9: #{clip_forward.15} parent=1 // pred_fallthru
      _
    // Predicated region
    $region10: #{clip_forward.15} parent=1 // pred_check
      _
    $region11: #{clip_forward.15} parent=1 // pred_check_branch
      %27 = sbr.rel (0) target = $region13
    $region12: #{clip_forward.15} parent=1 // pred_region
      _
    $region13: #{clip_forward.15} parent=1 // pred_fallthru
      _
    // Predicated region
    $region14: #{clip_forward.15} parent=1 // pred_check
      _
    $region15: #{clip_forward.15} parent=1 // pred_check_branch
      %29 = sbr.rel (0) target = $region17
    $region16: #{clip_forward.15} parent=1 // pred_region
      _
    $region17: #{clip_forward.15} parent=1 // pred_fallthru
      _
    // Predicated region
    $region18: #{clip_forward.15} parent=1 // pred_check
      _
    $region19: #{clip_forward.15} parent=1 // pred_check_branch
      %31 = sbr.rel (0) target = $region21
    $region20: #{clip_forward.15} parent=1 // pred_region
      _
    $region21: #{clip_forward.15} parent=1 // pred_fallthru
      _
    // Predicated region
    $region22: #{clip_forward.15} parent=1 // pred_check
      _
    $region23: #{clip_forward.15} parent=1 // pred_check_branch
      %33 = sbr.rel (0) target = $region25
    $region24: #{clip_forward.15} parent=1 // pred_region
      %35 = dma.done [#allocation5], 3072
    $region25: #{clip_forward.15} parent=1 // pred_fallthru
      _
    %p36 = scmp.eq.s32.totalorder 0, 0
    // Predicated region
    $region26: #{clip_forward.15} parent=1 // pred_check
      %p37 = pneg %p36
    $region27: #{clip_forward.15} parent=1 // pred_check_branch
      %39 = sbr.rel (%p37) target = $region29
    $region28: #{clip_forward.15} parent=1 // pred_region
      %40 = vst [vmem:[#allocation2] sm:$0xff] 0.0
      %41 = vst [vmem:[#allocation2 + $0x8] sm:$0xff] 0.0
      %42 = vst [vmem:[#allocation2 + $0x10] sm:$0xff] 0.0
      %43 = vst [vmem:[#allocation2 + $0x18] sm:$0xff] 0.0
      %44 = vst [vmem:[#allocation2 + $0x20] sm:$0xff] 0.0
      %45 = vst [vmem:[#allocation2 + $0x28] sm:$0xff] 0.0
    $region29: #{clip_forward.15} parent=1 // pred_fallthru
      _
    %p46 = scmp.eq.s32.totalorder 0, 0
    // Predicated region
    $region30: #{clip_forward.15} parent=1 // pred_check
      %p47 = pneg %p46
    $region31: #{clip_forward.15} parent=1 // pred_check_branch
      %49 = sbr.rel (%p47) target = $region33
    $region32: #{clip_forward.15} parent=1 // pred_region
      %v50 = vld [vmem:[%s0] sm:$0xf]
      %v51 = vld [vmem:[%s0 + $0x4] sm:$0xf]
      %v52 = vunpack.c.l.bf16 %v50
      %v53 = vunpack.c.l.bf16 %v51
      %54 = vadd.xlane.f32.xlu0 %v52
      %v55 = vpop.xlane.xlu0 %54
      %56 = vadd.xlane.f32.xlu0 %v53
      %v57 = vpop.xlane.xlu0 %56
      %v58 = vrcp.pop 128.0
      %v59 = vmul.f32 128.0, %v58
      %v60 = vsub.f32 1.0, %v59
      %v61 = vmul.f32 %v58, %v60
      %v62 = vadd.f32 %v58, %v61
      %vm63 = vweird.f32 %v58
      %v64 = vsel %vm63, %v58, %v62
      %v65 = vmul.f32 %v55, %v64
      %v66 = vmul.f32 %v57, %v64
      %v67 = vsub.f32 %v52, %v65
      %v68 = vsub.f32 %v53, %v66
      %v69 = vmul.f32 %v67, %v67
      %v70 = vmul.f32 %v68, %v68
      %71 = vadd.xlane.f32.xlu0 %v69
      %v72 = vpop.xlane.xlu0 %71
      %73 = vadd.xlane.f32.xlu0 %v70
      %v74 = vpop.xlane.xlu0 %73
      %v75 = vmul.f32 %v72, %v64
      %v76 = vmul.f32 %v74, %v64
      %v77 = vadd.f32 %v75, 1e-05
      %v78 = vadd.f32 %v76, 1e-05
      %v79 = vrsqrt.pop %v77
      %v80 = vmul.f32 %v79, %v77
      %v81 = vmul.f32 %v80, %v79
      %v82 = vmul.f32 0.5, %v81
      %v83 = vsub.f32 1.5, %v82
      %v84 = vmul.f32 %v79, %v83
      %vm85 = vweird.f32 %v77
      %vm86 = vweird.f32 %v79
      %vm87 = vmor %vm85, %vm86
      %v88 = vsel %vm87, %v79, %v84
      %v89 = vrsqrt.pop %v78
      %v90 = vmul.f32 %v89, %v78
      %v91 = vmul.f32 %v90, %v89
      %v92 = vmul.f32 0.5, %v91
      %v93 = vsub.f32 1.5, %v92
      %v94 = vmul.f32 %v89, %v93
      %vm95 = vweird.f32 %v78
      %vm96 = vweird.f32 %v89
      %vm97 = vmor %vm95, %vm96
      %v98 = vsel %vm97, %v89, %v94
      %v99 = vmul.f32 %v67, %v88
      %v100 = vmul.f32 %v68, %v98
      %v101 = vld [vmem:[%s3] sm:$0x1]
      %v103 = vperm.slane %v101, 0
      %v105 = vmul.f32 %v99, %v103
      %v106 = vmul.f32 %v100, %v103
      %v107 = vld [vmem:[%s4] sm:$0x1]
      %v109 = vperm.slane %v107, 0
      %v111 = vadd.f32 %v105, %v109
      %v112 = vadd.f32 %v106, %v109
      %v113 = vpack.c.bf16 %v111, %v111
      %v114 = vpack.c.bf16 %v112, %v112
      %115 = vst [vmem:[#allocation3] sm:$0xf] %v113
      %116 = vst [vmem:[#allocation3 + $0x4] sm:$0xf] %v114
    $region33: #{clip_forward.15} parent=1 // pred_fallthru
      _
    %v117 = vld [vmem:[#allocation3] sm:$0xf]
    %v118 = vld [vmem:[#allocation3 + $0x4] sm:$0xf]
    %v119 = vld [vmem:[#allocation2] sm:$0xff]
    %v120 = vld [vmem:[#allocation2 + $0x8] sm:$0xff]
    %v121 = vld [vmem:[#allocation2 + $0x10] sm:$0xff]
    %v122 = vld [vmem:[#allocation2 + $0x18] sm:$0xff]
    %v123 = vld [vmem:[#allocation2 + $0x20] sm:$0xff]
    %v124 = vld [vmem:[#allocation2 + $0x28] sm:$0xff]
    %v125 = vld [vmem:[#allocation4] sm:$0xff]
    %v126 = vld [vmem:[#allocation4 + $0x8] sm:$0xf]
    %v127 = vld [vmem:[#allocation4 + $0xc] sm:$0xff]
    %v128 = vld [vmem:[#allocation4 + $0x14] sm:$0xf]
    %v129 = vld [vmem:[#allocation4 + $0x18] sm:$0xff]
    %v130 = vld [vmem:[#allocation4 + $0x20] sm:$0xf]
    %v131 = vld [vmem:[#allocation4 + $0x24] sm:$0xff]
    %v132 = vld [vmem:[#allocation4 + $0x2c] sm:$0xf]
    %v133 = vld [vmem:[#allocation4 + $0x30] sm:$0xff]
    %v134 = vld [vmem:[#allocation4 + $0x38] sm:$0xf]
    %v135 = vld [vmem:[#allocation4 + $0x3c] sm:$0xff]
    %v136 = vld [vmem:[#allocation4 + $0x44] sm:$0xf]
    %v137 = vld [vmem:[#allocation4 + $0x48] sm:$0xff]
    %v138 = vld [vmem:[#allocation4 + $0x50] sm:$0xf]
    %v139 = vld [vmem:[#allocation4 + $0x54] sm:$0xff]
    %v140 = vld [vmem:[#allocation4 + $0x5c] sm:$0xf]
    %v141 = vld [vmem:[#allocation4 + $0x60] sm:$0xff]
    %v142 = vld [vmem:[#allocation4 + $0x68] sm:$0xf]
    %v143 = vld [vmem:[#allocation4 + $0x6c] sm:$0xff]
    %v144 = vld [vmem:[#allocation4 + $0x74] sm:$0xf]
    %v145 = vld [vmem:[#allocation4 + $0x78] sm:$0xff]
    %v146 = vld [vmem:[#allocation4 + $0x80] sm:$0xf]
    %v147 = vld [vmem:[#allocation4 + $0x84] sm:$0xff]
    %v148 = vld [vmem:[#allocation4 + $0x8c] sm:$0xf]
    %v149 = vld [vmem:[#allocation4 + $0x90] sm:$0xff]
    %v150 = vld [vmem:[#allocation4 + $0x98] sm:$0xf]
    %v151 = vld [vmem:[#allocation4 + $0x9c] sm:$0xff]
    %v152 = vld [vmem:[#allocation4 + $0xa4] sm:$0xf]
    %v153 = vld [vmem:[#allocation4 + $0xa8] sm:$0xff]
    %v154 = vld [vmem:[#allocation4 + $0xb0] sm:$0xf]
    %v155 = vld [vmem:[#allocation4 + $0xb4] sm:$0xff]
    %v156 = vld [vmem:[#allocation4 + $0xbc] sm:$0xf]
    %v159 = vunpack.c.l.b16 %v117
    %v160 = vunpack.c.l.b16 %v118
    %v161 = vpack.c.b16 %v160, %v159
    %v195 = vunpack.c.l.b16 %v125
    %v196 = vunpack.c.h.b16 %v125
    %v197 = vunpack.c.l.b16 %v126
    %v198 = vunpack.c.l.b16 %v127
    %v199 = vunpack.c.h.b16 %v127
    %v200 = vunpack.c.l.b16 %v128
    %v201 = vunpack.c.l.b16 %v129
    %v202 = vunpack.c.h.b16 %v129
    %v203 = vunpack.c.l.b16 %v130
    %v204 = vunpack.c.l.b16 %v131
    %v205 = vunpack.c.h.b16 %v131
    %v206 = vunpack.c.l.b16 %v132
    %v207 = vunpack.c.l.b16 %v133
    %v208 = vunpack.c.h.b16 %v133
    %v209 = vunpack.c.l.b16 %v134
    %v210 = vunpack.c.l.b16 %v135
    %v211 = vunpack.c.h.b16 %v135
    %v212 = vunpack.c.l.b16 %v136
    %v213 = vunpack.c.l.b16 %v137
    %v214 = vunpack.c.h.b16 %v137
    %v215 = vunpack.c.l.b16 %v138
    %v216 = vunpack.c.l.b16 %v139
    %v217 = vunpack.c.h.b16 %v139
    %v218 = vunpack.c.l.b16 %v140
    %v219 = vunpack.c.l.b16 %v141
    %v220 = vunpack.c.h.b16 %v141
    %v221 = vunpack.c.l.b16 %v142
    %v222 = vunpack.c.l.b16 %v143
    %v223 = vunpack.c.h.b16 %v143
    %v224 = vunpack.c.l.b16 %v144
    %v225 = vunpack.c.l.b16 %v145
    %v226 = vunpack.c.h.b16 %v145
    %v227 = vunpack.c.l.b16 %v146
    %v228 = vunpack.c.l.b16 %v147
    %v229 = vunpack.c.h.b16 %v147
    %v230 = vunpack.c.l.b16 %v148
    %v231 = vunpack.c.l.b16 %v149
    %v232 = vunpack.c.h.b16 %v149
    %v233 = vunpack.c.l.b16 %v150
    %v234 = vunpack.c.l.b16 %v151
    %v235 = vunpack.c.h.b16 %v151
    %v236 = vunpack.c.l.b16 %v152
    %v237 = vunpack.c.l.b16 %v153
    %v238 = vunpack.c.h.b16 %v153
    %v239 = vunpack.c.l.b16 %v154
    %v240 = vunpack.c.l.b16 %v155
    %v241 = vunpack.c.h.b16 %v155
    %v242 = vunpack.c.l.b16 %v156
    %v243 = vpack.c.b16 %v198, %v195
    %v244 = vpack.c.b16 %v199, %v196
    %v245 = vpack.c.b16 %v200, %v197
    %v246 = vpack.c.b16 %v204, %v201
    %v247 = vpack.c.b16 %v205, %v202
    %v248 = vpack.c.b16 %v206, %v203
    %v249 = vpack.c.b16 %v210, %v207
    %v250 = vpack.c.b16 %v211, %v208
    %v251 = vpack.c.b16 %v212, %v209
    %v252 = vpack.c.b16 %v216, %v213
    %v253 = vpack.c.b16 %v217, %v214
    %v254 = vpack.c.b16 %v218, %v215
    %v255 = vpack.c.b16 %v222, %v219
    %v256 = vpack.c.b16 %v223, %v220
    %v257 = vpack.c.b16 %v224, %v221
    %v258 = vpack.c.b16 %v228, %v225
    %v259 = vpack.c.b16 %v229, %v226
    %v260 = vpack.c.b16 %v230, %v227
    %v261 = vpack.c.b16 %v234, %v231
    %v262 = vpack.c.b16 %v235, %v232
    %v263 = vpack.c.b16 %v236, %v233
    %v264 = vpack.c.b16 %v240, %v237
    %v265 = vpack.c.b16 %v241, %v238
    %v266 = vpack.c.b16 %v242, %v239
    %291 = vmatpush.bf16.msra.mxu0 %v264
    %292 = vmatpush.bf16.msra.mxu0 %v261
    %293 = vmatpush.bf16.msra.mxu0 %v258
    %294 = vmatpush.bf16.msra.mxu0 %v255
    %295 = vmatpush.bf16.msra.mxu0 %v252
    %296 = vmatpush.bf16.msra.mxu0 %v249
    %297 = vmatpush.bf16.msra.mxu0 %v246
    %298 = vmatpush.bf16.msra.mxu0 %v243
    %299 = vmatmul.bf16.gmra.mxu0 %v161
    %v300 = vpop.f32.mrf.mxu0
    %v301 = vadd.f32 0.0, %v300
    %v302 = vpop.f32.mrf.mxu0
    %v303 = vadd.f32 0.0, %v302
    %304 = vdwg.mxu0
    %305 = vmatpush.bf16.msra.mxu0 %v265
    %306 = vmatpush.bf16.msra.mxu0 %v262
    %307 = vmatpush.bf16.msra.mxu0 %v259
    %308 = vmatpush.bf16.msra.mxu0 %v256
    %309 = vmatpush.bf16.msra.mxu0 %v253
    %310 = vmatpush.bf16.msra.mxu0 %v250
    %311 = vmatpush.bf16.msra.mxu0 %v247
    %312 = vmatpush.bf16.msra.mxu0 %v244
    %313 = vmatmul.bf16.gmra.mxu0 %v161
    %v314 = vpop.f32.mrf.mxu0
    %v315 = vadd.f32 0.0, %v314
    %v316 = vpop.f32.mrf.mxu0
    %v317 = vadd.f32 0.0, %v316
    %318 = vdwg.mxu0
    %319 = vmatpush.bf16.msra.mxu0 %v266
    %320 = vmatpush.bf16.msra.mxu0 %v263
    %321 = vmatpush.bf16.msra.mxu0 %v260
    %322 = vmatpush.bf16.msra.mxu0 %v257
    %323 = vmatpush.bf16.msra.mxu0 %v254
    %324 = vmatpush.bf16.msra.mxu0 %v251
    %325 = vmatpush.bf16.msra.mxu0 %v248
    %326 = vmatpush.bf16.msra.mxu0 %v245
    %327 = vmatmul.bf16.gmra.mxu0 %v161
    %v328 = vpop.f32.mrf.mxu0
    %v329 = vadd.f32 0.0, %v328
    %v330 = vpop.f32.mrf.mxu0
    %v331 = vadd.f32 0.0, %v330
    %332 = vdwg.mxu0
    %v333 = vadd.f32 %v119, %v301
    %v334 = vadd.f32 %v120, %v315
    %v335 = vadd.f32 %v121, %v329
    %v336 = vadd.f32 %v122, %v303
    %v337 = vadd.f32 %v123, %v317
    %v338 = vadd.f32 %v124, %v331
    %339 = vst [vmem:[#allocation2] sm:$0xff] %v333
    %340 = vst [vmem:[#allocation2 + $0x8] sm:$0xff] %v334
    %341 = vst [vmem:[#allocation2 + $0x10] sm:$0xff] %v335
    %342 = vst [vmem:[#allocation2 + $0x18] sm:$0xff] %v336
    %343 = vst [vmem:[#allocation2 + $0x20] sm:$0xff] %v337
    %344 = vst [vmem:[#allocation2 + $0x28] sm:$0xff] %v338
    // Predicated region
    $region34: #{clip_forward.15} parent=1 // pred_check
      %p345 = pneg %p36
    $region35: #{clip_forward.15} parent=1 // pred_check_branch
      %347 = sbr.rel (%p345) target = $region37
    $region36: #{clip_forward.15} parent=1 // pred_region
      %v348 = vld [vmem:[#allocation2] sm:$0xff]
      %v349 = vld [vmem:[#allocation2 + $0x8] sm:$0xff]
      %v350 = vld [vmem:[#allocation2 + $0x10] sm:$0xff]
      %v351 = vld [vmem:[#allocation2 + $0x18] sm:$0xff]
      %v352 = vld [vmem:[#allocation2 + $0x20] sm:$0xff]
      %v353 = vld [vmem:[#allocation2 + $0x28] sm:$0xff]
      %v354 = vld [vmem:[%s2] sm:$0x7]
      %v356 = vperm.slane %v354, 0
      %v357 = vperm.slane %v354, 1
      %v358 = vperm.slane %v354, 2
      %v362 = vadd.f32 %v348, %v356
      %v363 = vadd.f32 %v349, %v357
      %v364 = vadd.f32 %v350, %v358
      %v365 = vadd.f32 %v351, %v356
      %v366 = vadd.f32 %v352, %v357
      %v367 = vadd.f32 %v353, %v358
      %v368 = vpack.c.bf16 %v363, %v362
      %v369 = vpack.c.bf16 %v364, %v364
      %v370 = vpack.c.bf16 %v366, %v365
      %v371 = vpack.c.bf16 %v367, %v367
      %372 = vst [vmem:[%s5] sm:$0xff] %v368
      %373 = vst [vmem:[%s5 + $0x8] sm:$0xf] %v369
      %374 = vst [vmem:[%s5 + $0xc] sm:$0xff] %v370
      %375 = vst [vmem:[%s5 + $0x14] sm:$0xf] %v371
    $region37: #{clip_forward.15} parent=1 // pred_fallthru
      _
    // Predicated region
    $region38: #{clip_forward.15} parent=1 // pred_check
      _
    $region39: #{clip_forward.15} parent=1 // pred_check_branch
      %377 = sbr.rel (0) target = $region41
    $region40: #{clip_forward.15} parent=1 // pred_region
      _
    $region41: #{clip_forward.15} parent=1 // pred_fallthru
      _
    // Predicated region
    $region42: #{clip_forward.15} parent=1 // pred_check
      _
    $region43: #{clip_forward.15} parent=1 // pred_check_branch
      %379 = sbr.rel (0) target = $region45
    $region44: #{clip_forward.15} parent=1 // pred_region
      _
    $region45: #{clip_forward.15} parent=1 // pred_fallthru
      _
    %380 = vsyncpa [#allocation5], 1

// kernel: clip_forward.17
$region0: #{clip_forward.17}
  #allocation0 [shape = 'u32[]', space=smem, size = 0x4, offset = 0x4, fixed_abs, tag = 'smem constant byte address 0x4 - core index']
  #allocation1 [shape = 'u32[72,128]{1,0:T(1,128)}', space=vmem, size = 0x9000, scoped, tag = 'internal scratch']
  #allocation2 [shape = 'f32[16,128]{1,0:T(8,128)}', space=vmem, size = 0x2000, scoped, tag = 'scratch operand']
  %s0 = inlined_call_operand.vmem [shape: bf16[16,128], index: 0, kind: input, shape index: {}]
  %s1 = inlined_call_operand.hbm [shape: bf16[128,128], index: 1, kind: input, shape index: {}]
  %s2 = inlined_call_operand.vmem [shape: f32[1,128], index: 2, kind: input, shape index: {}]
  %s3 = inlined_call_operand.vmem [shape: bf16[16,128], index: 3, kind: input, shape index: {}]
  %s4 = inlined_call_operand.vmem [shape: bf16[16,128], index: 4, kind: output, shape index: {}]
  %s5 = sld [smem:[#allocation0]]
  $region38: #{clip_forward.17} parent=0
    _
  %s7 = ssub.s32 1, %s5
  %s8 = scalar_select 0, %s7, %s5
  $region1: #{clip_forward.17} parent=0
    #allocation3 [shape = 'u8[32768]{0}', space=vmem, size = 0x8000, scoped, tag = 'input window, operand 1, single buffered']
    #allocation4 [shape = 's32[1]{0}', space=sflag, size = 0x4, scoped, tag = 'scoped memory for clip_forward.17']
    %9 = vsyncpa [#allocation4], 0
    // Predicated region
    $region2: #{clip_forward.17} parent=1 // pred_check
      _
    $region3: #{clip_forward.17} parent=1 // pred_check_branch
      %11 = sbr.rel (0) target = $region5
    $region4: #{clip_forward.17} parent=1 // pred_region
      _
    $region5: #{clip_forward.17} parent=1 // pred_fallthru
      _
    // Predicated region
    $region6: #{clip_forward.17} parent=1 // pred_check
      _
    $region7: #{clip_forward.17} parent=1 // pred_check_branch
      %13 = sbr.rel (0) target = $region9
    $region8: #{clip_forward.17} parent=1 // pred_region
      %15 = vsyncadd [#allocation4], 0
      %s16 = sshll.u32 %s1, 4
      %s17 = int_to_ptr.hbm [resolvable:$true] %s16
      %s18 = sshll.u32 [#allocation3], 4
      %s19 = int_to_ptr.vmem [resolvable:$true] %s18
      %24 = dma.hbm_to_vmem [thread:$0]  %s17, 1024, %s19, [#allocation4], 64, 64, 4
    $region9: #{clip_forward.17} parent=1 // pred_fallthru
      _
    // Predicated region
    $region10: #{clip_forward.17} parent=1 // pred_check
      _
    $region11: #{clip_forward.17} parent=1 // pred_check_branch
      %26 = sbr.rel (0) target = $region13
    $region12: #{clip_forward.17} parent=1 // pred_region
      _
    $region13: #{clip_forward.17} parent=1 // pred_fallthru
      _
    // Predicated region
    $region14: #{clip_forward.17} parent=1 // pred_check
      _
    $region15: #{clip_forward.17} parent=1 // pred_check_branch
      %28 = sbr.rel (0) target = $region17
    $region16: #{clip_forward.17} parent=1 // pred_region
      _
    $region17: #{clip_forward.17} parent=1 // pred_fallthru
      _
    // Predicated region
    $region18: #{clip_forward.17} parent=1 // pred_check
      _
    $region19: #{clip_forward.17} parent=1 // pred_check_branch
      %30 = sbr.rel (0) target = $region21
    $region20: #{clip_forward.17} parent=1 // pred_region
      %32 = dma.done [#allocation4], 1024
    $region21: #{clip_forward.17} parent=1 // pred_fallthru
      _
    %p33 = scmp.eq.s32.totalorder 0, 0
    // Predicated region
    $region22: #{clip_forward.17} parent=1 // pred_check
      %p34 = pneg %p33
    $region23: #{clip_forward.17} parent=1 // pred_check_branch
      %36 = sbr.rel (%p34) target = $region25
    $region24: #{clip_forward.17} parent=1 // pred_region
      %37 = vst [vmem:[#allocation2] sm:$0xff] 0.0
      %38 = vst [vmem:[#allocation2 + $0x8] sm:$0xff] 0.0
    $region25: #{clip_forward.17} parent=1 // pred_fallthru
      _
    %v39 = vld [vmem:[%s0] sm:$0xf]
    %v40 = vld [vmem:[%s0 + $0x4] sm:$0xf]
    %v41 = vld [vmem:[#allocation2] sm:$0xff]
    %v42 = vld [vmem:[#allocation2 + $0x8] sm:$0xff]
    %v43 = vld [vmem:[#allocation3] sm:$0xf]
    %v44 = vld [vmem:[#allocation3 + $0x4] sm:$0xf]
    %v45 = vld [vmem:[#allocation3 + $0x8] sm:$0xf]
    %v46 = vld [vmem:[#allocation3 + $0xc] sm:$0xf]
    %v47 = vld [vmem:[#allocation3 + $0x10] sm:$0xf]
    %v48 = vld [vmem:[#allocation3 + $0x14] sm:$0xf]
    %v49 = vld [vmem:[#allocation3 + $0x18] sm:$0xf]
    %v50 = vld [vmem:[#allocation3 + $0x1c] sm:$0xf]
    %v51 = vld [vmem:[#allocation3 + $0x20] sm:$0xf]
    %v52 = vld [vmem:[#allocation3 + $0x24] sm:$0xf]
    %v53 = vld [vmem:[#allocation3 + $0x28] sm:$0xf]
    %v54 = vld [vmem:[#allocation3 + $0x2c] sm:$0xf]
    %v55 = vld [vmem:[#allocation3 + $0x30] sm:$0xf]
    %v56 = vld [vmem:[#allocation3 + $0x34] sm:$0xf]
    %v57 = vld [vmem:[#allocation3 + $0x38] sm:$0xf]
    %v58 = vld [vmem:[#allocation3 + $0x3c] sm:$0xf]
    %v61 = vunpack.c.l.b16 %v39
    %v62 = vunpack.c.l.b16 %v40
    %v63 = vpack.c.b16 %v62, %v61
    %v81 = vunpack.c.l.b16 %v43
    %v82 = vunpack.c.l.b16 %v44
    %v83 = vunpack.c.l.b16 %v45
    %v84 = vunpack.c.l.b16 %v46
    %v85 = vunpack.c.l.b16 %v47
    %v86 = vunpack.c.l.b16 %v48
    %v87 = vunpack.c.l.b16 %v49
    %v88 = vunpack.c.l.b16 %v50
    %v89 = vunpack.c.l.b16 %v51
    %v90 = vunpack.c.l.b16 %v52
    %v91 = vunpack.c.l.b16 %v53
    %v92 = vunpack.c.l.b16 %v54
    %v93 = vunpack.c.l.b16 %v55
    %v94 = vunpack.c.l.b16 %v56
    %v95 = vunpack.c.l.b16 %v57
    %v96 = vunpack.c.l.b16 %v58
    %v97 = vpack.c.b16 %v82, %v81
    %v98 = vpack.c.b16 %v84, %v83
    %v99 = vpack.c.b16 %v86, %v85
    %v100 = vpack.c.b16 %v88, %v87
    %v101 = vpack.c.b16 %v90, %v89
    %v102 = vpack.c.b16 %v92, %v91
    %v103 = vpack.c.b16 %v94, %v93
    %v104 = vpack.c.b16 %v96, %v95
    %113 = vmatpush.bf16.msra.mxu0 %v104
    %114 = vmatpush.bf16.msra.mxu0 %v103
    %115 = vmatpush.bf16.msra.mxu0 %v102
    %116 = vmatpush.bf16.msra.mxu0 %v101
    %117 = vmatpush.bf16.msra.mxu0 %v100
    %118 = vmatpush.bf16.msra.mxu0 %v99
    %119 = vmatpush.bf16.msra.mxu0 %v98
    %120 = vmatpush.bf16.msra.mxu0 %v97
    %121 = vmatmul.bf16.gmra.mxu0 %v63
    %v122 = vpop.f32.mrf.mxu0
    %v123 = vadd.f32 0.0, %v122
    %v124 = vpop.f32.mrf.mxu0
    %v125 = vadd.f32 0.0, %v124
    %126 = vdwg.mxu0
    %v127 = vadd.f32 %v41, %v123
    %v128 = vadd.f32 %v42, %v125
    %129 = vst [vmem:[#allocation2] sm:$0xff] %v127
    %130 = vst [vmem:[#allocation2 + $0x8] sm:$0xff] %v128
    // Predicated region
    $region26: #{clip_forward.17} parent=1 // pred_check
      %p131 = pneg %p33
    $region27: #{clip_forward.17} parent=1 // pred_check_branch
      %133 = sbr.rel (%p131) target = $region29
    $region28: #{clip_forward.17} parent=1 // pred_region
      %v134 = vld [vmem:[#allocation2] sm:$0xff]
      %v135 = vld [vmem:[#allocation2 + $0x8] sm:$0xff]
      %v136 = vld [vmem:[%s2] sm:$0x1]
      %v138 = vperm.slane %v136, 0
      %v140 = vadd.f32 %v134, %v138
      %v141 = vadd.f32 %v135, %v138
      %v142 = vld [vmem:[%s3] sm:$0xf]
      %v143 = vld [vmem:[%s3 + $0x4] sm:$0xf]
      %v144 = vunpack.c.l.bf16 %v142
      %v145 = vunpack.c.l.bf16 %v143
      %v146 = vadd.f32 %v140, %v144
      %v147 = vadd.f32 %v141, %v145
      %v148 = vpack.c.bf16 %v146, %v146
      %v149 = vpack.c.bf16 %v147, %v147
      %150 = vst [vmem:[%s4] sm:$0xf] %v148
      %151 = vst [vmem:[%s4 + $0x4] sm:$0xf] %v149
    $region29: #{clip_forward.17} parent=1 // pred_fallthru
      _
    // Predicated region
    $region30: #{clip_forward.17} parent=1 // pred_check
      _
    $region31: #{clip_forward.17} parent=1 // pred_check_branch
      %153 = sbr.rel (0) target = $region33
    $region32: #{clip_forward.17} parent=1 // pred_region
      _
    $region33: #{clip_forward.17} parent=1 // pred_fallthru
      _
    // Predicated region
    $region34: #{clip_forward.17} parent=1 // pred_check
      _
    $region35: #{clip_forward.17} parent=1 // pred_check_branch
      %155 = sbr.rel (0) target = $region37
    $region36: #{clip_forward.17} parent=1 // pred_region
      _
    $region37: #{clip_forward.17} parent=1 // pred_fallthru
      _
    %156 = vsyncpa [#allocation4], 1

// kernel: clip_forward.18
$region0: #{clip_forward.18}
  #allocation0 [shape = 'u32[]', space=smem, size = 0x4, offset = 0x4, fixed_abs, tag = 'smem constant byte address 0x4 - core index']
  #allocation1 [shape = 'u32[72,128]{1,0:T(1,128)}', space=vmem, size = 0x9000, scoped, tag = 'internal scratch']
  #allocation2 [shape = 'f32[16,512]{1,0:T(8,128)}', space=vmem, size = 0x8000, scoped, tag = 'scratch operand']
  #allocation3 [shape = 'bf16[16,128]{1,0:T(8,128)(2,1)}', space=vmem, size = 0x1000, scoped, tag = 'scratch operand']
  %s0 = inlined_call_operand.vmem [shape: bf16[16,128], index: 0, kind: input, shape index: {}]
  %s1 = inlined_call_operand.vmem [shape: bf16[128,512], index: 1, kind: input, shape index: {}]
  %s2 = inlined_call_operand.vmem [shape: f32[1,512], index: 2, kind: input, shape index: {}]
  %s3 = inlined_call_operand.vmem [shape: f32[1,128], index: 3, kind: input, shape index: {}]
  %s4 = inlined_call_operand.vmem [shape: f32[1,128], index: 4, kind: input, shape index: {}]
  %s5 = inlined_call_operand.vmem [shape: bf16[16,512], index: 5, kind: output, shape index: {}]
  %s6 = sld [smem:[#allocation0]]
  $region42: #{clip_forward.18} parent=0
    _
  %s8 = ssub.s32 1, %s6
  %s9 = scalar_select 0, %s8, %s6
  // Predicated region
  $region2: #{clip_forward.18} parent=0 // pred_check
    _
  $region3: #{clip_forward.18} parent=0 // pred_check_branch
    %11 = sbr.rel (0) target = $region5
  $region4: #{clip_forward.18} parent=0 // pred_region
    _
  $region5: #{clip_forward.18} parent=0 // pred_fallthru
    _
  // Predicated region
  $region6: #{clip_forward.18} parent=0 // pred_check
    _
  $region7: #{clip_forward.18} parent=0 // pred_check_branch
    %13 = sbr.rel (0) target = $region9
  $region8: #{clip_forward.18} parent=0 // pred_region
    _
  $region9: #{clip_forward.18} parent=0 // pred_fallthru
    _
  // Predicated region
  $region10: #{clip_forward.18} parent=0 // pred_check
    _
  $region11: #{clip_forward.18} parent=0 // pred_check_branch
    %15 = sbr.rel (0) target = $region13
  $region12: #{clip_forward.18} parent=0 // pred_region
    _
  $region13: #{clip_forward.18} parent=0 // pred_fallthru
    _
  // Predicated region
  $region14: #{clip_forward.18} parent=0 // pred_check
    _
  $region15: #{clip_forward.18} parent=0 // pred_check_branch
    %17 = sbr.rel (0) target = $region17
  $region16: #{clip_forward.18} parent=0 // pred_region
    _
  $region17: #{clip_forward.18} parent=0 // pred_fallthru
    _
  // Predicated region
  $region18: #{clip_forward.18} parent=0 // pred_check
    _
  $region19: #{clip_forward.18} parent=0 // pred_check_branch
    %19 = sbr.rel (0) target = $region21
  $region20: #{clip_forward.18} parent=0 // pred_region
    _
  $region21: #{clip_forward.18} parent=0 // pred_fallthru
    _
  %p20 = scmp.eq.s32.totalorder 0, 0
  // Predicated region
  $region22: #{clip_forward.18} parent=0 // pred_check
    %p21 = pneg %p20
  $region23: #{clip_forward.18} parent=0 // pred_check_branch
    %23 = sbr.rel (%p21) target = $region25
  $region24: #{clip_forward.18} parent=0 // pred_region
    %24 = vst [vmem:[#allocation2] sm:$0xff] 0.0
    %25 = vst [vmem:[#allocation2 + $0x8] sm:$0xff] 0.0
    %26 = vst [vmem:[#allocation2 + $0x10] sm:$0xff] 0.0
    %27 = vst [vmem:[#allocation2 + $0x18] sm:$0xff] 0.0
    %28 = vst [vmem:[#allocation2 + $0x20] sm:$0xff] 0.0
    %29 = vst [vmem:[#allocation2 + $0x28] sm:$0xff] 0.0
    %30 = vst [vmem:[#allocation2 + $0x30] sm:$0xff] 0.0
    %31 = vst [vmem:[#allocation2 + $0x38] sm:$0xff] 0.0
  $region25: #{clip_forward.18} parent=0 // pred_fallthru
    _
  %p32 = scmp.eq.s32.totalorder 0, 0
  // Predicated region
  $region26: #{clip_forward.18} parent=0 // pred_check
    %p33 = pneg %p32
  $region27: #{clip_forward.18} parent=0 // pred_check_branch
    %35 = sbr.rel (%p33) target = $region29
  $region28: #{clip_forward.18} parent=0 // pred_region
    %v36 = vld [vmem:[%s0] sm:$0xf]
    %v37 = vld [vmem:[%s0 + $0x4] sm:$0xf]
    %v38 = vunpack.c.l.bf16 %v36
    %v39 = vunpack.c.l.bf16 %v37
    %40 = vadd.xlane.f32.xlu0 %v38
    %v41 = vpop.xlane.xlu0 %40
    %42 = vadd.xlane.f32.xlu0 %v39
    %v43 = vpop.xlane.xlu0 %42
    %v44 = vrcp.pop 128.0
    %v45 = vmul.f32 128.0, %v44
    %v46 = vsub.f32 1.0, %v45
    %v47 = vmul.f32 %v44, %v46
    %v48 = vadd.f32 %v44, %v47
    %vm49 = vweird.f32 %v44
    %v50 = vsel %vm49, %v44, %v48
    %v51 = vmul.f32 %v41, %v50
    %v52 = vmul.f32 %v43, %v50
    %v53 = vsub.f32 %v38, %v51
    %v54 = vsub.f32 %v39, %v52
    %v55 = vmul.f32 %v53, %v53
    %v56 = vmul.f32 %v54, %v54
    %57 = vadd.xlane.f32.xlu0 %v55
    %v58 = vpop.xlane.xlu0 %57
    %59 = vadd.xlane.f32.xlu0 %v56
    %v60 = vpop.xlane.xlu0 %59
    %v61 = vmul.f32 %v58, %v50
    %v62 = vmul.f32 %v60, %v50
    %v63 = vadd.f32 %v61, 1e-05
    %v64 = vadd.f32 %v62, 1e-05
    %v65 = vrsqrt.pop %v63
    %v66 = vmul.f32 %v65, %v63
    %v67 = vmul.f32 %v66, %v65
    %v68 = vmul.f32 0.5, %v67
    %v69 = vsub.f32 1.5, %v68
    %v70 = vmul.f32 %v65, %v69
    %vm71 = vweird.f32 %v63
    %vm72 = vweird.f32 %v65
    %vm73 = vmor %vm71, %vm72
    %v74 = vsel %vm73, %v65, %v70
    %v75 = vrsqrt.pop %v64
    %v76 = vmul.f32 %v75, %v64
    %v77 = vmul.f32 %v76, %v75
    %v78 = vmul.f32 0.5, %v77
    %v79 = vsub.f32 1.5, %v78
    %v80 = vmul.f32 %v75, %v79
    %vm81 = vweird.f32 %v64
    %vm82 = vweird.f32 %v75
    %vm83 = vmor %vm81, %vm82
    %v84 = vsel %vm83, %v75, %v80
    %v85 = vmul.f32 %v53, %v74
    %v86 = vmul.f32 %v54, %v84
    %v87 = vld [vmem:[%s3] sm:$0x1]
    %v89 = vperm.slane %v87, 0
    %v91 = vmul.f32 %v85, %v89
    %v92 = vmul.f32 %v86, %v89
    %v93 = vld [vmem:[%s4] sm:$0x1]
    %v95 = vperm.slane %v93, 0
    %v97 = vadd.f32 %v91, %v95
    %v98 = vadd.f32 %v92, %v95
    %v99 = vpack.c.bf16 %v97, %v97
    %v100 = vpack.c.bf16 %v98, %v98
    %101 = vst [vmem:[#allocation3] sm:$0xf] %v99
    %102 = vst [vmem:[#allocation3 + $0x4] sm:$0xf] %v100
  $region29: #{clip_forward.18} parent=0 // pred_fallthru
    _
  %v103 = vld [vmem:[#allocation3] sm:$0xf]
  %v104 = vld [vmem:[#allocation3 + $0x4] sm:$0xf]
  %v105 = vld [vmem:[#allocation2] sm:$0xff]
  %v106 = vld [vmem:[#allocation2 + $0x8] sm:$0xff]
  %v107 = vld [vmem:[#allocation2 + $0x10] sm:$0xff]
  %v108 = vld [vmem:[#allocation2 + $0x18] sm:$0xff]
  %v109 = vld [vmem:[#allocation2 + $0x20] sm:$0xff]
  %v110 = vld [vmem:[#allocation2 + $0x28] sm:$0xff]
  %v111 = vld [vmem:[#allocation2 + $0x30] sm:$0xff]
  %v112 = vld [vmem:[#allocation2 + $0x38] sm:$0xff]
  %v113 = vld [vmem:[%s1] sm:$0xff]
  %v114 = vld [vmem:[%s1 + $0x8] sm:$0xff]
  %v115 = vld [vmem:[%s1 + $0x10] sm:$0xff]
  %v116 = vld [vmem:[%s1 + $0x18] sm:$0xff]
  %v117 = vld [vmem:[%s1 + $0x20] sm:$0xff]
  %v118 = vld [vmem:[%s1 + $0x28] sm:$0xff]
  %v119 = vld [vmem:[%s1 + $0x30] sm:$0xff]
  %v120 = vld [vmem:[%s1 + $0x38] sm:$0xff]
  %v121 = vld [vmem:[%s1 + $0x40] sm:$0xff]
  %v122 = vld [vmem:[%s1 + $0x48] sm:$0xff]
  %v123 = vld [vmem:[%s1 + $0x50] sm:$0xff]
  %v124 = vld [vmem:[%s1 + $0x58] sm:$0xff]
  %v125 = vld [vmem:[%s1 + $0x60] sm:$0xff]
  %v126 = vld [vmem:[%s1 + $0x68] sm:$0xff]
  %v127 = vld [vmem:[%s1 + $0x70] sm:$0xff]
  %v128 = vld [vmem:[%s1 + $0x78] sm:$0xff]
  %v129 = vld [vmem:[%s1 + $0x80] sm:$0xff]
  %v130 = vld [vmem:[%s1 + $0x88] sm:$0xff]
  %v131 = vld [vmem:[%s1 + $0x90] sm:$0xff]
  %v132 = vld [vmem:[%s1 + $0x98] sm:$0xff]
  %v133 = vld [vmem:[%s1 + $0xa0] sm:$0xff]
  %v134 = vld [vmem:[%s1 + $0xa8] sm:$0xff]
  %v135 = vld [vmem:[%s1 + $0xb0] sm:$0xff]
  %v136 = vld [vmem:[%s1 + $0xb8] sm:$0xff]
  %v137 = vld [vmem:[%s1 + $0xc0] sm:$0xff]
  %v138 = vld [vmem:[%s1 + $0xc8] sm:$0xff]
  %v139 = vld [vmem:[%s1 + $0xd0] sm:$0xff]
  %v140 = vld [vmem:[%s1 + $0xd8] sm:$0xff]
  %v141 = vld [vmem:[%s1 + $0xe0] sm:$0xff]
  %v142 = vld [vmem:[%s1 + $0xe8] sm:$0xff]
  %v143 = vld [vmem:[%s1 + $0xf0] sm:$0xff]
  %v144 = vld [vmem:[%s1 + $0xf8] sm:$0xff]
  %v147 = vunpack.c.l.b16 %v103
  %v148 = vunpack.c.l.b16 %v104
  %v149 = vpack.c.b16 %v148, %v147
  %v183 = vunpack.c.l.b16 %v113
  %v184 = vunpack.c.h.b16 %v113
  %v185 = vunpack.c.l.b16 %v114
  %v186 = vunpack.c.h.b16 %v114
  %v187 = vunpack.c.l.b16 %v115
  %v188 = vunpack.c.h.b16 %v115
  %v189 = vunpack.c.l.b16 %v116
  %v190 = vunpack.c.h.b16 %v116
  %v191 = vunpack.c.l.b16 %v117
  %v192 = vunpack.c.h.b16 %v117
  %v193 = vunpack.c.l.b16 %v118
  %v194 = vunpack.c.h.b16 %v118
  %v195 = vunpack.c.l.b16 %v119
  %v196 = vunpack.c.h.b16 %v119
  %v197 = vunpack.c.l.b16 %v120
  %v198 = vunpack.c.h.b16 %v120
  %v199 = vunpack.c.l.b16 %v121
  %v200 = vunpack.c.h.b16 %v121
  %v201 = vunpack.c.l.b16 %v122
  %v202 = vunpack.c.h.b16 %v122
  %v203 = vunpack.c.l.b16 %v123
  %v204 = vunpack.c.h.b16 %v123
  %v205 = vunpack.c.l.b16 %v124
  %v206 = vunpack.c.h.b16 %v124
  %v207 = vunpack.c.l.b16 %v125
  %v208 = vunpack.c.h.b16 %v125
  %v209 = vunpack.c.l.b16 %v126
  %v210 = vunpack.c.h.b16 %v126
  %v211 = vunpack.c.l.b16 %v127
  %v212 = vunpack.c.h.b16 %v127
  %v213 = vunpack.c.l.b16 %v128
  %v214 = vunpack.c.h.b16 %v128
  %v215 = vunpack.c.l.b16 %v129
  %v216 = vunpack.c.h.b16 %v129
  %v217 = vunpack.c.l.b16 %v130
  %v218 = vunpack.c.h.b16 %v130
  %v219 = vunpack.c.l.b16 %v131
  %v220 = vunpack.c.h.b16 %v131
  %v221 = vunpack.c.l.b16 %v132
  %v222 = vunpack.c.h.b16 %v132
  %v223 = vunpack.c.l.b16 %v133
  %v224 = vunpack.c.h.b16 %v133
  %v225 = vunpack.c.l.b16 %v134
  %v226 = vunpack.c.h.b16 %v134
  %v227 = vunpack.c.l.b16 %v135
  %v228 = vunpack.c.h.b16 %v135
  %v229 = vunpack.c.l.b16 %v136
  %v230 = vunpack.c.h.b16 %v136
  %v231 = vunpack.c.l.b16 %v137
  %v232 = vunpack.c.h.b16 %v137
  %v233 = vunpack.c.l.b16 %v138
  %v234 = vunpack.c.h.b16 %v138
  %v235 = vunpack.c.l.b16 %v139
  %v236 = vunpack.c.h.b16 %v139
  %v237 = vunpack.c.l.b16 %v140
  %v238 = vunpack.c.h.b16 %v140
  %v239 = vunpack.c.l.b16 %v141
  %v240 = vunpack.c.h.b16 %v141
  %v241 = vunpack.c.l.b16 %v142
  %v242 = vunpack.c.h.b16 %v142
  %v243 = vunpack.c.l.b16 %v143
  %v244 = vunpack.c.h.b16 %v143
  %v245 = vunpack.c.l.b16 %v144
  %v246 = vunpack.c.h.b16 %v144
  %v247 = vpack.c.b16 %v187, %v183
  %v248 = vpack.c.b16 %v188, %v184
  %v249 = vpack.c.b16 %v189, %v185
  %v250 = vpack.c.b16 %v190, %v186
  %v251 = vpack.c.b16 %v195, %v191
  %v252 = vpack.c.b16 %v196, %v192
  %v253 = vpack.c.b16 %v197, %v193
  %v254 = vpack.c.b16 %v198, %v194
  %v255 = vpack.c.b16 %v203, %v199
  %v256 = vpack.c.b16 %v204, %v200
  %v257 = vpack.c.b16 %v205, %v201
  %v258 = vpack.c.b16 %v206, %v202
  %v259 = vpack.c.b16 %v211, %v207
  %v260 = vpack.c.b16 %v212, %v208
  %v261 = vpack.c.b16 %v213, %v209
  %v262 = vpack.c.b16 %v214, %v210
  %v263 = vpack.c.b16 %v219, %v215
  %v264 = vpack.c.b16 %v220, %v216
  %v265 = vpack.c.b16 %v221, %v217
  %v266 = vpack.c.b16 %v222, %v218
  %v267 = vpack.c.b16 %v227, %v223
  %v268 = vpack.c.b16 %v228, %v224
  %v269 = vpack.c.b16 %v229, %v225
  %v270 = vpack.c.b16 %v230, %v226
  %v271 = vpack.c.b16 %v235, %v231
  %v272 = vpack.c.b16 %v236, %v232
  %v273 = vpack.c.b16 %v237, %v233
  %v274 = vpack.c.b16 %v238, %v234
  %v275 = vpack.c.b16 %v243, %v239
  %v276 = vpack.c.b16 %v244, %v240
  %v277 = vpack.c.b16 %v245, %v241
  %v278 = vpack.c.b16 %v246, %v242
  %311 = vmatpush.bf16.msra.mxu0 %v275
  %312 = vmatpush.bf16.msra.mxu0 %v271
  %313 = vmatpush.bf16.msra.mxu0 %v267
  %314 = vmatpush.bf16.msra.mxu0 %v263
  %315 = vmatpush.bf16.msra.mxu0 %v259
  %316 = vmatpush.bf16.msra.mxu0 %v255
  %317 = vmatpush.bf16.msra.mxu0 %v251
  %318 = vmatpush.bf16.msra.mxu0 %v247
  %319 = vmatmul.bf16.gmra.mxu0 %v149
  %v320 = vpop.f32.mrf.mxu0
  %v321 = vadd.f32 0.0, %v320
  %v322 = vpop.f32.mrf.mxu0
  %v323 = vadd.f32 0.0, %v322
  %324 = vdwg.mxu0
  %325 = vmatpush.bf16.msra.mxu0 %v276
  %326 = vmatpush.bf16.msra.mxu0 %v272
  %327 = vmatpush.bf16.msra.mxu0 %v268
  %328 = vmatpush.bf16.msra.mxu0 %v264
  %329 = vmatpush.bf16.msra.mxu0 %v260
  %330 = vmatpush.bf16.msra.mxu0 %v256
  %331 = vmatpush.bf16.msra.mxu0 %v252
  %332 = vmatpush.bf16.msra.mxu0 %v248
  %333 = vmatmul.bf16.gmra.mxu0 %v149
  %v334 = vpop.f32.mrf.mxu0
  %v335 = vadd.f32 0.0, %v334
  %v336 = vpop.f32.mrf.mxu0
  %v337 = vadd.f32 0.0, %v336
  %338 = vdwg.mxu0
  %339 = vmatpush.bf16.msra.mxu0 %v277
  %340 = vmatpush.bf16.msra.mxu0 %v273
  %341 = vmatpush.bf16.msra.mxu0 %v269
  %342 = vmatpush.bf16.msra.mxu0 %v265
  %343 = vmatpush.bf16.msra.mxu0 %v261
  %344 = vmatpush.bf16.msra.mxu0 %v257
  %345 = vmatpush.bf16.msra.mxu0 %v253
  %346 = vmatpush.bf16.msra.mxu0 %v249
  %347 = vmatmul.bf16.gmra.mxu0 %v149
  %v348 = vpop.f32.mrf.mxu0
  %v349 = vadd.f32 0.0, %v348
  %v350 = vpop.f32.mrf.mxu0
  %v351 = vadd.f32 0.0, %v350
  %352 = vdwg.mxu0
  %353 = vmatpush.bf16.msra.mxu0 %v278
  %354 = vmatpush.bf16.msra.mxu0 %v274
  %355 = vmatpush.bf16.msra.mxu0 %v270
  %356 = vmatpush.bf16.msra.mxu0 %v266
  %357 = vmatpush.bf16.msra.mxu0 %v262
  %358 = vmatpush.bf16.msra.mxu0 %v258
  %359 = vmatpush.bf16.msra.mxu0 %v254
  %360 = vmatpush.bf16.msra.mxu0 %v250
  %361 = vmatmul.bf16.gmra.mxu0 %v149
  %v362 = vpop.f32.mrf.mxu0
  %v363 = vadd.f32 0.0, %v362
  %v364 = vpop.f32.mrf.mxu0
  %v365 = vadd.f32 0.0, %v364
  %366 = vdwg.mxu0
  %v367 = vadd.f32 %v105, %v321
  %v368 = vadd.f32 %v106, %v335
  %v369 = vadd.f32 %v107, %v349
  %v370 = vadd.f32 %v108, %v363
  %v371 = vadd.f32 %v109, %v323
  %v372 = vadd.f32 %v110, %v337
  %v373 = vadd.f32 %v111, %v351
  %v374 = vadd.f32 %v112, %v365
  %375 = vst [vmem:[#allocation2] sm:$0xff] %v367
  %376 = vst [vmem:[#allocation2 + $0x8] sm:$0xff] %v368
  %377 = vst [vmem:[#allocation2 + $0x10] sm:$0xff] %v369
  %378 = vst [vmem:[#allocation2 + $0x18] sm:$0xff] %v370
  %379 = vst [vmem:[#allocation2 + $0x20] sm:$0xff] %v371
  %380 = vst [vmem:[#allocation2 + $0x28] sm:$0xff] %v372
  %381 = vst [vmem:[#allocation2 + $0x30] sm:$0xff] %v373
  %382 = vst [vmem:[#allocation2 + $0x38] sm:$0xff] %v374
  // Predicated region
  $region30: #{clip_forward.18} parent=0 // pred_check
    %p383 = pneg %p20
  $region31: #{clip_forward.18} parent=0 // pred_check_branch
    %385 = sbr.rel (%p383) target = $region33
  $region32: #{clip_forward.18} parent=0 // pred_region
    %v386 = vld [vmem:[#allocation2] sm:$0xff]
    %v387 = vld [vmem:[#allocation2 + $0x8] sm:$0xff]
    %v388 = vld [vmem:[#allocation2 + $0x10] sm:$0xff]
    %v389 = vld [vmem:[#allocation2 + $0x18] sm:$0xff]
    %v390 = vld [vmem:[#allocation2 + $0x20] sm:$0xff]
    %v391 = vld [vmem:[#allocation2 + $0x28] sm:$0xff]
    %v392 = vld [vmem:[#allocation2 + $0x30] sm:$0xff]
    %v393 = vld [vmem:[#allocation2 + $0x38] sm:$0xff]
    %v394 = vld [vmem:[%s2] sm:$0xf]
    %v396 = vperm.slane %v394, 0
    %v397 = vperm.slane %v394, 1
    %v398 = vperm.slane %v394, 2
    %v399 = vperm.slane %v394, 3
    %v404 = vadd.f32 %v386, %v396
    %v405 = vadd.f32 %v387, %v397
    %v406 = vadd.f32 %v388, %v398
    %v407 = vadd.f32 %v389, %v399
    %v408 = vadd.f32 %v390, %v396
    %v409 = vadd.f32 %v391, %v397
    %v410 = vadd.f32 %v392, %v398
    %v411 = vadd.f32 %v393, %v399
    %v412 = vmul.f32 %v404, 1.702
    %v413 = vmul.f32 %v405, 1.702
    %v414 = vmul.f32 %v406, 1.702
    %v415 = vmul.f32 %v407, 1.702
    %v416 = vmul.f32 %v408, 1.702
    %v417 = vmul.f32 %v409, 1.702
    %v418 = vmul.f32 %v410, 1.702
    %v419 = vmul.f32 %v411, 1.702
    %v420 = vxor.u32 %v412, 2147483648
    %v421 = vxor.u32 %v413, 2147483648
    %v422 = vxor.u32 %v414, 2147483648
    %v423 = vxor.u32 %v415, 2147483648
    %v424 = vxor.u32 %v416, 2147483648
    %v425 = vxor.u32 %v417, 2147483648
    %v426 = vxor.u32 %v418, 2147483648
    %v427 = vxor.u32 %v419, 2147483648
    %v428 = vmul.f32 %v420, 1.442695
    %v429 = vpow.pop %v428
    %v430 = vmul.f32 %v421, 1.442695
    %v431 = vpow.pop %v430
    %v432 = vmul.f32 %v422, 1.442695
    %v433 = vpow.pop %v432
    %v434 = vmul.f32 %v423, 1.442695
    %v435 = vpow.pop %v434
    %v436 = vmul.f32 %v424, 1.442695
    %v437 = vpow.pop %v436
    %v438 = vmul.f32 %v425, 1.442695
    %v439 = vpow.pop %v438
    %v440 = vmul.f32 %v426, 1.442695
    %v441 = vpow.pop %v440
    %v442 = vmul.f32 %v427, 1.442695
    %v443 = vpow.pop %v442
    %v444 = vadd.f32 %v429, 1.0
    %v445 = vadd.f32 %v431, 1.0
    %v446 = vadd.f32 %v433, 1.0
    %v447 = vadd.f32 %v435, 1.0
    %v448 = vadd.f32 %v437, 1.0
    %v449 = vadd.f32 %v439, 1.0
    %v450 = vadd.f32 %v441, 1.0
    %v451 = vadd.f32 %v443, 1.0
    %v452 = vrcp.pop %v444
    %v453 = vmul.f32 %v444, %v452
    %v454 = vsub.f32 1.0, %v453
    %v455 = vmul.f32 %v452, %v454
    %v456 = vadd.f32 %v452, %v455
    %vm457 = vweird.f32 %v444
    %vm458 = vweird.f32 %v452
    %vm459 = vmor %vm457, %vm458
    %v460 = vsel %vm459, %v452, %v456
    %v461 = vand.u32 2147483647, %v444
    %vm462 = vcmp.eq.f32.partialorder %v461, 8.507059e+37
    %v463 = vand.u32 %v444, 2147483648
    %v464 = vor.u32 1.1754944e-38, %v463
    %v465 = vsel %vm462, %v464, %v460
    %v466 = vmul.f32 1.0, %v465
    %v467 = vrcp.pop %v445
    %v468 = vmul.f32 %v445, %v467
    %v469 = vsub.f32 1.0, %v468
    %v470 = vmul.f32 %v467, %v469
    %v471 = vadd.f32 %v467, %v470
    %vm472 = vweird.f32 %v445
    %vm473 = vweird.f32 %v467
    %vm474 = vmor %vm472, %vm473
    %v475 = vsel %vm474, %v467, %v471
    %v476 = vand.u32 2147483647, %v445
    %vm477 = vcmp.eq.f32.partialorder %v476, 8.507059e+37
    %v478 = vand.u32 %v445, 2147483648
    %v479 = vor.u32 1.1754944e-38, %v478
    %v480 = vsel %vm477, %v479, %v475
    %v481 = vmul.f32 1.0, %v480
    %v482 = vrcp.pop %v446
    %v483 = vmul.f32 %v446, %v482
    %v484 = vsub.f32 1.0, %v483
    %v485 = vmul.f32 %v482, %v484
    %v486 = vadd.f32 %v482, %v485
    %vm487 = vweird.f32 %v446
    %vm488 = vweird.f32 %v482
    %vm489 = vmor %vm487, %vm488
    %v490 = vsel %vm489, %v482, %v486
    %v491 = vand.u32 2147483647, %v446
    %vm492 = vcmp.eq.f32.partialorder %v491, 8.507059e+37
    %v493 = vand.u32 %v446, 2147483648
    %v494 = vor.u32 1.1754944e-38, %v493
    %v495 = vsel %vm492, %v494, %v490
    %v496 = vmul.f32 1.0, %v495
    %v497 = vrcp.pop %v447
    %v498 = vmul.f32 %v447, %v497
    %v499 = vsub.f32 1.0, %v498
    %v500 = vmul.f32 %v497, %v499
    %v501 = vadd.f32 %v497, %v500
    %vm502 = vweird.f32 %v447
    %vm503 = vweird.f32 %v497
    %vm504 = vmor %vm502, %vm503
    %v505 = vsel %vm504, %v497, %v501
    %v506 = vand.u32 2147483647, %v447
    %vm507 = vcmp.eq.f32.partialorder %v506, 8.507059e+37
    %v508 = vand.u32 %v447, 2147483648
    %v509 = vor.u32 1.1754944e-38, %v508
    %v510 = vsel %vm507, %v509, %v505
    %v511 = vmul.f32 1.0, %v510
    %v512 = vrcp.pop %v448
    %v513 = vmul.f32 %v448, %v512
    %v514 = vsub.f32 1.0, %v513
    %v515 = vmul.f32 %v512, %v514
    %v516 = vadd.f32 %v512, %v515
    %vm517 = vweird.f32 %v448
    %vm518 = vweird.f32 %v512
    %vm519 = vmor %vm517, %vm518
    %v520 = vsel %vm519, %v512, %v516
    %v521 = vand.u32 2147483647, %v448
    %vm522 = vcmp.eq.f32.partialorder %v521, 8.507059e+37
    %v523 = vand.u32 %v448, 2147483648
    %v524 = vor.u32 1.1754944e-38, %v523
    %v525 = vsel %vm522, %v524, %v520
    %v526 = vmul.f32 1.0, %v525
    %v527 = vrcp.pop %v449
    %v528 = vmul.f32 %v449, %v527
    %v529 = vsub.f32 1.0, %v528
    %v530 = vmul.f32 %v527, %v529
    %v531 = vadd.f32 %v527, %v530
    %vm532 = vweird.f32 %v449
    %vm533 = vweird.f32 %v527
    %vm534 = vmor %vm532, %vm533
    %v535 = vsel %vm534, %v527, %v531
    %v536 = vand.u32 2147483647, %v449
    %vm537 = vcmp.eq.f32.partialorder %v536, 8.507059e+37
    %v538 = vand.u32 %v449, 2147483648
    %v539 = vor.u32 1.1754944e-38, %v538
    %v540 = vsel %vm537, %v539, %v535
    %v541 = vmul.f32 1.0, %v540
    %v542 = vrcp.pop %v450
    %v543 = vmul.f32 %v450, %v542
    %v544 = vsub.f32 1.0, %v543
    %v545 = vmul.f32 %v542, %v544
    %v546 = vadd.f32 %v542, %v545
    %vm547 = vweird.f32 %v450
    %vm548 = vweird.f32 %v542
    %vm549 = vmor %vm547, %vm548
    %v550 = vsel %vm549, %v542, %v546
    %v551 = vand.u32 2147483647, %v450
    %vm552 = vcmp.eq.f32.partialorder %v551, 8.507059e+37
    %v553 = vand.u32 %v450, 2147483648
    %v554 = vor.u32 1.1754944e-38, %v553
    %v555 = vsel %vm552, %v554, %v550
    %v556 = vmul.f32 1.0, %v555
    %v557 = vrcp.pop %v451
    %v558 = vmul.f32 %v451, %v557
    %v559 = vsub.f32 1.0, %v558
    %v560 = vmul.f32 %v557, %v559
    %v561 = vadd.f32 %v557, %v560
    %vm562 = vweird.f32 %v451
    %vm563 = vweird.f32 %v557
    %vm564 = vmor %vm562, %vm563
    %v565 = vsel %vm564, %v557, %v561
    %v566 = vand.u32 2147483647, %v451
    %vm567 = vcmp.eq.f32.partialorder %v566, 8.507059e+37
    %v568 = vand.u32 %v451, 2147483648
    %v569 = vor.u32 1.1754944e-38, %v568
    %v570 = vsel %vm567, %v569, %v565
    %v571 = vmul.f32 1.0, %v570
    %v572 = vmul.f32 %v404, %v466
    %v573 = vmul.f32 %v405, %v481
    %v574 = vmul.f32 %v406, %v496
    %v575 = vmul.f32 %v407, %v511
    %v576 = vmul.f32 %v408, %v526
    %v577 = vmul.f32 %v409, %v541
    %v578 = vmul.f32 %v410, %v556
    %v579 = vmul.f32 %v411, %v571
    %v580 = vpack.c.bf16 %v573, %v572
    %v581 = vpack.c.bf16 %v575, %v574
    %v582 = vpack.c.bf16 %v577, %v576
    %v583 = vpack.c.bf16 %v579, %v578
    %584 = vst [vmem:[%s5] sm:$0xff] %v580
    %585 = vst [vmem:[%s5 + $0x8] sm:$0xff] %v581
    %586 = vst [vmem:[%s5 + $0x10] sm:$0xff] %v582
    %587 = vst [vmem:[%s5 + $0x18] sm:$0xff] %v583
  $region33: #{clip_forward.18} parent=0 // pred_fallthru
    _
  // Predicated region
  $region34: #{clip_forward.18} parent=0 // pred_check
    _
  $region35: #{clip_forward.18} parent=0 // pred_check_branch
    %589 = sbr.rel (0) target = $region37
  $region36: #{clip_forward.18} parent=0 // pred_region
    _
  $region37: #{clip_forward.18} parent=0 // pred_fallthru
    _
  // Predicated region
  $region38: #{clip_forward.18} parent=0 // pred_check
    _
  $region39: #{clip_forward.18} parent=0 // pred_check_branch
    %591 = sbr.rel (0) target = $region41
  $region40: #{clip_forward.18} parent=0 // pred_region
    _
  $region41: #{clip_forward.18} parent=0 // pred_fallthru
    _

// kernel: clip_forward.19
$region0: #{clip_forward.19}
  #allocation0 [shape = 'u32[]', space=smem, size = 0x4, offset = 0x4, fixed_abs, tag = 'smem constant byte address 0x4 - core index']
  #allocation1 [shape = 'u32[72,128]{1,0:T(1,128)}', space=vmem, size = 0x9000, scoped, tag = 'internal scratch']
  #allocation2 [shape = 'f32[16,128]{1,0:T(8,128)}', space=vmem, size = 0x2000, scoped, tag = 'scratch operand']
  %s0 = inlined_call_operand.vmem [shape: bf16[16,512], index: 0, kind: input, shape index: {}]
  %s1 = inlined_call_operand.vmem [shape: bf16[512,128], index: 1, kind: input, shape index: {}]
  %s2 = inlined_call_operand.vmem [shape: f32[1,128], index: 2, kind: input, shape index: {}]
  %s3 = inlined_call_operand.vmem [shape: bf16[16,128], index: 3, kind: input, shape index: {}]
  %s4 = inlined_call_operand.vmem [shape: bf16[16,128], index: 4, kind: output, shape index: {}]
  %s5 = sld [smem:[#allocation0]]
  $region34: #{clip_forward.19} parent=0
    _
  %s7 = ssub.s32 1, %s5
  %s8 = scalar_select 0, %s7, %s5
  // Predicated region
  $region2: #{clip_forward.19} parent=0 // pred_check
    _
  $region3: #{clip_forward.19} parent=0 // pred_check_branch
    %10 = sbr.rel (0) target = $region5
  $region4: #{clip_forward.19} parent=0 // pred_region
    _
  $region5: #{clip_forward.19} parent=0 // pred_fallthru
    _
  // Predicated region
  $region6: #{clip_forward.19} parent=0 // pred_check
    _
  $region7: #{clip_forward.19} parent=0 // pred_check_branch
    %12 = sbr.rel (0) target = $region9
  $region8: #{clip_forward.19} parent=0 // pred_region
    _
  $region9: #{clip_forward.19} parent=0 // pred_fallthru
    _
  // Predicated region
  $region10: #{clip_forward.19} parent=0 // pred_check
    _
  $region11: #{clip_forward.19} parent=0 // pred_check_branch
    %14 = sbr.rel (0) target = $region13
  $region12: #{clip_forward.19} parent=0 // pred_region
    _
  $region13: #{clip_forward.19} parent=0 // pred_fallthru
    _
  // Predicated region
  $region14: #{clip_forward.19} parent=0 // pred_check
    _
  $region15: #{clip_forward.19} parent=0 // pred_check_branch
    %16 = sbr.rel (0) target = $region17
  $region16: #{clip_forward.19} parent=0 // pred_region
    _
  $region17: #{clip_forward.19} parent=0 // pred_fallthru
    _
  %p17 = scmp.eq.s32.totalorder 0, 0
  // Predicated region
  $region18: #{clip_forward.19} parent=0 // pred_check
    %p18 = pneg %p17
  $region19: #{clip_forward.19} parent=0 // pred_check_branch
    %20 = sbr.rel (%p18) target = $region21
  $region20: #{clip_forward.19} parent=0 // pred_region
    %21 = vst [vmem:[#allocation2] sm:$0xff] 0.0
    %22 = vst [vmem:[#allocation2 + $0x8] sm:$0xff] 0.0
  $region21: #{clip_forward.19} parent=0 // pred_fallthru
    _
  %v23 = vld [vmem:[%s0] sm:$0xff]
  %v24 = vld [vmem:[%s0 + $0x8] sm:$0xff]
  %v25 = vld [vmem:[%s0 + $0x10] sm:$0xff]
  %v26 = vld [vmem:[%s0 + $0x18] sm:$0xff]
  %v27 = vld [vmem:[#allocation2] sm:$0xff]
  %v28 = vld [vmem:[#allocation2 + $0x8] sm:$0xff]
  %v29 = vld [vmem:[%s1] sm:$0xf]
  %v30 = vld [vmem:[%s1 + $0x4] sm:$0xf]
  %v31 = vld [vmem:[%s1 + $0x8] sm:$0xf]
  %v32 = vld [vmem:[%s1 + $0xc] sm:$0xf]
  %v33 = vld [vmem:[%s1 + $0x10] sm:$0xf]
  %v34 = vld [vmem:[%s1 + $0x14] sm:$0xf]
  %v35 = vld [vmem:[%s1 + $0x18] sm:$0xf]
  %v36 = vld [vmem:[%s1 + $0x1c] sm:$0xf]
  %v37 = vld [vmem:[%s1 + $0x20] sm:$0xf]
  %v38 = vld [vmem:[%s1 + $0x24] sm:$0xf]
  %v39 = vld [vmem:[%s1 + $0x28] sm:$0xf]
  %v40 = vld [vmem:[%s1 + $0x2c] sm:$0xf]
  %v41 = vld [vmem:[%s1 + $0x30] sm:$0xf]
  %v42 = vld [vmem:[%s1 + $0x34] sm:$0xf]
  %v43 = vld [vmem:[%s1 + $0x38] sm:$0xf]
  %v44 = vld [vmem:[%s1 + $0x3c] sm:$0xf]
  %v45 = vld [vmem:[%s1 + $0x40] sm:$0xf]
  %v46 = vld [vmem:[%s1 + $0x44] sm:$0xf]
  %v47 = vld [vmem:[%s1 + $0x48] sm:$0xf]
  %v48 = vld [vmem:[%s1 + $0x4c] sm:$0xf]
  %v49 = vld [vmem:[%s1 + $0x50] sm:$0xf]
  %v50 = vld [vmem:[%s1 + $0x54] sm:$0xf]
  %v51 = vld [vmem:[%s1 + $0x58] sm:$0xf]
  %v52 = vld [vmem:[%s1 + $0x5c] sm:$0xf]
  %v53 = vld [vmem:[%s1 + $0x60] sm:$0xf]
  %v54 = vld [vmem:[%s1 + $0x64] sm:$0xf]
  %v55 = vld [vmem:[%s1 + $0x68] sm:$0xf]
  %v56 = vld [vmem:[%s1 + $0x6c] sm:$0xf]
  %v57 = vld [vmem:[%s1 + $0x70] sm:$0xf]
  %v58 = vld [vmem:[%s1 + $0x74] sm:$0xf]
  %v59 = vld [vmem:[%s1 + $0x78] sm:$0xf]
  %v60 = vld [vmem:[%s1 + $0x7c] sm:$0xf]
  %v61 = vld [vmem:[%s1 + $0x80] sm:$0xf]
  %v62 = vld [vmem:[%s1 + $0x84] sm:$0xf]
  %v63 = vld [vmem:[%s1 + $0x88] sm:$0xf]
  %v64 = vld [vmem:[%s1 + $0x8c] sm:$0xf]
  %v65 = vld [vmem:[%s1 + $0x90] sm:$0xf]
  %v66 = vld [vmem:[%s1 + $0x94] sm:$0xf]
  %v67 = vld [vmem:[%s1 + $0x98] sm:$0xf]
  %v68 = vld [vmem:[%s1 + $0x9c] sm:$0xf]
  %v69 = vld [vmem:[%s1 + $0xa0] sm:$0xf]
  %v70 = vld [vmem:[%s1 + $0xa4] sm:$0xf]
  %v71 = vld [vmem:[%s1 + $0xa8] sm:$0xf]
  %v72 = vld [vmem:[%s1 + $0xac] sm:$0xf]
  %v73 = vld [vmem:[%s1 + $0xb0] sm:$0xf]
  %v74 = vld [vmem:[%s1 + $0xb4] sm:$0xf]
  %v75 = vld [vmem:[%s1 + $0xb8] sm:$0xf]
  %v76 = vld [vmem:[%s1 + $0xbc] sm:$0xf]
  %v77 = vld [vmem:[%s1 + $0xc0] sm:$0xf]
  %v78 = vld [vmem:[%s1 + $0xc4] sm:$0xf]
  %v79 = vld [vmem:[%s1 + $0xc8] sm:$0xf]
  %v80 = vld [vmem:[%s1 + $0xcc] sm:$0xf]
  %v81 = vld [vmem:[%s1 + $0xd0] sm:$0xf]
  %v82 = vld [vmem:[%s1 + $0xd4] sm:$0xf]
  %v83 = vld [vmem:[%s1 + $0xd8] sm:$0xf]
  %v84 = vld [vmem:[%s1 + $0xdc] sm:$0xf]
  %v85 = vld [vmem:[%s1 + $0xe0] sm:$0xf]
  %v86 = vld [vmem:[%s1 + $0xe4] sm:$0xf]
  %v87 = vld [vmem:[%s1 + $0xe8] sm:$0xf]
  %v88 = vld [vmem:[%s1 + $0xec] sm:$0xf]
  %v89 = vld [vmem:[%s1 + $0xf0] sm:$0xf]
  %v90 = vld [vmem:[%s1 + $0xf4] sm:$0xf]
  %v91 = vld [vmem:[%s1 + $0xf8] sm:$0xf]
  %v92 = vld [vmem:[%s1 + $0xfc] sm:$0xf]
  %v97 = vunpack.c.l.b16 %v23
  %v98 = vunpack.c.h.b16 %v23
  %v99 = vunpack.c.l.b16 %v24
  %v100 = vunpack.c.h.b16 %v24
  %v101 = vunpack.c.l.b16 %v25
  %v102 = vunpack.c.h.b16 %v25
  %v103 = vunpack.c.l.b16 %v26
  %v104 = vunpack.c.h.b16 %v26
  %v105 = vpack.c.b16 %v101, %v97
  %v106 = vpack.c.b16 %v102, %v98
  %v107 = vpack.c.b16 %v103, %v99
  %v108 = vpack.c.b16 %v104, %v100
  %v177 = vunpack.c.l.b16 %v29
  %v178 = vunpack.c.l.b16 %v30
  %v179 = vunpack.c.l.b16 %v31
  %v180 = vunpack.c.l.b16 %v32
  %v181 = vunpack.c.l.b16 %v33
  %v182 = vunpack.c.l.b16 %v34
  %v183 = vunpack.c.l.b16 %v35
  %v184 = vunpack.c.l.b16 %v36
  %v185 = vunpack.c.l.b16 %v37
  %v186 = vunpack.c.l.b16 %v38
  %v187 = vunpack.c.l.b16 %v39
  %v188 = vunpack.c.l.b16 %v40
  %v189 = vunpack.c.l.b16 %v41
  %v190 = vunpack.c.l.b16 %v42
  %v191 = vunpack.c.l.b16 %v43
  %v192 = vunpack.c.l.b16 %v44
  %v193 = vunpack.c.l.b16 %v45
  %v194 = vunpack.c.l.b16 %v46
  %v195 = vunpack.c.l.b16 %v47
  %v196 = vunpack.c.l.b16 %v48
  %v197 = vunpack.c.l.b16 %v49
  %v198 = vunpack.c.l.b16 %v50
  %v199 = vunpack.c.l.b16 %v51
  %v200 = vunpack.c.l.b16 %v52
  %v201 = vunpack.c.l.b16 %v53
  %v202 = vunpack.c.l.b16 %v54
  %v203 = vunpack.c.l.b16 %v55
  %v204 = vunpack.c.l.b16 %v56
  %v205 = vunpack.c.l.b16 %v57
  %v206 = vunpack.c.l.b16 %v58
  %v207 = vunpack.c.l.b16 %v59
  %v208 = vunpack.c.l.b16 %v60
  %v209 = vunpack.c.l.b16 %v61
  %v210 = vunpack.c.l.b16 %v62
  %v211 = vunpack.c.l.b16 %v63
  %v212 = vunpack.c.l.b16 %v64
  %v213 = vunpack.c.l.b16 %v65
  %v214 = vunpack.c.l.b16 %v66
  %v215 = vunpack.c.l.b16 %v67
  %v216 = vunpack.c.l.b16 %v68
  %v217 = vunpack.c.l.b16 %v69
  %v218 = vunpack.c.l.b16 %v70
  %v219 = vunpack.c.l.b16 %v71
  %v220 = vunpack.c.l.b16 %v72
  %v221 = vunpack.c.l.b16 %v73
  %v222 = vunpack.c.l.b16 %v74
  %v223 = vunpack.c.l.b16 %v75
  %v224 = vunpack.c.l.b16 %v76
  %v225 = vunpack.c.l.b16 %v77
  %v226 = vunpack.c.l.b16 %v78
  %v227 = vunpack.c.l.b16 %v79
  %v228 = vunpack.c.l.b16 %v80
  %v229 = vunpack.c.l.b16 %v81
  %v230 = vunpack.c.l.b16 %v82
  %v231 = vunpack.c.l.b16 %v83
  %v232 = vunpack.c.l.b16 %v84
  %v233 = vunpack.c.l.b16 %v85
  %v234 = vunpack.c.l.b16 %v86
  %v235 = vunpack.c.l.b16 %v87
  %v236 = vunpack.c.l.b16 %v88
  %v237 = vunpack.c.l.b16 %v89
  %v238 = vunpack.c.l.b16 %v90
  %v239 = vunpack.c.l.b16 %v91
  %v240 = vunpack.c.l.b16 %v92
  %v241 = vpack.c.b16 %v178, %v177
  %v242 = vpack.c.b16 %v180, %v179
  %v243 = vpack.c.b16 %v182, %v181
  %v244 = vpack.c.b16 %v184, %v183
  %v245 = vpack.c.b16 %v186, %v185
  %v246 = vpack.c.b16 %v188, %v187
  %v247 = vpack.c.b16 %v190, %v189
  %v248 = vpack.c.b16 %v192, %v191
  %v249 = vpack.c.b16 %v194, %v193
  %v250 = vpack.c.b16 %v196, %v195
  %v251 = vpack.c.b16 %v198, %v197
  %v252 = vpack.c.b16 %v200, %v199
  %v253 = vpack.c.b16 %v202, %v201
  %v254 = vpack.c.b16 %v204, %v203
  %v255 = vpack.c.b16 %v206, %v205
  %v256 = vpack.c.b16 %v208, %v207
  %v257 = vpack.c.b16 %v210, %v209
  %v258 = vpack.c.b16 %v212, %v211
  %v259 = vpack.c.b16 %v214, %v213
  %v260 = vpack.c.b16 %v216, %v215
  %v261 = vpack.c.b16 %v218, %v217
  %v262 = vpack.c.b16 %v220, %v219
  %v263 = vpack.c.b16 %v222, %v221
  %v264 = vpack.c.b16 %v224, %v223
  %v265 = vpack.c.b16 %v226, %v225
  %v266 = vpack.c.b16 %v228, %v227
  %v267 = vpack.c.b16 %v230, %v229
  %v268 = vpack.c.b16 %v232, %v231
  %v269 = vpack.c.b16 %v234, %v233
  %v270 = vpack.c.b16 %v236, %v235
  %v271 = vpack.c.b16 %v238, %v237
  %v272 = vpack.c.b16 %v240, %v239
  %305 = vmatpush.bf16.msra.mxu0 %v248
  %306 = vmatpush.bf16.msra.mxu0 %v247
  %307 = vmatpush.bf16.msra.mxu0 %v246
  %308 = vmatpush.bf16.msra.mxu0 %v245
  %309 = vmatpush.bf16.msra.mxu0 %v244
  %310 = vmatpush.bf16.msra.mxu0 %v243
  %311 = vmatpush.bf16.msra.mxu0 %v242
  %312 = vmatpush.bf16.msra.mxu0 %v241
  %313 = vmatmul.bf16.gmra.mxu0 %v105
  %v314 = vpop.f32.mrf.mxu0
  %v315 = vadd.f32 0.0, %v314
  %v316 = vpop.f32.mrf.mxu0
  %v317 = vadd.f32 0.0, %v316
  %318 = vdwg.mxu0
  %319 = vmatpush.bf16.msra.mxu0 %v256
  %320 = vmatpush.bf16.msra.mxu0 %v255
  %321 = vmatpush.bf16.msra.mxu0 %v254
  %322 = vmatpush.bf16.msra.mxu0 %v253
  %323 = vmatpush.bf16.msra.mxu0 %v252
  %324 = vmatpush.bf16.msra.mxu0 %v251
  %325 = vmatpush.bf16.msra.mxu0 %v250
  %326 = vmatpush.bf16.msra.mxu0 %v249
  %327 = vmatmul.bf16.gmra.mxu0 %v106
  %v328 = vpop.f32.mrf.mxu0
  %v329 = vadd.f32 %v315, %v328
  %v330 = vpop.f32.mrf.mxu0
  %v331 = vadd.f32 %v317, %v330
  %332 = vdwg.mxu0
  %333 = vmatpush.bf16.msra.mxu0 %v264
  %334 = vmatpush.bf16.msra.mxu0 %v263
  %335 = vmatpush.bf16.msra.mxu0 %v262
  %336 = vmatpush.bf16.msra.mxu0 %v261
  %337 = vmatpush.bf16.msra.mxu0 %v260
  %338 = vmatpush.bf16.msra.mxu0 %v259
  %339 = vmatpush.bf16.msra.mxu0 %v258
  %340 = vmatpush.bf16.msra.mxu0 %v257
  %341 = vmatmul.bf16.gmra.mxu0 %v107
  %v342 = vpop.f32.mrf.mxu0
  %v343 = vadd.f32 %v329, %v342
  %v344 = vpop.f32.mrf.mxu0
  %v345 = vadd.f32 %v331, %v344
  %346 = vdwg.mxu0
  %347 = vmatpush.bf16.msra.mxu0 %v272
  %348 = vmatpush.bf16.msra.mxu0 %v271
  %349 = vmatpush.bf16.msra.mxu0 %v270
  %350 = vmatpush.bf16.msra.mxu0 %v269
  %351 = vmatpush.bf16.msra.mxu0 %v268
  %352 = vmatpush.bf16.msra.mxu0 %v267
  %353 = vmatpush.bf16.msra.mxu0 %v266
  %354 = vmatpush.bf16.msra.mxu0 %v265
  %355 = vmatmul.bf16.gmra.mxu0 %v108
  %v356 = vpop.f32.mrf.mxu0
  %v357 = vadd.f32 %v343, %v356
  %v358 = vpop.f32.mrf.mxu0
  %v359 = vadd.f32 %v345, %v358
  %360 = vdwg.mxu0
  %v361 = vadd.f32 %v27, %v357
  %v362 = vadd.f32 %v28, %v359
  %363 = vst [vmem:[#allocation2] sm:$0xff] %v361
  %364 = vst [vmem:[#allocation2 + $0x8] sm:$0xff] %v362
  // Predicated region
  $region22: #{clip_forward.19} parent=0 // pred_check
    %p365 = pneg %p17
  $region23: #{clip_forward.19} parent=0 // pred_check_branch
    %367 = sbr.rel (%p365) target = $region25
  $region24: #{clip_forward.19} parent=0 // pred_region
    %v368 = vld [vmem:[#allocation2] sm:$0xff]
    %v369 = vld [vmem:[#allocation2 + $0x8] sm:$0xff]
    %v370 = vld [vmem:[%s2] sm:$0x1]
    %v372 = vperm.slane %v370, 0
    %v374 = vadd.f32 %v368, %v372
    %v375 = vadd.f32 %v369, %v372
    %v376 = vld [vmem:[%s3] sm:$0xf]
    %v377 = vld [vmem:[%s3 + $0x4] sm:$0xf]
    %v378 = vunpack.c.l.bf16 %v376
    %v379 = vunpack.c.l.bf16 %v377
    %v380 = vadd.f32 %v374, %v378
    %v381 = vadd.f32 %v375, %v379
    %v382 = vpack.c.bf16 %v380, %v380
    %v383 = vpack.c.bf16 %v381, %v381
    %384 = vst [vmem:[%s4] sm:$0xf] %v382
    %385 = vst [vmem:[%s4 + $0x4] sm:$0xf] %v383
  $region25: #{clip_forward.19} parent=0 // pred_fallthru
    _
  // Predicated region
  $region26: #{clip_forward.19} parent=0 // pred_check
    _
  $region27: #{clip_forward.19} parent=0 // pred_check_branch
    %387 = sbr.rel (0) target = $region29
  $region28: #{clip_forward.19} parent=0 // pred_region
    _
  $region29: #{clip_forward.19} parent=0 // pred_fallthru
    _
  // Predicated region
  $region30: #{clip_forward.19} parent=0 // pred_check
    _
  $region31: #{clip_forward.19} parent=0 // pred_check_branch
    %389 = sbr.rel (0) target = $region33
  $region32: #{clip_forward.19} parent=0 // pred_region
    _
  $region33: #{clip_forward.19} parent=0 // pred_fallthru
    _

// kernel: clip_forward.24
$region0: #{clip_forward.24}
  #allocation0 [shape = 'u32[]', space=smem, size = 0x4, offset = 0x4, fixed_abs, tag = 'smem constant byte address 0x4 - core index']
  #allocation1 [shape = 'u32[72,128]{1,0:T(1,128)}', space=vmem, size = 0x9000, scoped, tag = 'internal scratch']
  #allocation2 [shape = 'f32[16,128]{1,0:T(8,128)}', space=vmem, size = 0x2000, scoped, tag = 'scratch operand']
  %s0 = inlined_call_operand.vmem [shape: bf16[16,512], index: 0, kind: input, shape index: {}]
  %s1 = inlined_call_operand.hbm [shape: bf16[512,128], index: 1, kind: input, shape index: {}]
  %s2 = inlined_call_operand.vmem [shape: f32[1,128], index: 2, kind: input, shape index: {}]
  %s3 = inlined_call_operand.vmem [shape: bf16[16,128], index: 3, kind: input, shape index: {}]
  %s4 = inlined_call_operand.vmem [shape: bf16[16,128], index: 4, kind: output, shape index: {}]
  %s5 = sld [smem:[#allocation0]]
  $region38: #{clip_forward.24} parent=0
    _
  %s7 = ssub.s32 1, %s5
  %s8 = scalar_select 0, %s7, %s5
  $region1: #{clip_forward.24} parent=0
    #allocation3 [shape = 'u8[131072]{0}', space=vmem, size = 0x20000, scoped, tag = 'input window, operand 1, single buffered']
    #allocation4 [shape = 's32[1]{0}', space=sflag, size = 0x4, scoped, tag = 'scoped memory for clip_forward.24']
    %9 = vsyncpa [#allocation4], 0
    // Predicated region
    $region2: #{clip_forward.24} parent=1 // pred_check
      _
    $region3: #{clip_forward.24} parent=1 // pred_check_branch
      %11 = sbr.rel (0) target = $region5
    $region4: #{clip_forward.24} parent=1 // pred_region
      _
    $region5: #{clip_forward.24} parent=1 // pred_fallthru
      _
    // Predicated region
    $region6: #{clip_forward.24} parent=1 // pred_check
      _
    $region7: #{clip_forward.24} parent=1 // pred_check_branch
      %13 = sbr.rel (0) target = $region9
    $region8: #{clip_forward.24} parent=1 // pred_region
      %15 = vsyncadd [#allocation4], 0
      %s16 = sshll.u32 %s1, 4
      %s17 = int_to_ptr.hbm [resolvable:$true] %s16
      %s18 = sshll.u32 [#allocation3], 4
      %s19 = int_to_ptr.vmem [resolvable:$true] %s18
      %24 = dma.hbm_to_vmem [thread:$0]  %s17, 4096, %s19, [#allocation4], 64, 64, 4
    $region9: #{clip_forward.24} parent=1 // pred_fallthru
      _
    // Predicated region
    $region10: #{clip_forward.24} parent=1 // pred_check
      _
    $region11: #{clip_forward.24} parent=1 // pred_check_branch
      %26 = sbr.rel (0) target = $region13
    $region12: #{clip_forward.24} parent=1 // pred_region
      _
    $region13: #{clip_forward.24} parent=1 // pred_fallthru
      _
    // Predicated region
    $region14: #{clip_forward.24} parent=1 // pred_check
      _
    $region15: #{clip_forward.24} parent=1 // pred_check_branch
      %28 = sbr.rel (0) target = $region17
    $region16: #{clip_forward.24} parent=1 // pred_region
      _
    $region17: #{clip_forward.24} parent=1 // pred_fallthru
      _
    // Predicated region
    $region18: #{clip_forward.24} parent=1 // pred_check
      _
    $region19: #{clip_forward.24} parent=1 // pred_check_branch
      %30 = sbr.rel (0) target = $region21
    $region20: #{clip_forward.24} parent=1 // pred_region
      %32 = dma.done [#allocation4], 4096
    $region21: #{clip_forward.24} parent=1 // pred_fallthru
      _
    %p33 = scmp.eq.s32.totalorder 0, 0
    // Predicated region
    $region22: #{clip_forward.24} parent=1 // pred_check
      %p34 = pneg %p33
    $region23: #{clip_forward.24} parent=1 // pred_check_branch
      %36 = sbr.rel (%p34) target = $region25
    $region24: #{clip_forward.24} parent=1 // pred_region
      %37 = vst [vmem:[#allocation2] sm:$0xff] 0.0
      %38 = vst [vmem:[#allocation2 + $0x8] sm:$0xff] 0.0
    $region25: #{clip_forward.24} parent=1 // pred_fallthru
      _
    %v39 = vld [vmem:[%s0] sm:$0xff]
    %v40 = vld [vmem:[%s0 + $0x8] sm:$0xff]
    %v41 = vld [vmem:[%s0 + $0x10] sm:$0xff]
    %v42 = vld [vmem:[%s0 + $0x18] sm:$0xff]
    %v43 = vld [vmem:[#allocation2] sm:$0xff]
    %v44 = vld [vmem:[#allocation2 + $0x8] sm:$0xff]
    %v45 = vld [vmem:[#allocation3] sm:$0xf]
    %v46 = vld [vmem:[#allocation3 + $0x4] sm:$0xf]
    %v47 = vld [vmem:[#allocation3 + $0x8] sm:$0xf]
    %v48 = vld [vmem:[#allocation3 + $0xc] sm:$0xf]
    %v49 = vld [vmem:[#allocation3 + $0x10] sm:$0xf]
    %v50 = vld [vmem:[#allocation3 + $0x14] sm:$0xf]
    %v51 = vld [vmem:[#allocation3 + $0x18] sm:$0xf]
    %v52 = vld [vmem:[#allocation3 + $0x1c] sm:$0xf]
    %v53 = vld [vmem:[#allocation3 + $0x20] sm:$0xf]
    %v54 = vld [vmem:[#allocation3 + $0x24] sm:$0xf]
    %v55 = vld [vmem:[#allocation3 + $0x28] sm:$0xf]
    %v56 = vld [vmem:[#allocation3 + $0x2c] sm:$0xf]
    %v57 = vld [vmem:[#allocation3 + $0x30] sm:$0xf]
    %v58 = vld [vmem:[#allocation3 + $0x34] sm:$0xf]
    %v59 = vld [vmem:[#allocation3 + $0x38] sm:$0xf]
    %v60 = vld [vmem:[#allocation3 + $0x3c] sm:$0xf]
    %v61 = vld [vmem:[#allocation3 + $0x40] sm:$0xf]
    %v62 = vld [vmem:[#allocation3 + $0x44] sm:$0xf]
    %v63 = vld [vmem:[#allocation3 + $0x48] sm:$0xf]
    %v64 = vld [vmem:[#allocation3 + $0x4c] sm:$0xf]
    %v65 = vld [vmem:[#allocation3 + $0x50] sm:$0xf]
    %v66 = vld [vmem:[#allocation3 + $0x54] sm:$0xf]
    %v67 = vld [vmem:[#allocation3 + $0x58] sm:$0xf]
    %v68 = vld [vmem:[#allocation3 + $0x5c] sm:$0xf]
    %v69 = vld [vmem:[#allocation3 + $0x60] sm:$0xf]
    %v70 = vld [vmem:[#allocation3 + $0x64] sm:$0xf]
    %v71 = vld [vmem:[#allocation3 + $0x68] sm:$0xf]
    %v72 = vld [vmem:[#allocation3 + $0x6c] sm:$0xf]
    %v73 = vld [vmem:[#allocation3 + $0x70] sm:$0xf]
    %v74 = vld [vmem:[#allocation3 + $0x74] sm:$0xf]
    %v75 = vld [vmem:[#allocation3 + $0x78] sm:$0xf]
    %v76 = vld [vmem:[#allocation3 + $0x7c] sm:$0xf]
    %v77 = vld [vmem:[#allocation3 + $0x80] sm:$0xf]
    %v78 = vld [vmem:[#allocation3 + $0x84] sm:$0xf]
    %v79 = vld [vmem:[#allocation3 + $0x88] sm:$0xf]
    %v80 = vld [vmem:[#allocation3 + $0x8c] sm:$0xf]
    %v81 = vld [vmem:[#allocation3 + $0x90] sm:$0xf]
    %v82 = vld [vmem:[#allocation3 + $0x94] sm:$0xf]
    %v83 = vld [vmem:[#allocation3 + $0x98] sm:$0xf]
    %v84 = vld [vmem:[#allocation3 + $0x9c] sm:$0xf]
    %v85 = vld [vmem:[#allocation3 + $0xa0] sm:$0xf]
    %v86 = vld [vmem:[#allocation3 + $0xa4] sm:$0xf]
    %v87 = vld [vmem:[#allocation3 + $0xa8] sm:$0xf]
    %v88 = vld [vmem:[#allocation3 + $0xac] sm:$0xf]
    %v89 = vld [vmem:[#allocation3 + $0xb0] sm:$0xf]
    %v90 = vld [vmem:[#allocation3 + $0xb4] sm:$0xf]
    %v91 = vld [vmem:[#allocation3 + $0xb8] sm:$0xf]
    %v92 = vld [vmem:[#allocation3 + $0xbc] sm:$0xf]
    %v93 = vld [vmem:[#allocation3 + $0xc0] sm:$0xf]
    %v94 = vld [vmem:[#allocation3 + $0xc4] sm:$0xf]
    %v95 = vld [vmem:[#allocation3 + $0xc8] sm:$0xf]
    %v96 = vld [vmem:[#allocation3 + $0xcc] sm:$0xf]
    %v97 = vld [vmem:[#allocation3 + $0xd0] sm:$0xf]
    %v98 = vld [vmem:[#allocation3 + $0xd4] sm:$0xf]
    %v99 = vld [vmem:[#allocation3 + $0xd8] sm:$0xf]
    %v100 = vld [vmem:[#allocation3 + $0xdc] sm:$0xf]
    %v101 = vld [vmem:[#allocation3 + $0xe0] sm:$0xf]
    %v102 = vld [vmem:[#allocation3 + $0xe4] sm:$0xf]
    %v103 = vld [vmem:[#allocation3 + $0xe8] sm:$0xf]
    %v104 = vld [vmem:[#allocation3 + $0xec] sm:$0xf]
    %v105 = vld [vmem:[#allocation3 + $0xf0] sm:$0xf]
    %v106 = vld [vmem:[#allocation3 + $0xf4] sm:$0xf]
    %v107 = vld [vmem:[#allocation3 + $0xf8] sm:$0xf]
    %v108 = vld [vmem:[#allocation3 + $0xfc] sm:$0xf]
    %v113 = vunpack.c.l.b16 %v39
    %v114 = vunpack.c.h.b16 %v39
    %v115 = vunpack.c.l.b16 %v40
    %v116 = vunpack.c.h.b16 %v40
    %v117 = vunpack.c.l.b16 %v41
    %v118 = vunpack.c.h.b16 %v41
    %v119 = vunpack.c.l.b16 %v42
    %v120 = vunpack.c.h.b16 %v42
    %v121 = vpack.c.b16 %v117, %v113
    %v122 = vpack.c.b16 %v118, %v114
    %v123 = vpack.c.b16 %v119, %v115
    %v124 = vpack.c.b16 %v120, %v116
    %v193 = vunpack.c.l.b16 %v45
    %v194 = vunpack.c.l.b16 %v46
    %v195 = vunpack.c.l.b16 %v47
    %v196 = vunpack.c.l.b16 %v48
    %v197 = vunpack.c.l.b16 %v49
    %v198 = vunpack.c.l.b16 %v50
    %v199 = vunpack.c.l.b16 %v51
    %v200 = vunpack.c.l.b16 %v52
    %v201 = vunpack.c.l.b16 %v53
    %v202 = vunpack.c.l.b16 %v54
    %v203 = vunpack.c.l.b16 %v55
    %v204 = vunpack.c.l.b16 %v56
    %v205 = vunpack.c.l.b16 %v57
    %v206 = vunpack.c.l.b16 %v58
    %v207 = vunpack.c.l.b16 %v59
    %v208 = vunpack.c.l.b16 %v60
    %v209 = vunpack.c.l.b16 %v61
    %v210 = vunpack.c.l.b16 %v62
    %v211 = vunpack.c.l.b16 %v63
    %v212 = vunpack.c.l.b16 %v64
    %v213 = vunpack.c.l.b16 %v65
    %v214 = vunpack.c.l.b16 %v66
    %v215 = vunpack.c.l.b16 %v67
    %v216 = vunpack.c.l.b16 %v68
    %v217 = vunpack.c.l.b16 %v69
    %v218 = vunpack.c.l.b16 %v70
    %v219 = vunpack.c.l.b16 %v71
    %v220 = vunpack.c.l.b16 %v72
    %v221 = vunpack.c.l.b16 %v73
    %v222 = vunpack.c.l.b16 %v74
    %v223 = vunpack.c.l.b16 %v75
    %v224 = vunpack.c.l.b16 %v76
    %v225 = vunpack.c.l.b16 %v77
    %v226 = vunpack.c.l.b16 %v78
    %v227 = vunpack.c.l.b16 %v79
    %v228 = vunpack.c.l.b16 %v80
    %v229 = vunpack.c.l.b16 %v81
    %v230 = vunpack.c.l.b16 %v82
    %v231 = vunpack.c.l.b16 %v83
    %v232 = vunpack.c.l.b16 %v84
    %v233 = vunpack.c.l.b16 %v85
    %v234 = vunpack.c.l.b16 %v86
    %v235 = vunpack.c.l.b16 %v87
    %v236 = vunpack.c.l.b16 %v88
    %v237 = vunpack.c.l.b16 %v89
    %v238 = vunpack.c.l.b16 %v90
    %v239 = vunpack.c.l.b16 %v91
    %v240 = vunpack.c.l.b16 %v92
    %v241 = vunpack.c.l.b16 %v93
    %v242 = vunpack.c.l.b16 %v94
    %v243 = vunpack.c.l.b16 %v95
    %v244 = vunpack.c.l.b16 %v96
    %v245 = vunpack.c.l.b16 %v97
    %v246 = vunpack.c.l.b16 %v98
    %v247 = vunpack.c.l.b16 %v99
    %v248 = vunpack.c.l.b16 %v100
    %v249 = vunpack.c.l.b16 %v101
    %v250 = vunpack.c.l.b16 %v102
    %v251 = vunpack.c.l.b16 %v103
    %v252 = vunpack.c.l.b16 %v104
    %v253 = vunpack.c.l.b16 %v105
    %v254 = vunpack.c.l.b16 %v106
    %v255 = vunpack.c.l.b16 %v107
    %v256 = vunpack.c.l.b16 %v108
    %v257 = vpack.c.b16 %v194, %v193
    %v258 = vpack.c.b16 %v196, %v195
    %v259 = vpack.c.b16 %v198, %v197
    %v260 = vpack.c.b16 %v200, %v199
    %v261 = vpack.c.b16 %v202, %v201
    %v262 = vpack.c.b16 %v204, %v203
    %v263 = vpack.c.b16 %v206, %v205
    %v264 = vpack.c.b16 %v208, %v207
    %v265 = vpack.c.b16 %v210, %v209
    %v266 = vpack.c.b16 %v212, %v211
    %v267 = vpack.c.b16 %v214, %v213
    %v268 = vpack.c.b16 %v216, %v215
    %v269 = vpack.c.b16 %v218, %v217
    %v270 = vpack.c.b16 %v220, %v219
    %v271 = vpack.c.b16 %v222, %v221
    %v272 = vpack.c.b16 %v224, %v223
    %v273 = vpack.c.b16 %v226, %v225
    %v274 = vpack.c.b16 %v228, %v227
    %v275 = vpack.c.b16 %v230, %v229
    %v276 = vpack.c.b16 %v232, %v231
    %v277 = vpack.c.b16 %v234, %v233
    %v278 = vpack.c.b16 %v236, %v235
    %v279 = vpack.c.b16 %v238, %v237
    %v280 = vpack.c.b16 %v240, %v239
    %v281 = vpack.c.b16 %v242, %v241
    %v282 = vpack.c.b16 %v244, %v243
    %v283 = vpack.c.b16 %v246, %v245
    %v284 = vpack.c.b16 %v248, %v247
    %v285 = vpack.c.b16 %v250, %v249
    %v286 = vpack.c.b16 %v252, %v251
    %v287 = vpack.c.b16 %v254, %v253
    %v288 = vpack.c.b16 %v256, %v255
    %321 = vmatpush.bf16.msra.mxu0 %v264
    %322 = vmatpush.bf16.msra.mxu0 %v263
    %323 = vmatpush.bf16.msra.mxu0 %v262
    %324 = vmatpush.bf16.msra.mxu0 %v261
    %325 = vmatpush.bf16.msra.mxu0 %v260
    %326 = vmatpush.bf16.msra.mxu0 %v259
    %327 = vmatpush.bf16.msra.mxu0 %v258
    %328 = vmatpush.bf16.msra.mxu0 %v257
    %329 = vmatmul.bf16.gmra.mxu0 %v121
    %v330 = vpop.f32.mrf.mxu0
    %v331 = vadd.f32 0.0, %v330
    %v332 = vpop.f32.mrf.mxu0
    %v333 = vadd.f32 0.0, %v332
    %334 = vdwg.mxu0
    %335 = vmatpush.bf16.msra.mxu0 %v272
    %336 = vmatpush.bf16.msra.mxu0 %v271
    %337 = vmatpush.bf16.msra.mxu0 %v270
    %338 = vmatpush.bf16.msra.mxu0 %v269
    %339 = vmatpush.bf16.msra.mxu0 %v268
    %340 = vmatpush.bf16.msra.mxu0 %v267
    %341 = vmatpush.bf16.msra.mxu0 %v266
    %342 = vmatpush.bf16.msra.mxu0 %v265
    %343 = vmatmul.bf16.gmra.mxu0 %v122
    %v344 = vpop.f32.mrf.mxu0
    %v345 = vadd.f32 %v331, %v344
    %v346 = vpop.f32.mrf.mxu0
    %v347 = vadd.f32 %v333, %v346
    %348 = vdwg.mxu0
    %349 = vmatpush.bf16.msra.mxu0 %v280
    %350 = vmatpush.bf16.msra.mxu0 %v279
    %351 = vmatpush.bf16.msra.mxu0 %v278
    %352 = vmatpush.bf16.msra.mxu0 %v277
    %353 = vmatpush.bf16.msra.mxu0 %v276
    %354 = vmatpush.bf16.msra.mxu0 %v275
    %355 = vmatpush.bf16.msra.mxu0 %v274
    %356 = vmatpush.bf16.msra.mxu0 %v273
    %357 = vmatmul.bf16.gmra.mxu0 %v123
    %v358 = vpop.f32.mrf.mxu0
    %v359 = vadd.f32 %v345, %v358
    %v360 = vpop.f32.mrf.mxu0
    %v361 = vadd.f32 %v347, %v360
    %362 = vdwg.mxu0
    %363 = vmatpush.bf16.msra.mxu0 %v288
    %364 = vmatpush.bf16.msra.mxu0 %v287
    %365 = vmatpush.bf16.msra.mxu0 %v286
    %366 = vmatpush.bf16.msra.mxu0 %v285
    %367 = vmatpush.bf16.msra.mxu0 %v284
    %368 = vmatpush.bf16.msra.mxu0 %v283
    %369 = vmatpush.bf16.msra.mxu0 %v282
    %370 = vmatpush.bf16.msra.mxu0 %v281
    %371 = vmatmul.bf16.gmra.mxu0 %v124
    %v372 = vpop.f32.mrf.mxu0
    %v373 = vadd.f32 %v359, %v372
    %v374 = vpop.f32.mrf.mxu0
    %v375 = vadd.f32 %v361, %v374
    %376 = vdwg.mxu0
    %v377 = vadd.f32 %v43, %v373
    %v378 = vadd.f32 %v44, %v375
    %379 = vst [vmem:[#allocation2] sm:$0xff] %v377
    %380 = vst [vmem:[#allocation2 + $0x8] sm:$0xff] %v378
    // Predicated region
    $region26: #{clip_forward.24} parent=1 // pred_check
      %p381 = pneg %p33
    $region27: #{clip_forward.24} parent=1 // pred_check_branch
      %383 = sbr.rel (%p381) target = $region29
    $region28: #{clip_forward.24} parent=1 // pred_region
      %v384 = vld [vmem:[#allocation2] sm:$0xff]
      %v385 = vld [vmem:[#allocation2 + $0x8] sm:$0xff]
      %v386 = vld [vmem:[%s2] sm:$0x1]
      %v388 = vperm.slane %v386, 0
      %v390 = vadd.f32 %v384, %v388
      %v391 = vadd.f32 %v385, %v388
      %v392 = vld [vmem:[%s3] sm:$0xf]
      %v393 = vld [vmem:[%s3 + $0x4] sm:$0xf]
      %v394 = vunpack.c.l.bf16 %v392
      %v395 = vunpack.c.l.bf16 %v393
      %v396 = vadd.f32 %v390, %v394
      %v397 = vadd.f32 %v391, %v395
      %v398 = vpack.c.bf16 %v396, %v396
      %v399 = vpack.c.bf16 %v397, %v397
      %400 = vst [vmem:[%s4] sm:$0xf] %v398
      %401 = vst [vmem:[%s4 + $0x4] sm:$0xf] %v399
    $region29: #{clip_forward.24} parent=1 // pred_fallthru
      _
    // Predicated region
    $region30: #{clip_forward.24} parent=1 // pred_check
      _
    $region31: #{clip_forward.24} parent=1 // pred_check_branch
      %403 = sbr.rel (0) target = $region33
    $region32: #{clip_forward.24} parent=1 // pred_region
      _
    $region33: #{clip_forward.24} parent=1 // pred_fallthru
      _
    // Predicated region
    $region34: #{clip_forward.24} parent=1 // pred_check
      _
    $region35: #{clip_forward.24} parent=1 // pred_check_branch
      %405 = sbr.rel (0) target = $region37
    $region36: #{clip_forward.24} parent=1 // pred_region
      _
    $region37: #{clip_forward.24} parent=1 // pred_fallthru
      _
    %406 = vsyncpa [#allocation4], 1

// kernel: clip_forward.25
$region0: #{clip_forward.25}
  #allocation0 [shape = 'u32[]', space=smem, size = 0x4, offset = 0x4, fixed_abs, tag = 'smem constant byte address 0x4 - core index']
  #allocation1 [shape = 'u32[72,128]{1,0:T(1,128)}', space=vmem, size = 0x9000, scoped, tag = 'internal scratch']
  #allocation2 [shape = 'f32[2,128]{1,0:T(2,128)}', space=vmem, size = 0x400, scoped, tag = 'scratch operand']
  #allocation3 [shape = 'bf16[2,128]{1,0:T(2,128)(2,1)}', space=vmem, size = 0x200, scoped, tag = 'scratch operand']
  %s0 = inlined_call_operand.vmem [shape: bf16[2,128], index: 0, kind: input, shape index: {}]
  %s1 = inlined_call_operand.hbm [shape: bf16[128,128], index: 1, kind: input, shape index: {}]
  %s2 = inlined_call_operand.vmem [shape: f32[1,128], index: 2, kind: input, shape index: {}]
  %s3 = inlined_call_operand.vmem [shape: f32[1,128], index: 3, kind: input, shape index: {}]
  %s4 = inlined_call_operand.vmem [shape: f32[1,128], index: 4, kind: input, shape index: {}]
  %s5 = inlined_call_operand.hbm [shape: f32[2,128], index: 5, kind: output, shape index: {}]
  %s6 = sld [smem:[#allocation0]]
  $region46: #{clip_forward.25} parent=0
    _
  %s8 = ssub.s32 1, %s6
  %s9 = scalar_select 0, %s8, %s6
  $region1: #{clip_forward.25} parent=0
    #allocation4 [shape = 'u8[32768]{0}', space=vmem, size = 0x8000, scoped, tag = 'input window, operand 1, single buffered']
    #allocation5 [shape = 's32[1]{0}', space=sflag, size = 0x4, scoped, tag = 'scoped memory for clip_forward.25']
    #allocation6 [shape = 's32[1]{0}', space=sflag, size = 0x4, scoped, tag = 'scoped memory for clip_forward.25']
    #allocation7 [shape = 'u8[1024]{0}', space=vmem, size = 0x400, scoped, tag = 'output window, operand 0, single buffered']
    %10 = vsyncpa [#allocation5], 0
    %11 = vsyncpa [#allocation6], 0
    // Predicated region
    $region2: #{clip_forward.25} parent=1 // pred_check
      _
    $region3: #{clip_forward.25} parent=1 // pred_check_branch
      %13 = sbr.rel (0) target = $region5
    $region4: #{clip_forward.25} parent=1 // pred_region
      _
    $region5: #{clip_forward.25} parent=1 // pred_fallthru
      _
    // Predicated region
    $region6: #{clip_forward.25} parent=1 // pred_check
      _
    $region7: #{clip_forward.25} parent=1 // pred_check_branch
      %15 = sbr.rel (0) target = $region9
    $region8: #{clip_forward.25} parent=1 // pred_region
      %17 = vsyncadd [#allocation5], 0
      %s18 = sshll.u32 %s1, 4
      %s19 = int_to_ptr.hbm [resolvable:$true] %s18
      %s20 = sshll.u32 [#allocation4], 4
      %s21 = int_to_ptr.vmem [resolvable:$true] %s20
      %26 = dma.hbm_to_vmem [thread:$0]  %s19, 1024, %s21, [#allocation5], 64, 64, 4
    $region9: #{clip_forward.25} parent=1 // pred_fallthru
      _
    // Predicated region
    $region10: #{clip_forward.25} parent=1 // pred_check
      _
    $region11: #{clip_forward.25} parent=1 // pred_check_branch
      %28 = sbr.rel (0) target = $region13
    $region12: #{clip_forward.25} parent=1 // pred_region
      _
    $region13: #{clip_forward.25} parent=1 // pred_fallthru
      _
    // Predicated region
    $region14: #{clip_forward.25} parent=1 // pred_check
      _
    $region15: #{clip_forward.25} parent=1 // pred_check_branch
      %30 = sbr.rel (0) target = $region17
    $region16: #{clip_forward.25} parent=1 // pred_region
      _
    $region17: #{clip_forward.25} parent=1 // pred_fallthru
      _
    // Predicated region
    $region18: #{clip_forward.25} parent=1 // pred_check
      _
    $region19: #{clip_forward.25} parent=1 // pred_check_branch
      %32 = sbr.rel (0) target = $region21
    $region20: #{clip_forward.25} parent=1 // pred_region
      _
    $region21: #{clip_forward.25} parent=1 // pred_fallthru
      _
    // Predicated region
    $region22: #{clip_forward.25} parent=1 // pred_check
      _
    $region23: #{clip_forward.25} parent=1 // pred_check_branch
      %34 = sbr.rel (0) target = $region25
    $region24: #{clip_forward.25} parent=1 // pred_region
      %36 = dma.done [#allocation5], 1024
    $region25: #{clip_forward.25} parent=1 // pred_fallthru
      _
    %p37 = scmp.eq.s32.totalorder 0, 0
    // Predicated region
    $region26: #{clip_forward.25} parent=1 // pred_check
      %p38 = pneg %p37
    $region27: #{clip_forward.25} parent=1 // pred_check_branch
      %40 = sbr.rel (%p38) target = $region29
    $region28: #{clip_forward.25} parent=1 // pred_region
      %41 = vst [vmem:[#allocation2] sm:$0x3] 0.0
    $region29: #{clip_forward.25} parent=1 // pred_fallthru
      _
    %p42 = scmp.eq.s32.totalorder 0, 0
    // Predicated region
    $region30: #{clip_forward.25} parent=1 // pred_check
      %p43 = pneg %p42
    $region31: #{clip_forward.25} parent=1 // pred_check_branch
      %45 = sbr.rel (%p43) target = $region33
    $region32: #{clip_forward.25} parent=1 // pred_region
      %v46 = vld [vmem:[%s0] sm:$0x1]
      %v47 = vunpack.c.l.bf16 %v46
      %vm48 = vcmask 1041408
      %v49 = vsel %vm48, %v47, 0.0
      %50 = vadd.xlane.f32.xlu0 %v49
      %v51 = vpop.xlane.xlu0 %50
      %v52 = vrcp.pop 128.0
      %v53 = vmul.f32 128.0, %v52
      %v54 = vsub.f32 1.0, %v53
      %v55 = vmul.f32 %v52, %v54
      %v56 = vadd.f32 %v52, %v55
      %vm57 = vweird.f32 %v52
      %v58 = vsel %vm57, %v52, %v56
      %v59 = vmul.f32 %v51, %v58
      %v60 = vsub.f32 %v47, %v59
      %v61 = vmul.f32 %v60, %v60
      %v62 = vsel %vm48, %v61, 0.0
      %63 = vadd.xlane.f32.xlu0 %v62
      %v64 = vpop.xlane.xlu0 %63
      %v65 = vmul.f32 %v64, %v58
      %v66 = vadd.f32 %v65, 1e-05
      %v67 = vrsqrt.pop %v66
      %v68 = vmul.f32 %v67, %v66
      %v69 = vmul.f32 %v68, %v67
      %v70 = vmul.f32 0.5, %v69
      %v71 = vsub.f32 1.5, %v70
      %v72 = vmul.f32 %v67, %v71
      %vm73 = vweird.f32 %v66
      %vm74 = vweird.f32 %v67
      %vm75 = vmor %vm73, %vm74
      %v76 = vsel %vm75, %v67, %v72
      %v77 = vmul.f32 %v60, %v76
      %v78 = vld [vmem:[%s3] sm:$0x1]
      %v80 = vperm.slane %v78, 0
      %v82 = vmul.f32 %v77, %v80
      %v83 = vld [vmem:[%s4] sm:$0x1]
      %v85 = vperm.slane %v83, 0
      %v87 = vadd.f32 %v82, %v85
      %v88 = vpack.c.bf16 %v87, %v87
      %89 = vst [vmem:[#allocation3] sm:$0x1] %v88
    $region33: #{clip_forward.25} parent=1 // pred_fallthru
      _
    %v90 = vld [vmem:[#allocation3] sm:$0x1]
    %v91 = vld [vmem:[#allocation2] sm:$0x3]
    %v92 = vld [vmem:[#allocation4] sm:$0xf]
    %v93 = vld [vmem:[#allocation4 + $0x4] sm:$0xf]
    %v94 = vld [vmem:[#allocation4 + $0x8] sm:$0xf]
    %v95 = vld [vmem:[#allocation4 + $0xc] sm:$0xf]
    %v96 = vld [vmem:[#allocation4 + $0x10] sm:$0xf]
    %v97 = vld [vmem:[#allocation4 + $0x14] sm:$0xf]
    %v98 = vld [vmem:[#allocation4 + $0x18] sm:$0xf]
    %v99 = vld [vmem:[#allocation4 + $0x1c] sm:$0xf]
    %v100 = vld [vmem:[#allocation4 + $0x20] sm:$0xf]
    %v101 = vld [vmem:[#allocation4 + $0x24] sm:$0xf]
    %v102 = vld [vmem:[#allocation4 + $0x28] sm:$0xf]
    %v103 = vld [vmem:[#allocation4 + $0x2c] sm:$0xf]
    %v104 = vld [vmem:[#allocation4 + $0x30] sm:$0xf]
    %v105 = vld [vmem:[#allocation4 + $0x34] sm:$0xf]
    %v106 = vld [vmem:[#allocation4 + $0x38] sm:$0xf]
    %v107 = vld [vmem:[#allocation4 + $0x3c] sm:$0xf]
    %v124 = vunpack.c.l.b16 %v92
    %v125 = vunpack.c.l.b16 %v93
    %v126 = vunpack.c.l.b16 %v94
    %v127 = vunpack.c.l.b16 %v95
    %v128 = vunpack.c.l.b16 %v96
    %v129 = vunpack.c.l.b16 %v97
    %v130 = vunpack.c.l.b16 %v98
    %v131 = vunpack.c.l.b16 %v99
    %v132 = vunpack.c.l.b16 %v100
    %v133 = vunpack.c.l.b16 %v101
    %v134 = vunpack.c.l.b16 %v102
    %v135 = vunpack.c.l.b16 %v103
    %v136 = vunpack.c.l.b16 %v104
    %v137 = vunpack.c.l.b16 %v105
    %v138 = vunpack.c.l.b16 %v106
    %v139 = vunpack.c.l.b16 %v107
    %v140 = vpack.c.b16 %v125, %v124
    %v141 = vpack.c.b16 %v127, %v126
    %v142 = vpack.c.b16 %v129, %v128
    %v143 = vpack.c.b16 %v131, %v130
    %v144 = vpack.c.b16 %v133, %v132
    %v145 = vpack.c.b16 %v135, %v134
    %v146 = vpack.c.b16 %v137, %v136
    %v147 = vpack.c.b16 %v139, %v138
    %156 = vmatpush.bf16.msra.mxu0 %v147
    %157 = vmatpush.bf16.msra.mxu0 %v146
    %158 = vmatpush.bf16.msra.mxu0 %v145
    %159 = vmatpush.bf16.msra.mxu0 %v144
    %160 = vmatpush.bf16.msra.mxu0 %v143
    %161 = vmatpush.bf16.msra.mxu0 %v142
    %162 = vmatpush.bf16.msra.mxu0 %v141
    %163 = vmatpush.bf16.msra.mxu0 %v140
    %164 = vmatmul.bf16.gmra.mxu0 %v90
    %v165 = vpop.f32.mrf.mxu0
    %v166 = vadd.f32 0.0, %v165
    %v167 = vpop.f32.mrf.mxu0
    %168 = vdwg.mxu0
    %v169 = vadd.f32 %v91, %v166
    %170 = vst [vmem:[#allocation2] sm:$0x3] %v169
    // Predicated region
    $region34: #{clip_forward.25} parent=1 // pred_check
      %p171 = pneg %p37
    $region35: #{clip_forward.25} parent=1 // pred_check_branch
      %173 = sbr.rel (%p171) target = $region37
    $region36: #{clip_forward.25} parent=1 // pred_region
      %v174 = vld [vmem:[#allocation2] sm:$0x3]
      %v175 = vld [vmem:[%s2] sm:$0x1]
      %v177 = vperm.slane %v175, 0
      %v179 = vadd.f32 %v174, %v177
      %180 = vst [vmem:[#allocation7] sm:$0x3] %v179
    $region37: #{clip_forward.25} parent=1 // pred_fallthru
      _
    // Predicated region
    $region38: #{clip_forward.25} parent=1 // pred_check
      _
    $region39: #{clip_forward.25} parent=1 // pred_check_branch
      %182 = sbr.rel (0) target = $region41
    $region40: #{clip_forward.25} parent=1 // pred_region
      %184 = vsyncadd [#allocation6], 0
      %s186 = sshll.u32 [#allocation7], 4
      %s187 = int_to_ptr.vmem [resolvable:$true] %s186
      %s188 = sshll.u32 %s5, 4
      %s189 = int_to_ptr.hbm [resolvable:$true] %s188
      %191 = dma.vmem_to_hbm [thread:$0]  %s187, 32, %s189, [#allocation6]
    $region41: #{clip_forward.25} parent=1 // pred_fallthru
      _
    // Predicated region
    $region42: #{clip_forward.25} parent=1 // pred_check
      _
    $region43: #{clip_forward.25} parent=1 // pred_check_branch
      %193 = sbr.rel (0) target = $region45
    $region44: #{clip_forward.25} parent=1 // pred_region
      %195 = dma.done [#allocation6], 32
    $region45: #{clip_forward.25} parent=1 // pred_fallthru
      _
    %196 = vsyncpa [#allocation5], 1
    %197 = vsyncpa [#allocation6], 1

</llo_original>
